<compile_context>
chip_gen: v7x
topology: tpu7x:2x2x1
jax: 0.10.0
libtpu: 0.0.40
codegen_flags: <defaults>
</compile_context>

<pallas_src>
import jax
import jax.numpy as jnp
from jax.experimental import pallas as pl
from jax.experimental.pallas import tpu as pltpu

N, C, H, W = 1, 384, 14, 14
KH, KW = 5, 5
PAD = 2
EPS = 1e-5
CB = 128                    # channels per grid step (lane width)
HW = H * W                  # 196 flattened spatial positions
HWP = 256                   # spatial length padded to a sublane/lane aligned size
WP = W + 2 * PAD            # 18: W plus left/right zero halo
assert C % CB == 0


def bn_relu_dwconv_kernel(x_ref, w_ref, gamma_ref, beta_ref, o_ref,
                          xpad_ref, xn_ref, ot_ref):
    # x_ref:     (CB, HW)     native NCHW channel block (C on sublanes, flat HW on lanes)
    # w_ref:     (KH*KW, CB)  depthwise filter taps, channels on lanes
    # gamma_ref: (1, CB), beta_ref: (1, CB)
    # o_ref:     (CB, HW)
    # xpad_ref:  VMEM (CB, HWP)    lane-padded input slab (aligned transpose source)
    # xn_ref:    VMEM (H, WP, CB)  normalized+ReLU rows with zero W-halo, channels on lanes
    # ot_ref:    VMEM (HWP, CB)    output assembly slab (spatial on sublanes)

    # ---- fused layout change: pad to an aligned slab, transpose once on-chip ----------
    xpad_ref[:, HW:] = jnp.zeros((CB, HWP - HW), jnp.float32)
    xpad_ref[:, :HW] = x_ref[...]
    xt = jnp.transpose(xpad_ref[...])            # (HWP, CB): spatial on sublanes, C on lanes

    # ---- BatchNorm stats: elementwise partials + one cross-sublane reduce each --------
    inv_count = 1.0 / float(N * H * W)
    s1 = jnp.sum(xt, axis=0, keepdims=True)               # (1, CB); padded rows are zero
    s2 = jnp.sum(xt * xt, axis=0, keepdims=True)
    mean = s1 * inv_count
    var = jnp.maximum(s2 * inv_count - mean * mean, 0.0)  # clamp: one-pass var can dip <0
    scale = gamma_ref[...] * jax.lax.rsqrt(var + EPS)     # (1, CB)
    bias = beta_ref[...] - mean * scale                   # (1, CB)

    # ---- normalize + ReLU, scatter rows into the W-padded conv buffer ------------------
    xn_t = jnp.maximum(xt * scale + bias, 0.0)            # (HWP, CB); rows >= HW unused
    zpad = jnp.zeros((PAD, CB), jnp.float32)
    for h in range(H):
        row = xn_t[h * W:(h + 1) * W, :]                  # (W, CB)
        xn_ref[h] = jnp.concatenate([zpad, row, zpad], axis=0)   # (WP, CB), zero halo baked in

    # ---- depthwise 5x5 conv, stride 1, zero pad 2 ---------------------------------------
    # dj outer: the 5 taps of a filter column are broadcast once (25 broadcasts total);
    # each input row's dj-shifted slice is loaded exactly once and scattered into the
    # <=5 output rows that consume it; the H-halo is handled by simply skipping the
    # (exactly zero) out-of-range contributions.
    accs = [jnp.zeros((W, CB), jnp.float32) for _ in range(H)]   # 14 x (W, CB), register resident
    for dj in range(KW):
        wcol = [jnp.broadcast_to(w_ref[di * KW + dj:di * KW + dj + 1, :], (W, CB))
                for di in range(KH)]                      # hoisted tap broadcasts for this dj
        for r in range(H):                                # real input rows only
            src = xn_ref[r, dj:dj + W, :]                 # (W, CB) shifted slice, one load
            for di in range(KH):
                ho = r - di + PAD                         # output row fed by (r, di)
                if 0 <= ho < H:
                    accs[ho] = accs[ho] + src * wcol[di]

    # ---- assemble the (HW, CB) output slab and transpose back to native layout ---------
    for h in range(H):
        ot_ref[h * W:(h + 1) * W, :] = accs[h]
    out_t = jnp.transpose(ot_ref[...])                    # (CB, HWP); cols >= HW discarded
    o_ref[...] = out_t[:, :HW]


@jax.jit
def bn_relu_dwconv(x_nchw, conv_w_oihw, gamma, beta):
    # Native-layout I/O: only free reshapes on the activation path (no standalone XLA
    # transposes); the layout change happens inside the kernel.  The (25, C) weight repack
    # is a tiny (38 KB) one-time parameter prep.
    x2d = x_nchw.reshape(C, HW).astype(jnp.float32)                       # (C, 196), free
    w_kc = conv_w_oihw.reshape(C, KH * KW).T.astype(jnp.float32)          # (25, C)
    gamma2d = gamma.reshape(1, C).astype(jnp.float32)
    beta2d = beta.reshape(1, C).astype(jnp.float32)

    out2d = pl.pallas_call(
        bn_relu_dwconv_kernel,
        out_shape=jax.ShapeDtypeStruct((C, HW), jnp.float32),
        grid=(C // CB,),
        in_specs=[
            pl.BlockSpec((CB, HW), lambda c: (c, 0)),
            pl.BlockSpec((KH * KW, CB), lambda c: (0, c)),
            pl.BlockSpec((1, CB), lambda c: (0, c)),
            pl.BlockSpec((1, CB), lambda c: (0, c)),
        ],
        out_specs=pl.BlockSpec((CB, HW), lambda c: (c, 0)),
        scratch_shapes=[
            pltpu.VMEM((CB, HWP), jnp.float32),
            pltpu.VMEM((H, WP, CB), jnp.float32),
            pltpu.VMEM((HWP, CB), jnp.float32),
        ],
        compiler_params=pltpu.CompilerParams(
            dimension_semantics=("parallel",)),
    )(x2d, w_kc, gamma2d, beta2d)

    return out2d.reshape(N, C, H, W)   # free reshape back to NCHW


def reference(x_nchw, conv_w_oihw, gamma, beta):
    mean = jnp.mean(x_nchw, axis=(0, 2, 3), keepdims=True)
    var = jnp.mean((x_nchw - mean) ** 2, axis=(0, 2, 3), keepdims=True)
    xn = (x_nchw - mean) * jax.lax.rsqrt(var + EPS)
    xn = xn * gamma.reshape(1, C, 1, 1) + beta.reshape(1, C, 1, 1)
    xn = jnp.maximum(xn, 0.0)
    return jax.lax.conv_general_dilated(
        xn, conv_w_oihw,
        window_strides=(1, 1),
        padding=((PAD, PAD), (PAD, PAD)),
        dimension_numbers=("NCHW", "OIHW", "NCHW"),
        feature_group_count=C,
        precision=jax.lax.Precision.HIGHEST,
    )


if __name__ == "__main__":
    key = jax.random.PRNGKey(0)
    kx, kw, kg, kb = jax.random.split(key, 4)

    # Deterministic synthetic inputs / parameters (shapes from the module's __init__).
    x = jax.random.normal(kx, (N, C, H, W), dtype=jnp.float32)
    conv_w = jax.random.normal(kw, (C, 1, KH, KW), dtype=jnp.float32) * 0.1   # depthwise weights
    gamma = 1.0 + 0.1 * jax.random.normal(kg, (C,), dtype=jnp.float32)        # BN weight
    beta = 0.1 * jax.random.normal(kb, (C,), dtype=jnp.float32)               # BN bias

    out = jax.block_until_ready(bn_relu_dwconv(x, conv_w, gamma, beta))
    ref = jax.block_until_ready(reference(x, conv_w, gamma, beta))
    assert out.shape == (N, C, H, W)
    assert jnp.allclose(out, ref, atol=1e-3, rtol=1e-3), "mismatch vs JAX reference"

    print("KERNEL_OK")
</pallas_src>

<mosaic_0001>
module attributes {stable_mosaic.version = 11 : i64} {
  func.func @bn_relu_dwconv_kernel(%arg0: i32, %arg1: memref<128x196xf32, #tpu.memory_space<vmem>>, %arg2: memref<25x128xf32, #tpu.memory_space<vmem>>, %arg3: memref<1x128xf32, #tpu.memory_space<vmem>>, %arg4: memref<1x128xf32, #tpu.memory_space<vmem>>, %arg5: memref<128x196xf32, #tpu.memory_space<vmem>>, %arg6: memref<128x256xf32, #tpu.memory_space<vmem>>, %arg7: memref<14x18x128xf32, #tpu.memory_space<vmem>>, %arg8: memref<256x128xf32, #tpu.memory_space<vmem>>) attributes {dimension_semantics = [#tpu.dimension_semantics<parallel>], iteration_bounds = array<i64: 3>, scalar_prefetch = 0 : i64, scratch_operands = 3 : i64, tpu.core_type = #tpu.core_type<tc>, window_params = [{transform_indices = @transform_0, window_bounds = array<i64: 128, 196>}, {transform_indices = @transform_1, window_bounds = array<i64: 25, 128>}, {transform_indices = @transform_2, window_bounds = array<i64: 1, 128>}, {transform_indices = @transform_3, window_bounds = array<i64: 1, 128>}, {transform_indices = @transform_4, window_bounds = array<i64: 128, 196>}]} {
    %cst = arith.constant 0.000000e+00 : f32
    %0 = vector.broadcast %cst : f32 to vector<128x60xf32>
    %c0 = arith.constant 0 : index
    %c196 = arith.constant 196 : index
    %1 = vector.load %arg6[%c0, %c196] : memref<128x256xf32, #tpu.memory_space<vmem>>, vector<128x60xf32>
    tpu.vector_store %arg6[%c0, %c196], %0 {strides = array<i32>} : memref<128x256xf32, #tpu.memory_space<vmem>>, vector<128x60xf32>,
    %c0_0 = arith.constant 0 : index
    %c0_1 = arith.constant 0 : index
    %2 = vector.load %arg1[%c0_0, %c0_1] : memref<128x196xf32, #tpu.memory_space<vmem>>, vector<128x196xf32>
    %c0_2 = arith.constant 0 : index
    %c0_3 = arith.constant 0 : index
    %3 = vector.load %arg6[%c0_2, %c0_3] : memref<128x256xf32, #tpu.memory_space<vmem>>, vector<128x196xf32>
    tpu.vector_store %arg6[%c0_2, %c0_3], %2 {strides = array<i32>} : memref<128x256xf32, #tpu.memory_space<vmem>>, vector<128x196xf32>,
    %c0_4 = arith.constant 0 : index
    %c0_5 = arith.constant 0 : index
    %4 = vector.load %arg6[%c0_4, %c0_5] : memref<128x256xf32, #tpu.memory_space<vmem>>, vector<128x256xf32>
    %5 = tpu.transpose %4, [1, 0] : vector<128x256xf32> -> vector<256x128xf32>
    %cst_6 = arith.constant dense<0.000000e+00> : vector<128xf32>
    %6 = vector.multi_reduction <add>, %5, %cst_6 [0] : vector<256x128xf32> to vector<128xf32>
    %7 = vector.shape_cast %6 : vector<128xf32> to vector<1x128xf32>
    %8 = arith.mulf %5, %5 : vector<256x128xf32>
    %cst_7 = arith.constant dense<0.000000e+00> : vector<128xf32>
    %9 = vector.multi_reduction <add>, %8, %cst_7 [0] : vector<256x128xf32> to vector<128xf32>
    %10 = vector.shape_cast %9 : vector<128xf32> to vector<1x128xf32>
    %cst_8 = arith.constant 0.00510204071 : f32
    %11 = vector.broadcast %cst_8 : f32 to vector<1x128xf32>
    %12 = arith.mulf %7, %11 : vector<1x128xf32>
    %cst_9 = arith.constant 0.00510204071 : f32
    %13 = vector.broadcast %cst_9 : f32 to vector<1x128xf32>
    %14 = arith.mulf %10, %13 : vector<1x128xf32>
    %15 = arith.mulf %12, %12 : vector<1x128xf32>
    %16 = arith.subf %14, %15 : vector<1x128xf32>
    %cst_10 = arith.constant 0.000000e+00 : f32
    %17 = vector.broadcast %cst_10 : f32 to vector<1x128xf32>
    %18 = arith.maximumf %16, %17 : vector<1x128xf32>
    %c0_11 = arith.constant 0 : index
    %c0_12 = arith.constant 0 : index
    %19 = vector.load %arg3[%c0_11, %c0_12] : memref<1x128xf32, #tpu.memory_space<vmem>>, vector<1x128xf32>
    %cst_13 = arith.constant 9.99999974E-6 : f32
    %20 = vector.broadcast %cst_13 : f32 to vector<1x128xf32>
    %21 = arith.addf %18, %20 : vector<1x128xf32>
    %22 = math.rsqrt %21 : vector<1x128xf32>
    %23 = arith.mulf %19, %22 : vector<1x128xf32>
    %c0_14 = arith.constant 0 : index
    %c0_15 = arith.constant 0 : index
    %24 = vector.load %arg4[%c0_14, %c0_15] : memref<1x128xf32, #tpu.memory_space<vmem>>, vector<1x128xf32>
    %25 = arith.mulf %12, %23 : vector<1x128xf32>
    %26 = arith.subf %24, %25 : vector<1x128xf32>
    %27 = vector.broadcast %23 : vector<1x128xf32> to vector<256x128xf32>
    %28 = arith.mulf %5, %27 : vector<256x128xf32>
    %29 = vector.broadcast %26 : vector<1x128xf32> to vector<256x128xf32>
    %30 = arith.addf %28, %29 : vector<256x128xf32>
    %cst_16 = arith.constant 0.000000e+00 : f32
    %31 = vector.broadcast %cst_16 : f32 to vector<256x128xf32>
    %32 = arith.maximumf %30, %31 : vector<256x128xf32>
    %cst_17 = arith.constant 0.000000e+00 : f32
    %33 = vector.broadcast %cst_17 : f32 to vector<2x128xf32>
    %34 = vector.extract_strided_slice %32 {offsets = [0, 0], sizes = [14, 128], strides = [1, 1]} : vector<256x128xf32> to vector<14x128xf32>
    %35 = tpu.concatenate %33, %34, %33 in 0 : vector<2x128xf32>, vector<14x128xf32>, vector<2x128xf32> -> vector<18x128xf32>
    %c0_18 = arith.constant 0 : index
    %c0_19 = arith.constant 0 : index
    %c0_20 = arith.constant 0 : index
    %36 = vector.load %arg7[%c0_18, %c0_19, %c0_20] : memref<14x18x128xf32, #tpu.memory_space<vmem>>, vector<1x18x128xf32>
    %37 = vector.shape_cast %36 : vector<1x18x128xf32> to vector<18x128xf32>
    %38 = vector.shape_cast %35 : vector<18x128xf32> to vector<1x18x128xf32>
    tpu.vector_store %arg7[%c0_18, %c0_19, %c0_20], %38 {strides = array<i32>} : memref<14x18x128xf32, #tpu.memory_space<vmem>>, vector<1x18x128xf32>,
    %39 = vector.extract_strided_slice %32 {offsets = [14, 0], sizes = [14, 128], strides = [1, 1]} : vector<256x128xf32> to vector<14x128xf32>
    %40 = tpu.concatenate %33, %39, %33 in 0 : vector<2x128xf32>, vector<14x128xf32>, vector<2x128xf32> -> vector<18x128xf32>
    %c1 = arith.constant 1 : index
    %c0_21 = arith.constant 0 : index
    %c0_22 = arith.constant 0 : index
    %41 = vector.load %arg7[%c1, %c0_21, %c0_22] : memref<14x18x128xf32, #tpu.memory_space<vmem>>, vector<1x18x128xf32>
    %42 = vector.shape_cast %41 : vector<1x18x128xf32> to vector<18x128xf32>
    %43 = vector.shape_cast %40 : vector<18x128xf32> to vector<1x18x128xf32>
    tpu.vector_store %arg7[%c1, %c0_21, %c0_22], %43 {strides = array<i32>} : memref<14x18x128xf32, #tpu.memory_space<vmem>>, vector<1x18x128xf32>,
    %44 = vector.extract_strided_slice %32 {offsets = [28, 0], sizes = [14, 128], strides = [1, 1]} : vector<256x128xf32> to vector<14x128xf32>
    %45 = tpu.concatenate %33, %44, %33 in 0 : vector<2x128xf32>, vector<14x128xf32>, vector<2x128xf32> -> vector<18x128xf32>
    %c2 = arith.constant 2 : index
    %c0_23 = arith.constant 0 : index
    %c0_24 = arith.constant 0 : index
    %46 = vector.load %arg7[%c2, %c0_23, %c0_24] : memref<14x18x128xf32, #tpu.memory_space<vmem>>, vector<1x18x128xf32>
    %47 = vector.shape_cast %46 : vector<1x18x128xf32> to vector<18x128xf32>
    %48 = vector.shape_cast %45 : vector<18x128xf32> to vector<1x18x128xf32>
    tpu.vector_store %arg7[%c2, %c0_23, %c0_24], %48 {strides = array<i32>} : memref<14x18x128xf32, #tpu.memory_space<vmem>>, vector<1x18x128xf32>,
    %49 = vector.extract_strided_slice %32 {offsets = [42, 0], sizes = [14, 128], strides = [1, 1]} : vector<256x128xf32> to vector<14x128xf32>
    %50 = tpu.concatenate %33, %49, %33 in 0 : vector<2x128xf32>, vector<14x128xf32>, vector<2x128xf32> -> vector<18x128xf32>
    %c3 = arith.constant 3 : index
    %c0_25 = arith.constant 0 : index
    %c0_26 = arith.constant 0 : index
    %51 = vector.load %arg7[%c3, %c0_25, %c0_26] : memref<14x18x128xf32, #tpu.memory_space<vmem>>, vector<1x18x128xf32>
    %52 = vector.shape_cast %51 : vector<1x18x128xf32> to vector<18x128xf32>
    %53 = vector.shape_cast %50 : vector<18x128xf32> to vector<1x18x128xf32>
    tpu.vector_store %arg7[%c3, %c0_25, %c0_26], %53 {strides = array<i32>} : memref<14x18x128xf32, #tpu.memory_space<vmem>>, vector<1x18x128xf32>,
    %54 = vector.extract_strided_slice %32 {offsets = [56, 0], sizes = [14, 128], strides = [1, 1]} : vector<256x128xf32> to vector<14x128xf32>
    %55 = tpu.concatenate %33, %54, %33 in 0 : vector<2x128xf32>, vector<14x128xf32>, vector<2x128xf32> -> vector<18x128xf32>
    %c4 = arith.constant 4 : index
    %c0_27 = arith.constant 0 : index
    %c0_28 = arith.constant 0 : index
    %56 = vector.load %arg7[%c4, %c0_27, %c0_28] : memref<14x18x128xf32, #tpu.memory_space<vmem>>, vector<1x18x128xf32>
    %57 = vector.shape_cast %56 : vector<1x18x128xf32> to vector<18x128xf32>
    %58 = vector.shape_cast %55 : vector<18x128xf32> to vector<1x18x128xf32>
    tpu.vector_store %arg7[%c4, %c0_27, %c0_28], %58 {strides = array<i32>} : memref<14x18x128xf32, #tpu.memory_space<vmem>>, vector<1x18x128xf32>,
    %59 = vector.extract_strided_slice %32 {offsets = [70, 0], sizes = [14, 128], strides = [1, 1]} : vector<256x128xf32> to vector<14x128xf32>
    %60 = tpu.concatenate %33, %59, %33 in 0 : vector<2x128xf32>, vector<14x128xf32>, vector<2x128xf32> -> vector<18x128xf32>
    %c5 = arith.constant 5 : index
    %c0_29 = arith.constant 0 : index
    %c0_30 = arith.constant 0 : index
    %61 = vector.load %arg7[%c5, %c0_29, %c0_30] : memref<14x18x128xf32, #tpu.memory_space<vmem>>, vector<1x18x128xf32>
    %62 = vector.shape_cast %61 : vector<1x18x128xf32> to vector<18x128xf32>
    %63 = vector.shape_cast %60 : vector<18x128xf32> to vector<1x18x128xf32>
    tpu.vector_store %arg7[%c5, %c0_29, %c0_30], %63 {strides = array<i32>} : memref<14x18x128xf32, #tpu.memory_space<vmem>>, vector<1x18x128xf32>,
    %64 = vector.extract_strided_slice %32 {offsets = [84, 0], sizes = [14, 128], strides = [1, 1]} : vector<256x128xf32> to vector<14x128xf32>
    %65 = tpu.concatenate %33, %64, %33 in 0 : vector<2x128xf32>, vector<14x128xf32>, vector<2x128xf32> -> vector<18x128xf32>
    %c6 = arith.constant 6 : index
    %c0_31 = arith.constant 0 : index
    %c0_32 = arith.constant 0 : index
    %66 = vector.load %arg7[%c6, %c0_31, %c0_32] : memref<14x18x128xf32, #tpu.memory_space<vmem>>, vector<1x18x128xf32>
    %67 = vector.shape_cast %66 : vector<1x18x128xf32> to vector<18x128xf32>
    %68 = vector.shape_cast %65 : vector<18x128xf32> to vector<1x18x128xf32>
    tpu.vector_store %arg7[%c6, %c0_31, %c0_32], %68 {strides = array<i32>} : memref<14x18x128xf32, #tpu.memory_space<vmem>>, vector<1x18x128xf32>,
    %69 = vector.extract_strided_slice %32 {offsets = [98, 0], sizes = [14, 128], strides = [1, 1]} : vector<256x128xf32> to vector<14x128xf32>
    %70 = tpu.concatenate %33, %69, %33 in 0 : vector<2x128xf32>, vector<14x128xf32>, vector<2x128xf32> -> vector<18x128xf32>
    %c7 = arith.constant 7 : index
    %c0_33 = arith.constant 0 : index
    %c0_34 = arith.constant 0 : index
    %71 = vector.load %arg7[%c7, %c0_33, %c0_34] : memref<14x18x128xf32, #tpu.memory_space<vmem>>, vector<1x18x128xf32>
    %72 = vector.shape_cast %71 : vector<1x18x128xf32> to vector<18x128xf32>
    %73 = vector.shape_cast %70 : vector<18x128xf32> to vector<1x18x128xf32>
    tpu.vector_store %arg7[%c7, %c0_33, %c0_34], %73 {strides = array<i32>} : memref<14x18x128xf32, #tpu.memory_space<vmem>>, vector<1x18x128xf32>,
    %74 = vector.extract_strided_slice %32 {offsets = [112, 0], sizes = [14, 128], strides = [1, 1]} : vector<256x128xf32> to vector<14x128xf32>
    %75 = tpu.concatenate %33, %74, %33 in 0 : vector<2x128xf32>, vector<14x128xf32>, vector<2x128xf32> -> vector<18x128xf32>
    %c8 = arith.constant 8 : index
    %c0_35 = arith.constant 0 : index
    %c0_36 = arith.constant 0 : index
    %76 = vector.load %arg7[%c8, %c0_35, %c0_36] : memref<14x18x128xf32, #tpu.memory_space<vmem>>, vector<1x18x128xf32>
    %77 = vector.shape_cast %76 : vector<1x18x128xf32> to vector<18x128xf32>
    %78 = vector.shape_cast %75 : vector<18x128xf32> to vector<1x18x128xf32>
    tpu.vector_store %arg7[%c8, %c0_35, %c0_36], %78 {strides = array<i32>} : memref<14x18x128xf32, #tpu.memory_space<vmem>>, vector<1x18x128xf32>,
    %79 = vector.extract_strided_slice %32 {offsets = [126, 0], sizes = [14, 128], strides = [1, 1]} : vector<256x128xf32> to vector<14x128xf32>
    %80 = tpu.concatenate %33, %79, %33 in 0 : vector<2x128xf32>, vector<14x128xf32>, vector<2x128xf32> -> vector<18x128xf32>
    %c9 = arith.constant 9 : index
    %c0_37 = arith.constant 0 : index
    %c0_38 = arith.constant 0 : index
    %81 = vector.load %arg7[%c9, %c0_37, %c0_38] : memref<14x18x128xf32, #tpu.memory_space<vmem>>, vector<1x18x128xf32>
    %82 = vector.shape_cast %81 : vector<1x18x128xf32> to vector<18x128xf32>
    %83 = vector.shape_cast %80 : vector<18x128xf32> to vector<1x18x128xf32>
    tpu.vector_store %arg7[%c9, %c0_37, %c0_38], %83 {strides = array<i32>} : memref<14x18x128xf32, #tpu.memory_space<vmem>>, vector<1x18x128xf32>,
    %84 = vector.extract_strided_slice %32 {offsets = [140, 0], sizes = [14, 128], strides = [1, 1]} : vector<256x128xf32> to vector<14x128xf32>
    %85 = tpu.concatenate %33, %84, %33 in 0 : vector<2x128xf32>, vector<14x128xf32>, vector<2x128xf32> -> vector<18x128xf32>
    %c10 = arith.constant 10 : index
    %c0_39 = arith.constant 0 : index
    %c0_40 = arith.constant 0 : index
    %86 = vector.load %arg7[%c10, %c0_39, %c0_40] : memref<14x18x128xf32, #tpu.memory_space<vmem>>, vector<1x18x128xf32>
    %87 = vector.shape_cast %86 : vector<1x18x128xf32> to vector<18x128xf32>
    %88 = vector.shape_cast %85 : vector<18x128xf32> to vector<1x18x128xf32>
    tpu.vector_store %arg7[%c10, %c0_39, %c0_40], %88 {strides = array<i32>} : memref<14x18x128xf32, #tpu.memory_space<vmem>>, vector<1x18x128xf32>,
    %89 = vector.extract_strided_slice %32 {offsets = [154, 0], sizes = [14, 128], strides = [1, 1]} : vector<256x128xf32> to vector<14x128xf32>
    %90 = tpu.concatenate %33, %89, %33 in 0 : vector<2x128xf32>, vector<14x128xf32>, vector<2x128xf32> -> vector<18x128xf32>
    %c11 = arith.constant 11 : index
    %c0_41 = arith.constant 0 : index
    %c0_42 = arith.constant 0 : index
    %91 = vector.load %arg7[%c11, %c0_41, %c0_42] : memref<14x18x128xf32, #tpu.memory_space<vmem>>, vector<1x18x128xf32>
    %92 = vector.shape_cast %91 : vector<1x18x128xf32> to vector<18x128xf32>
    %93 = vector.shape_cast %90 : vector<18x128xf32> to vector<1x18x128xf32>
    tpu.vector_store %arg7[%c11, %c0_41, %c0_42], %93 {strides = array<i32>} : memref<14x18x128xf32, #tpu.memory_space<vmem>>, vector<1x18x128xf32>,
    %94 = vector.extract_strided_slice %32 {offsets = [168, 0], sizes = [14, 128], strides = [1, 1]} : vector<256x128xf32> to vector<14x128xf32>
    %95 = tpu.concatenate %33, %94, %33 in 0 : vector<2x128xf32>, vector<14x128xf32>, vector<2x128xf32> -> vector<18x128xf32>
    %c12 = arith.constant 12 : index
    %c0_43 = arith.constant 0 : index
    %c0_44 = arith.constant 0 : index
    %96 = vector.load %arg7[%c12, %c0_43, %c0_44] : memref<14x18x128xf32, #tpu.memory_space<vmem>>, vector<1x18x128xf32>
    %97 = vector.shape_cast %96 : vector<1x18x128xf32> to vector<18x128xf32>
    %98 = vector.shape_cast %95 : vector<18x128xf32> to vector<1x18x128xf32>
    tpu.vector_store %arg7[%c12, %c0_43, %c0_44], %98 {strides = array<i32>} : memref<14x18x128xf32, #tpu.memory_space<vmem>>, vector<1x18x128xf32>,
    %99 = vector.extract_strided_slice %32 {offsets = [182, 0], sizes = [14, 128], strides = [1, 1]} : vector<256x128xf32> to vector<14x128xf32>
    %100 = tpu.concatenate %33, %99, %33 in 0 : vector<2x128xf32>, vector<14x128xf32>, vector<2x128xf32> -> vector<18x128xf32>
    %c13 = arith.constant 13 : index
    %c0_45 = arith.constant 0 : index
    %c0_46 = arith.constant 0 : index
    %101 = vector.load %arg7[%c13, %c0_45, %c0_46] : memref<14x18x128xf32, #tpu.memory_space<vmem>>, vector<1x18x128xf32>
    %102 = vector.shape_cast %101 : vector<1x18x128xf32> to vector<18x128xf32>
    %103 = vector.shape_cast %100 : vector<18x128xf32> to vector<1x18x128xf32>
    tpu.vector_store %arg7[%c13, %c0_45, %c0_46], %103 {strides = array<i32>} : memref<14x18x128xf32, #tpu.memory_space<vmem>>, vector<1x18x128xf32>,
    %cst_47 = arith.constant 0.000000e+00 : f32
    %104 = vector.broadcast %cst_47 : f32 to vector<14x128xf32>
    %cst_48 = arith.constant 0.000000e+00 : f32
    %105 = vector.broadcast %cst_48 : f32 to vector<14x128xf32>
    %cst_49 = arith.constant 0.000000e+00 : f32
    %106 = vector.broadcast %cst_49 : f32 to vector<14x128xf32>
    %cst_50 = arith.constant 0.000000e+00 : f32
    %107 = vector.broadcast %cst_50 : f32 to vector<14x128xf32>
    %cst_51 = arith.constant 0.000000e+00 : f32
    %108 = vector.broadcast %cst_51 : f32 to vector<14x128xf32>
    %cst_52 = arith.constant 0.000000e+00 : f32
    %109 = vector.broadcast %cst_52 : f32 to vector<14x128xf32>
    %cst_53 = arith.constant 0.000000e+00 : f32
    %110 = vector.broadcast %cst_53 : f32 to vector<14x128xf32>
    %cst_54 = arith.constant 0.000000e+00 : f32
    %111 = vector.broadcast %cst_54 : f32 to vector<14x128xf32>
    %cst_55 = arith.constant 0.000000e+00 : f32
    %112 = vector.broadcast %cst_55 : f32 to vector<14x128xf32>
    %cst_56 = arith.constant 0.000000e+00 : f32
    %113 = vector.broadcast %cst_56 : f32 to vector<14x128xf32>
    %cst_57 = arith.constant 0.000000e+00 : f32
    %114 = vector.broadcast %cst_57 : f32 to vector<14x128xf32>
    %cst_58 = arith.constant 0.000000e+00 : f32
    %115 = vector.broadcast %cst_58 : f32 to vector<14x128xf32>
    %cst_59 = arith.constant 0.000000e+00 : f32
    %116 = vector.broadcast %cst_59 : f32 to vector<14x128xf32>
    %cst_60 = arith.constant 0.000000e+00 : f32
    %117 = vector.broadcast %cst_60 : f32 to vector<14x128xf32>
    %c0_61 = arith.constant 0 : index
    %c0_62 = arith.constant 0 : index
    %118 = vector.load %arg2[%c0_61, %c0_62] : memref<25x128xf32, #tpu.memory_space<vmem>>, vector<1x128xf32>
    %119 = vector.shape_cast %118 : vector<1x128xf32> to vector<1x128xf32>
    %120 = vector.broadcast %119 : vector<1x128xf32> to vector<14x128xf32>
    %c5_63 = arith.constant 5 : index
    %c0_64 = arith.constant 0 : index
    %121 = vector.load %arg2[%c5_63, %c0_64] : memref<25x128xf32, #tpu.memory_space<vmem>>, vector<1x128xf32>
    %122 = vector.shape_cast %121 : vector<1x128xf32> to vector<1x128xf32>
    %123 = vector.broadcast %122 : vector<1x128xf32> to vector<14x128xf32>
    %c10_65 = arith.constant 10 : index
    %c0_66 = arith.constant 0 : index
    %124 = vector.load %arg2[%c10_65, %c0_66] : memref<25x128xf32, #tpu.memory_space<vmem>>, vector<1x128xf32>
    %125 = vector.shape_cast %124 : vector<1x128xf32> to vector<1x128xf32>
    %126 = vector.broadcast %125 : vector<1x128xf32> to vector<14x128xf32>
    %c15 = arith.constant 15 : index
    %c0_67 = arith.constant 0 : index
    %127 = vector.load %arg2[%c15, %c0_67] : memref<25x128xf32, #tpu.memory_space<vmem>>, vector<1x128xf32>
    %128 = vector.shape_cast %127 : vector<1x128xf32> to vector<1x128xf32>
    %129 = vector.broadcast %128 : vector<1x128xf32> to vector<14x128xf32>
    %c20 = arith.constant 20 : index
    %c0_68 = arith.constant 0 : index
    %130 = vector.load %arg2[%c20, %c0_68] : memref<25x128xf32, #tpu.memory_space<vmem>>, vector<1x128xf32>
    %131 = vector.shape_cast %130 : vector<1x128xf32> to vector<1x128xf32>
    %132 = vector.broadcast %131 : vector<1x128xf32> to vector<14x128xf32>
    %c0_69 = arith.constant 0 : index
    %c0_70 = arith.constant 0 : index
    %c0_71 = arith.constant 0 : index
    %133 = vector.load %arg7[%c0_69, %c0_70, %c0_71] : memref<14x18x128xf32, #tpu.memory_space<vmem>>, vector<1x14x128xf32>
    %134 = vector.shape_cast %133 : vector<1x14x128xf32> to vector<14x128xf32>
    %135 = arith.mulf %134, %120 : vector<14x128xf32>
    %136 = arith.addf %106, %135 : vector<14x128xf32>
    %137 = arith.mulf %134, %123 : vector<14x128xf32>
    %138 = arith.addf %105, %137 : vector<14x128xf32>
    %139 = arith.mulf %134, %126 : vector<14x128xf32>
    %140 = arith.addf %104, %139 : vector<14x128xf32>
    %c1_72 = arith.constant 1 : index
    %c0_73 = arith.constant 0 : index
    %c0_74 = arith.constant 0 : index
    %141 = vector.load %arg7[%c1_72, %c0_73, %c0_74] : memref<14x18x128xf32, #tpu.memory_space<vmem>>, vector<1x14x128xf32>
    %142 = vector.shape_cast %141 : vector<1x14x128xf32> to vector<14x128xf32>
    %143 = arith.mulf %142, %120 : vector<14x128xf32>
    %144 = arith.addf %107, %143 : vector<14x128xf32>
    %145 = arith.mulf %142, %123 : vector<14x128xf32>
    %146 = arith.addf %136, %145 : vector<14x128xf32>
    %147 = arith.mulf %142, %126 : vector<14x128xf32>
    %148 = arith.addf %138, %147 : vector<14x128xf32>
    %149 = arith.mulf %142, %129 : vector<14x128xf32>
    %150 = arith.addf %140, %149 : vector<14x128xf32>
    %c2_75 = arith.constant 2 : index
    %c0_76 = arith.constant 0 : index
    %c0_77 = arith.constant 0 : index
    %151 = vector.load %arg7[%c2_75, %c0_76, %c0_77] : memref<14x18x128xf32, #tpu.memory_space<vmem>>, vector<1x14x128xf32>
    %152 = vector.shape_cast %151 : vector<1x14x128xf32> to vector<14x128xf32>
    %153 = arith.mulf %152, %120 : vector<14x128xf32>
    %154 = arith.addf %108, %153 : vector<14x128xf32>
    %155 = arith.mulf %152, %123 : vector<14x128xf32>
    %156 = arith.addf %144, %155 : vector<14x128xf32>
    %157 = arith.mulf %152, %126 : vector<14x128xf32>
    %158 = arith.addf %146, %157 : vector<14x128xf32>
    %159 = arith.mulf %152, %129 : vector<14x128xf32>
    %160 = arith.addf %148, %159 : vector<14x128xf32>
    %161 = arith.mulf %152, %132 : vector<14x128xf32>
    %162 = arith.addf %150, %161 : vector<14x128xf32>
    %c3_78 = arith.constant 3 : index
    %c0_79 = arith.constant 0 : index
    %c0_80 = arith.constant 0 : index
    %163 = vector.load %arg7[%c3_78, %c0_79, %c0_80] : memref<14x18x128xf32, #tpu.memory_space<vmem>>, vector<1x14x128xf32>
    %164 = vector.shape_cast %163 : vector<1x14x128xf32> to vector<14x128xf32>
    %165 = arith.mulf %164, %120 : vector<14x128xf32>
    %166 = arith.addf %109, %165 : vector<14x128xf32>
    %167 = arith.mulf %164, %123 : vector<14x128xf32>
    %168 = arith.addf %154, %167 : vector<14x128xf32>
    %169 = arith.mulf %164, %126 : vector<14x128xf32>
    %170 = arith.addf %156, %169 : vector<14x128xf32>
    %171 = arith.mulf %164, %129 : vector<14x128xf32>
    %172 = arith.addf %158, %171 : vector<14x128xf32>
    %173 = arith.mulf %164, %132 : vector<14x128xf32>
    %174 = arith.addf %160, %173 : vector<14x128xf32>
    %c4_81 = arith.constant 4 : index
    %c0_82 = arith.constant 0 : index
    %c0_83 = arith.constant 0 : index
    %175 = vector.load %arg7[%c4_81, %c0_82, %c0_83] : memref<14x18x128xf32, #tpu.memory_space<vmem>>, vector<1x14x128xf32>
    %176 = vector.shape_cast %175 : vector<1x14x128xf32> to vector<14x128xf32>
    %177 = arith.mulf %176, %120 : vector<14x128xf32>
    %178 = arith.addf %110, %177 : vector<14x128xf32>
    %179 = arith.mulf %176, %123 : vector<14x128xf32>
    %180 = arith.addf %166, %179 : vector<14x128xf32>
    %181 = arith.mulf %176, %126 : vector<14x128xf32>
    %182 = arith.addf %168, %181 : vector<14x128xf32>
    %183 = arith.mulf %176, %129 : vector<14x128xf32>
    %184 = arith.addf %170, %183 : vector<14x128xf32>
    %185 = arith.mulf %176, %132 : vector<14x128xf32>
    %186 = arith.addf %172, %185 : vector<14x128xf32>
    %c5_84 = arith.constant 5 : index
    %c0_85 = arith.constant 0 : index
    %c0_86 = arith.constant 0 : index
    %187 = vector.load %arg7[%c5_84, %c0_85, %c0_86] : memref<14x18x128xf32, #tpu.memory_space<vmem>>, vector<1x14x128xf32>
    %188 = vector.shape_cast %187 : vector<1x14x128xf32> to vector<14x128xf32>
    %189 = arith.mulf %188, %120 : vector<14x128xf32>
    %190 = arith.addf %111, %189 : vector<14x128xf32>
    %191 = arith.mulf %188, %123 : vector<14x128xf32>
    %192 = arith.addf %178, %191 : vector<14x128xf32>
    %193 = arith.mulf %188, %126 : vector<14x128xf32>
    %194 = arith.addf %180, %193 : vector<14x128xf32>
    %195 = arith.mulf %188, %129 : vector<14x128xf32>
    %196 = arith.addf %182, %195 : vector<14x128xf32>
    %197 = arith.mulf %188, %132 : vector<14x128xf32>
    %198 = arith.addf %184, %197 : vector<14x128xf32>
    %c6_87 = arith.constant 6 : index
    %c0_88 = arith.constant 0 : index
    %c0_89 = arith.constant 0 : index
    %199 = vector.load %arg7[%c6_87, %c0_88, %c0_89] : memref<14x18x128xf32, #tpu.memory_space<vmem>>, vector<1x14x128xf32>
    %200 = vector.shape_cast %199 : vector<1x14x128xf32> to vector<14x128xf32>
    %201 = arith.mulf %200, %120 : vector<14x128xf32>
    %202 = arith.addf %112, %201 : vector<14x128xf32>
    %203 = arith.mulf %200, %123 : vector<14x128xf32>
    %204 = arith.addf %190, %203 : vector<14x128xf32>
    %205 = arith.mulf %200, %126 : vector<14x128xf32>
    %206 = arith.addf %192, %205 : vector<14x128xf32>
    %207 = arith.mulf %200, %129 : vector<14x128xf32>
    %208 = arith.addf %194, %207 : vector<14x128xf32>
    %209 = arith.mulf %200, %132 : vector<14x128xf32>
    %210 = arith.addf %196, %209 : vector<14x128xf32>
    %c7_90 = arith.constant 7 : index
    %c0_91 = arith.constant 0 : index
    %c0_92 = arith.constant 0 : index
    %211 = vector.load %arg7[%c7_90, %c0_91, %c0_92] : memref<14x18x128xf32, #tpu.memory_space<vmem>>, vector<1x14x128xf32>
    %212 = vector.shape_cast %211 : vector<1x14x128xf32> to vector<14x128xf32>
    %213 = arith.mulf %212, %120 : vector<14x128xf32>
    %214 = arith.addf %113, %213 : vector<14x128xf32>
    %215 = arith.mulf %212, %123 : vector<14x128xf32>
    %216 = arith.addf %202, %215 : vector<14x128xf32>
    %217 = arith.mulf %212, %126 : vector<14x128xf32>
    %218 = arith.addf %204, %217 : vector<14x128xf32>
    %219 = arith.mulf %212, %129 : vector<14x128xf32>
    %220 = arith.addf %206, %219 : vector<14x128xf32>
    %221 = arith.mulf %212, %132 : vector<14x128xf32>
    %222 = arith.addf %208, %221 : vector<14x128xf32>
    %c8_93 = arith.constant 8 : index
    %c0_94 = arith.constant 0 : index
    %c0_95 = arith.constant 0 : index
    %223 = vector.load %arg7[%c8_93, %c0_94, %c0_95] : memref<14x18x128xf32, #tpu.memory_space<vmem>>, vector<1x14x128xf32>
    %224 = vector.shape_cast %223 : vector<1x14x128xf32> to vector<14x128xf32>
    %225 = arith.mulf %224, %120 : vector<14x128xf32>
    %226 = arith.addf %114, %225 : vector<14x128xf32>
    %227 = arith.mulf %224, %123 : vector<14x128xf32>
    %228 = arith.addf %214, %227 : vector<14x128xf32>
    %229 = arith.mulf %224, %126 : vector<14x128xf32>
    %230 = arith.addf %216, %229 : vector<14x128xf32>
    %231 = arith.mulf %224, %129 : vector<14x128xf32>
    %232 = arith.addf %218, %231 : vector<14x128xf32>
    %233 = arith.mulf %224, %132 : vector<14x128xf32>
    %234 = arith.addf %220, %233 : vector<14x128xf32>
    %c9_96 = arith.constant 9 : index
    %c0_97 = arith.constant 0 : index
    %c0_98 = arith.constant 0 : index
    %235 = vector.load %arg7[%c9_96, %c0_97, %c0_98] : memref<14x18x128xf32, #tpu.memory_space<vmem>>, vector<1x14x128xf32>
    %236 = vector.shape_cast %235 : vector<1x14x128xf32> to vector<14x128xf32>
    %237 = arith.mulf %236, %120 : vector<14x128xf32>
    %238 = arith.addf %115, %237 : vector<14x128xf32>
    %239 = arith.mulf %236, %123 : vector<14x128xf32>
    %240 = arith.addf %226, %239 : vector<14x128xf32>
    %241 = arith.mulf %236, %126 : vector<14x128xf32>
    %242 = arith.addf %228, %241 : vector<14x128xf32>
    %243 = arith.mulf %236, %129 : vector<14x128xf32>
    %244 = arith.addf %230, %243 : vector<14x128xf32>
    %245 = arith.mulf %236, %132 : vector<14x128xf32>
    %246 = arith.addf %232, %245 : vector<14x128xf32>
    %c10_99 = arith.constant 10 : index
    %c0_100 = arith.constant 0 : index
    %c0_101 = arith.constant 0 : index
    %247 = vector.load %arg7[%c10_99, %c0_100, %c0_101] : memref<14x18x128xf32, #tpu.memory_space<vmem>>, vector<1x14x128xf32>
    %248 = vector.shape_cast %247 : vector<1x14x128xf32> to vector<14x128xf32>
    %249 = arith.mulf %248, %120 : vector<14x128xf32>
    %250 = arith.addf %116, %249 : vector<14x128xf32>
    %251 = arith.mulf %248, %123 : vector<14x128xf32>
    %252 = arith.addf %238, %251 : vector<14x128xf32>
    %253 = arith.mulf %248, %126 : vector<14x128xf32>
    %254 = arith.addf %240, %253 : vector<14x128xf32>
    %255 = arith.mulf %248, %129 : vector<14x128xf32>
    %256 = arith.addf %242, %255 : vector<14x128xf32>
    %257 = arith.mulf %248, %132 : vector<14x128xf32>
    %258 = arith.addf %244, %257 : vector<14x128xf32>
    %c11_102 = arith.constant 11 : index
    %c0_103 = arith.constant 0 : index
    %c0_104 = arith.constant 0 : index
    %259 = vector.load %arg7[%c11_102, %c0_103, %c0_104] : memref<14x18x128xf32, #tpu.memory_space<vmem>>, vector<1x14x128xf32>
    %260 = vector.shape_cast %259 : vector<1x14x128xf32> to vector<14x128xf32>
    %261 = arith.mulf %260, %120 : vector<14x128xf32>
    %262 = arith.addf %117, %261 : vector<14x128xf32>
    %263 = arith.mulf %260, %123 : vector<14x128xf32>
    %264 = arith.addf %250, %263 : vector<14x128xf32>
    %265 = arith.mulf %260, %126 : vector<14x128xf32>
    %266 = arith.addf %252, %265 : vector<14x128xf32>
    %267 = arith.mulf %260, %129 : vector<14x128xf32>
    %268 = arith.addf %254, %267 : vector<14x128xf32>
    %269 = arith.mulf %260, %132 : vector<14x128xf32>
    %270 = arith.addf %256, %269 : vector<14x128xf32>
    %c12_105 = arith.constant 12 : index
    %c0_106 = arith.constant 0 : index
    %c0_107 = arith.constant 0 : index
    %271 = vector.load %arg7[%c12_105, %c0_106, %c0_107] : memref<14x18x128xf32, #tpu.memory_space<vmem>>, vector<1x14x128xf32>
    %272 = vector.shape_cast %271 : vector<1x14x128xf32> to vector<14x128xf32>
    %273 = arith.mulf %272, %123 : vector<14x128xf32>
    %274 = arith.addf %262, %273 : vector<14x128xf32>
    %275 = arith.mulf %272, %126 : vector<14x128xf32>
    %276 = arith.addf %264, %275 : vector<14x128xf32>
    %277 = arith.mulf %272, %129 : vector<14x128xf32>
    %278 = arith.addf %266, %277 : vector<14x128xf32>
    %279 = arith.mulf %272, %132 : vector<14x128xf32>
    %280 = arith.addf %268, %279 : vector<14x128xf32>
    %c13_108 = arith.constant 13 : index
    %c0_109 = arith.constant 0 : index
    %c0_110 = arith.constant 0 : index
    %281 = vector.load %arg7[%c13_108, %c0_109, %c0_110] : memref<14x18x128xf32, #tpu.memory_space<vmem>>, vector<1x14x128xf32>
    %282 = vector.shape_cast %281 : vector<1x14x128xf32> to vector<14x128xf32>
    %283 = arith.mulf %282, %126 : vector<14x128xf32>
    %284 = arith.addf %274, %283 : vector<14x128xf32>
    %285 = arith.mulf %282, %129 : vector<14x128xf32>
    %286 = arith.addf %276, %285 : vector<14x128xf32>
    %287 = arith.mulf %282, %132 : vector<14x128xf32>
    %288 = arith.addf %278, %287 : vector<14x128xf32>
    %c1_111 = arith.constant 1 : index
    %c0_112 = arith.constant 0 : index
    %289 = vector.load %arg2[%c1_111, %c0_112] : memref<25x128xf32, #tpu.memory_space<vmem>>, vector<1x128xf32>
    %290 = vector.shape_cast %289 : vector<1x128xf32> to vector<1x128xf32>
    %291 = vector.broadcast %290 : vector<1x128xf32> to vector<14x128xf32>
    %c6_113 = arith.constant 6 : index
    %c0_114 = arith.constant 0 : index
    %292 = vector.load %arg2[%c6_113, %c0_114] : memref<25x128xf32, #tpu.memory_space<vmem>>, vector<1x128xf32>
    %293 = vector.shape_cast %292 : vector<1x128xf32> to vector<1x128xf32>
    %294 = vector.broadcast %293 : vector<1x128xf32> to vector<14x128xf32>
    %c11_115 = arith.constant 11 : index
    %c0_116 = arith.constant 0 : index
    %295 = vector.load %arg2[%c11_115, %c0_116] : memref<25x128xf32, #tpu.memory_space<vmem>>, vector<1x128xf32>
    %296 = vector.shape_cast %295 : vector<1x128xf32> to vector<1x128xf32>
    %297 = vector.broadcast %296 : vector<1x128xf32> to vector<14x128xf32>
    %c16 = arith.constant 16 : index
    %c0_117 = arith.constant 0 : index
    %298 = vector.load %arg2[%c16, %c0_117] : memref<25x128xf32, #tpu.memory_space<vmem>>, vector<1x128xf32>
    %299 = vector.shape_cast %298 : vector<1x128xf32> to vector<1x128xf32>
    %300 = vector.broadcast %299 : vector<1x128xf32> to vector<14x128xf32>
    %c21 = arith.constant 21 : index
    %c0_118 = arith.constant 0 : index
    %301 = vector.load %arg2[%c21, %c0_118] : memref<25x128xf32, #tpu.memory_space<vmem>>, vector<1x128xf32>
    %302 = vector.shape_cast %301 : vector<1x128xf32> to vector<1x128xf32>
    %303 = vector.broadcast %302 : vector<1x128xf32> to vector<14x128xf32>
    %c0_119 = arith.constant 0 : index
    %c1_120 = arith.constant 1 : index
    %c0_121 = arith.constant 0 : index
    %304 = vector.load %arg7[%c0_119, %c1_120, %c0_121] : memref<14x18x128xf32, #tpu.memory_space<vmem>>, vector<1x14x128xf32>
    %305 = vector.shape_cast %304 : vector<1x14x128xf32> to vector<14x128xf32>
    %306 = arith.mulf %305, %291 : vector<14x128xf32>
    %307 = arith.addf %186, %306 : vector<14x128xf32>
    %308 = arith.mulf %305, %294 : vector<14x128xf32>
    %309 = arith.addf %174, %308 : vector<14x128xf32>
    %310 = arith.mulf %305, %297 : vector<14x128xf32>
    %311 = arith.addf %162, %310 : vector<14x128xf32>
    %c1_122 = arith.constant 1 : index
    %c1_123 = arith.constant 1 : index
    %c0_124 = arith.constant 0 : index
    %312 = vector.load %arg7[%c1_122, %c1_123, %c0_124] : memref<14x18x128xf32, #tpu.memory_space<vmem>>, vector<1x14x128xf32>
    %313 = vector.shape_cast %312 : vector<1x14x128xf32> to vector<14x128xf32>
    %314 = arith.mulf %313, %291 : vector<14x128xf32>
    %315 = arith.addf %198, %314 : vector<14x128xf32>
    %316 = arith.mulf %313, %294 : vector<14x128xf32>
    %317 = arith.addf %307, %316 : vector<14x128xf32>
    %318 = arith.mulf %313, %297 : vector<14x128xf32>
    %319 = arith.addf %309, %318 : vector<14x128xf32>
    %320 = arith.mulf %313, %300 : vector<14x128xf32>
    %321 = arith.addf %311, %320 : vector<14x128xf32>
    %c2_125 = arith.constant 2 : index
    %c1_126 = arith.constant 1 : index
    %c0_127 = arith.constant 0 : index
    %322 = vector.load %arg7[%c2_125, %c1_126, %c0_127] : memref<14x18x128xf32, #tpu.memory_space<vmem>>, vector<1x14x128xf32>
    %323 = vector.shape_cast %322 : vector<1x14x128xf32> to vector<14x128xf32>
    %324 = arith.mulf %323, %291 : vector<14x128xf32>
    %325 = arith.addf %210, %324 : vector<14x128xf32>
    %326 = arith.mulf %323, %294 : vector<14x128xf32>
    %327 = arith.addf %315, %326 : vector<14x128xf32>
    %328 = arith.mulf %323, %297 : vector<14x128xf32>
    %329 = arith.addf %317, %328 : vector<14x128xf32>
    %330 = arith.mulf %323, %300 : vector<14x128xf32>
    %331 = arith.addf %319, %330 : vector<14x128xf32>
    %332 = arith.mulf %323, %303 : vector<14x128xf32>
    %333 = arith.addf %321, %332 : vector<14x128xf32>
    %c3_128 = arith.constant 3 : index
    %c1_129 = arith.constant 1 : index
    %c0_130 = arith.constant 0 : index
    %334 = vector.load %arg7[%c3_128, %c1_129, %c0_130] : memref<14x18x128xf32, #tpu.memory_space<vmem>>, vector<1x14x128xf32>
    %335 = vector.shape_cast %334 : vector<1x14x128xf32> to vector<14x128xf32>
    %336 = arith.mulf %335, %291 : vector<14x128xf32>
    %337 = arith.addf %222, %336 : vector<14x128xf32>
    %338 = arith.mulf %335, %294 : vector<14x128xf32>
    %339 = arith.addf %325, %338 : vector<14x128xf32>
    %340 = arith.mulf %335, %297 : vector<14x128xf32>
    %341 = arith.addf %327, %340 : vector<14x128xf32>
    %342 = arith.mulf %335, %300 : vector<14x128xf32>
    %343 = arith.addf %329, %342 : vector<14x128xf32>
    %344 = arith.mulf %335, %303 : vector<14x128xf32>
    %345 = arith.addf %331, %344 : vector<14x128xf32>
    %c4_131 = arith.constant 4 : index
    %c1_132 = arith.constant 1 : index
    %c0_133 = arith.constant 0 : index
    %346 = vector.load %arg7[%c4_131, %c1_132, %c0_133] : memref<14x18x128xf32, #tpu.memory_space<vmem>>, vector<1x14x128xf32>
    %347 = vector.shape_cast %346 : vector<1x14x128xf32> to vector<14x128xf32>
    %348 = arith.mulf %347, %291 : vector<14x128xf32>
    %349 = arith.addf %234, %348 : vector<14x128xf32>
    %350 = arith.mulf %347, %294 : vector<14x128xf32>
    %351 = arith.addf %337, %350 : vector<14x128xf32>
    %352 = arith.mulf %347, %297 : vector<14x128xf32>
    %353 = arith.addf %339, %352 : vector<14x128xf32>
    %354 = arith.mulf %347, %300 : vector<14x128xf32>
    %355 = arith.addf %341, %354 : vector<14x128xf32>
    %356 = arith.mulf %347, %303 : vector<14x128xf32>
    %357 = arith.addf %343, %356 : vector<14x128xf32>
    %c5_134 = arith.constant 5 : index
    %c1_135 = arith.constant 1 : index
    %c0_136 = arith.constant 0 : index
    %358 = vector.load %arg7[%c5_134, %c1_135, %c0_136] : memref<14x18x128xf32, #tpu.memory_space<vmem>>, vector<1x14x128xf32>
    %359 = vector.shape_cast %358 : vector<1x14x128xf32> to vector<14x128xf32>
    %360 = arith.mulf %359, %291 : vector<14x128xf32>
    %361 = arith.addf %246, %360 : vector<14x128xf32>
    %362 = arith.mulf %359, %294 : vector<14x128xf32>
    %363 = arith.addf %349, %362 : vector<14x128xf32>
    %364 = arith.mulf %359, %297 : vector<14x128xf32>
    %365 = arith.addf %351, %364 : vector<14x128xf32>
    %366 = arith.mulf %359, %300 : vector<14x128xf32>
    %367 = arith.addf %353, %366 : vector<14x128xf32>
    %368 = arith.mulf %359, %303 : vector<14x128xf32>
    %369 = arith.addf %355, %368 : vector<14x128xf32>
    %c6_137 = arith.constant 6 : index
    %c1_138 = arith.constant 1 : index
    %c0_139 = arith.constant 0 : index
    %370 = vector.load %arg7[%c6_137, %c1_138, %c0_139] : memref<14x18x128xf32, #tpu.memory_space<vmem>>, vector<1x14x128xf32>
    %371 = vector.shape_cast %370 : vector<1x14x128xf32> to vector<14x128xf32>
    %372 = arith.mulf %371, %291 : vector<14x128xf32>
    %373 = arith.addf %258, %372 : vector<14x128xf32>
    %374 = arith.mulf %371, %294 : vector<14x128xf32>
    %375 = arith.addf %361, %374 : vector<14x128xf32>
    %376 = arith.mulf %371, %297 : vector<14x128xf32>
    %377 = arith.addf %363, %376 : vector<14x128xf32>
    %378 = arith.mulf %371, %300 : vector<14x128xf32>
    %379 = arith.addf %365, %378 : vector<14x128xf32>
    %380 = arith.mulf %371, %303 : vector<14x128xf32>
    %381 = arith.addf %367, %380 : vector<14x128xf32>
    %c7_140 = arith.constant 7 : index
    %c1_141 = arith.constant 1 : index
    %c0_142 = arith.constant 0 : index
    %382 = vector.load %arg7[%c7_140, %c1_141, %c0_142] : memref<14x18x128xf32, #tpu.memory_space<vmem>>, vector<1x14x128xf32>
    %383 = vector.shape_cast %382 : vector<1x14x128xf32> to vector<14x128xf32>
    %384 = arith.mulf %383, %291 : vector<14x128xf32>
    %385 = arith.addf %270, %384 : vector<14x128xf32>
    %386 = arith.mulf %383, %294 : vector<14x128xf32>
    %387 = arith.addf %373, %386 : vector<14x128xf32>
    %388 = arith.mulf %383, %297 : vector<14x128xf32>
    %389 = arith.addf %375, %388 : vector<14x128xf32>
    %390 = arith.mulf %383, %300 : vector<14x128xf32>
    %391 = arith.addf %377, %390 : vector<14x128xf32>
    %392 = arith.mulf %383, %303 : vector<14x128xf32>
    %393 = arith.addf %379, %392 : vector<14x128xf32>
    %c8_143 = arith.constant 8 : index
    %c1_144 = arith.constant 1 : index
    %c0_145 = arith.constant 0 : index
    %394 = vector.load %arg7[%c8_143, %c1_144, %c0_145] : memref<14x18x128xf32, #tpu.memory_space<vmem>>, vector<1x14x128xf32>
    %395 = vector.shape_cast %394 : vector<1x14x128xf32> to vector<14x128xf32>
    %396 = arith.mulf %395, %291 : vector<14x128xf32>
    %397 = arith.addf %280, %396 : vector<14x128xf32>
    %398 = arith.mulf %395, %294 : vector<14x128xf32>
    %399 = arith.addf %385, %398 : vector<14x128xf32>
    %400 = arith.mulf %395, %297 : vector<14x128xf32>
    %401 = arith.addf %387, %400 : vector<14x128xf32>
    %402 = arith.mulf %395, %300 : vector<14x128xf32>
    %403 = arith.addf %389, %402 : vector<14x128xf32>
    %404 = arith.mulf %395, %303 : vector<14x128xf32>
    %405 = arith.addf %391, %404 : vector<14x128xf32>
    %c9_146 = arith.constant 9 : index
    %c1_147 = arith.constant 1 : index
    %c0_148 = arith.constant 0 : index
    %406 = vector.load %arg7[%c9_146, %c1_147, %c0_148] : memref<14x18x128xf32, #tpu.memory_space<vmem>>, vector<1x14x128xf32>
    %407 = vector.shape_cast %406 : vector<1x14x128xf32> to vector<14x128xf32>
    %408 = arith.mulf %407, %291 : vector<14x128xf32>
    %409 = arith.addf %288, %408 : vector<14x128xf32>
    %410 = arith.mulf %407, %294 : vector<14x128xf32>
    %411 = arith.addf %397, %410 : vector<14x128xf32>
    %412 = arith.mulf %407, %297 : vector<14x128xf32>
    %413 = arith.addf %399, %412 : vector<14x128xf32>
    %414 = arith.mulf %407, %300 : vector<14x128xf32>
    %415 = arith.addf %401, %414 : vector<14x128xf32>
    %416 = arith.mulf %407, %303 : vector<14x128xf32>
    %417 = arith.addf %403, %416 : vector<14x128xf32>
    %c10_149 = arith.constant 10 : index
    %c1_150 = arith.constant 1 : index
    %c0_151 = arith.constant 0 : index
    %418 = vector.load %arg7[%c10_149, %c1_150, %c0_151] : memref<14x18x128xf32, #tpu.memory_space<vmem>>, vector<1x14x128xf32>
    %419 = vector.shape_cast %418 : vector<1x14x128xf32> to vector<14x128xf32>
    %420 = arith.mulf %419, %291 : vector<14x128xf32>
    %421 = arith.addf %286, %420 : vector<14x128xf32>
    %422 = arith.mulf %419, %294 : vector<14x128xf32>
    %423 = arith.addf %409, %422 : vector<14x128xf32>
    %424 = arith.mulf %419, %297 : vector<14x128xf32>
    %425 = arith.addf %411, %424 : vector<14x128xf32>
    %426 = arith.mulf %419, %300 : vector<14x128xf32>
    %427 = arith.addf %413, %426 : vector<14x128xf32>
    %428 = arith.mulf %419, %303 : vector<14x128xf32>
    %429 = arith.addf %415, %428 : vector<14x128xf32>
    %c11_152 = arith.constant 11 : index
    %c1_153 = arith.constant 1 : index
    %c0_154 = arith.constant 0 : index
    %430 = vector.load %arg7[%c11_152, %c1_153, %c0_154] : memref<14x18x128xf32, #tpu.memory_space<vmem>>, vector<1x14x128xf32>
    %431 = vector.shape_cast %430 : vector<1x14x128xf32> to vector<14x128xf32>
    %432 = arith.mulf %431, %291 : vector<14x128xf32>
    %433 = arith.addf %284, %432 : vector<14x128xf32>
    %434 = arith.mulf %431, %294 : vector<14x128xf32>
    %435 = arith.addf %421, %434 : vector<14x128xf32>
    %436 = arith.mulf %431, %297 : vector<14x128xf32>
    %437 = arith.addf %423, %436 : vector<14x128xf32>
    %438 = arith.mulf %431, %300 : vector<14x128xf32>
    %439 = arith.addf %425, %438 : vector<14x128xf32>
    %440 = arith.mulf %431, %303 : vector<14x128xf32>
    %441 = arith.addf %427, %440 : vector<14x128xf32>
    %c12_155 = arith.constant 12 : index
    %c1_156 = arith.constant 1 : index
    %c0_157 = arith.constant 0 : index
    %442 = vector.load %arg7[%c12_155, %c1_156, %c0_157] : memref<14x18x128xf32, #tpu.memory_space<vmem>>, vector<1x14x128xf32>
    %443 = vector.shape_cast %442 : vector<1x14x128xf32> to vector<14x128xf32>
    %444 = arith.mulf %443, %294 : vector<14x128xf32>
    %445 = arith.addf %433, %444 : vector<14x128xf32>
    %446 = arith.mulf %443, %297 : vector<14x128xf32>
    %447 = arith.addf %435, %446 : vector<14x128xf32>
    %448 = arith.mulf %443, %300 : vector<14x128xf32>
    %449 = arith.addf %437, %448 : vector<14x128xf32>
    %450 = arith.mulf %443, %303 : vector<14x128xf32>
    %451 = arith.addf %439, %450 : vector<14x128xf32>
    %c13_158 = arith.constant 13 : index
    %c1_159 = arith.constant 1 : index
    %c0_160 = arith.constant 0 : index
    %452 = vector.load %arg7[%c13_158, %c1_159, %c0_160] : memref<14x18x128xf32, #tpu.memory_space<vmem>>, vector<1x14x128xf32>
    %453 = vector.shape_cast %452 : vector<1x14x128xf32> to vector<14x128xf32>
    %454 = arith.mulf %453, %297 : vector<14x128xf32>
    %455 = arith.addf %445, %454 : vector<14x128xf32>
    %456 = arith.mulf %453, %300 : vector<14x128xf32>
    %457 = arith.addf %447, %456 : vector<14x128xf32>
    %458 = arith.mulf %453, %303 : vector<14x128xf32>
    %459 = arith.addf %449, %458 : vector<14x128xf32>
    %c2_161 = arith.constant 2 : index
    %c0_162 = arith.constant 0 : index
    %460 = vector.load %arg2[%c2_161, %c0_162] : memref<25x128xf32, #tpu.memory_space<vmem>>, vector<1x128xf32>
    %461 = vector.shape_cast %460 : vector<1x128xf32> to vector<1x128xf32>
    %462 = vector.broadcast %461 : vector<1x128xf32> to vector<14x128xf32>
    %c7_163 = arith.constant 7 : index
    %c0_164 = arith.constant 0 : index
    %463 = vector.load %arg2[%c7_163, %c0_164] : memref<25x128xf32, #tpu.memory_space<vmem>>, vector<1x128xf32>
    %464 = vector.shape_cast %463 : vector<1x128xf32> to vector<1x128xf32>
    %465 = vector.broadcast %464 : vector<1x128xf32> to vector<14x128xf32>
    %c12_165 = arith.constant 12 : index
    %c0_166 = arith.constant 0 : index
    %466 = vector.load %arg2[%c12_165, %c0_166] : memref<25x128xf32, #tpu.memory_space<vmem>>, vector<1x128xf32>
    %467 = vector.shape_cast %466 : vector<1x128xf32> to vector<1x128xf32>
    %468 = vector.broadcast %467 : vector<1x128xf32> to vector<14x128xf32>
    %c17 = arith.constant 17 : index
    %c0_167 = arith.constant 0 : index
    %469 = vector.load %arg2[%c17, %c0_167] : memref<25x128xf32, #tpu.memory_space<vmem>>, vector<1x128xf32>
    %470 = vector.shape_cast %469 : vector<1x128xf32> to vector<1x128xf32>
    %471 = vector.broadcast %470 : vector<1x128xf32> to vector<14x128xf32>
    %c22 = arith.constant 22 : index
    %c0_168 = arith.constant 0 : index
    %472 = vector.load %arg2[%c22, %c0_168] : memref<25x128xf32, #tpu.memory_space<vmem>>, vector<1x128xf32>
    %473 = vector.shape_cast %472 : vector<1x128xf32> to vector<1x128xf32>
    %474 = vector.broadcast %473 : vector<1x128xf32> to vector<14x128xf32>
    %c0_169 = arith.constant 0 : index
    %c2_170 = arith.constant 2 : index
    %c0_171 = arith.constant 0 : index
    %475 = vector.load %arg7[%c0_169, %c2_170, %c0_171] : memref<14x18x128xf32, #tpu.memory_space<vmem>>, vector<1x14x128xf32>
    %476 = vector.shape_cast %475 : vector<1x14x128xf32> to vector<14x128xf32>
    %477 = arith.mulf %476, %462 : vector<14x128xf32>
    %478 = arith.addf %357, %477 : vector<14x128xf32>
    %479 = arith.mulf %476, %465 : vector<14x128xf32>
    %480 = arith.addf %345, %479 : vector<14x128xf32>
    %481 = arith.mulf %476, %468 : vector<14x128xf32>
    %482 = arith.addf %333, %481 : vector<14x128xf32>
    %c1_172 = arith.constant 1 : index
    %c2_173 = arith.constant 2 : index
    %c0_174 = arith.constant 0 : index
    %483 = vector.load %arg7[%c1_172, %c2_173, %c0_174] : memref<14x18x128xf32, #tpu.memory_space<vmem>>, vector<1x14x128xf32>
    %484 = vector.shape_cast %483 : vector<1x14x128xf32> to vector<14x128xf32>
    %485 = arith.mulf %484, %462 : vector<14x128xf32>
    %486 = arith.addf %369, %485 : vector<14x128xf32>
    %487 = arith.mulf %484, %465 : vector<14x128xf32>
    %488 = arith.addf %478, %487 : vector<14x128xf32>
    %489 = arith.mulf %484, %468 : vector<14x128xf32>
    %490 = arith.addf %480, %489 : vector<14x128xf32>
    %491 = arith.mulf %484, %471 : vector<14x128xf32>
    %492 = arith.addf %482, %491 : vector<14x128xf32>
    %c2_175 = arith.constant 2 : index
    %c2_176 = arith.constant 2 : index
    %c0_177 = arith.constant 0 : index
    %493 = vector.load %arg7[%c2_175, %c2_176, %c0_177] : memref<14x18x128xf32, #tpu.memory_space<vmem>>, vector<1x14x128xf32>
    %494 = vector.shape_cast %493 : vector<1x14x128xf32> to vector<14x128xf32>
    %495 = arith.mulf %494, %462 : vector<14x128xf32>
    %496 = arith.addf %381, %495 : vector<14x128xf32>
    %497 = arith.mulf %494, %465 : vector<14x128xf32>
    %498 = arith.addf %486, %497 : vector<14x128xf32>
    %499 = arith.mulf %494, %468 : vector<14x128xf32>
    %500 = arith.addf %488, %499 : vector<14x128xf32>
    %501 = arith.mulf %494, %471 : vector<14x128xf32>
    %502 = arith.addf %490, %501 : vector<14x128xf32>
    %503 = arith.mulf %494, %474 : vector<14x128xf32>
    %504 = arith.addf %492, %503 : vector<14x128xf32>
    %c3_178 = arith.constant 3 : index
    %c2_179 = arith.constant 2 : index
    %c0_180 = arith.constant 0 : index
    %505 = vector.load %arg7[%c3_178, %c2_179, %c0_180] : memref<14x18x128xf32, #tpu.memory_space<vmem>>, vector<1x14x128xf32>
    %506 = vector.shape_cast %505 : vector<1x14x128xf32> to vector<14x128xf32>
    %507 = arith.mulf %506, %462 : vector<14x128xf32>
    %508 = arith.addf %393, %507 : vector<14x128xf32>
    %509 = arith.mulf %506, %465 : vector<14x128xf32>
    %510 = arith.addf %496, %509 : vector<14x128xf32>
    %511 = arith.mulf %506, %468 : vector<14x128xf32>
    %512 = arith.addf %498, %511 : vector<14x128xf32>
    %513 = arith.mulf %506, %471 : vector<14x128xf32>
    %514 = arith.addf %500, %513 : vector<14x128xf32>
    %515 = arith.mulf %506, %474 : vector<14x128xf32>
    %516 = arith.addf %502, %515 : vector<14x128xf32>
    %c4_181 = arith.constant 4 : index
    %c2_182 = arith.constant 2 : index
    %c0_183 = arith.constant 0 : index
    %517 = vector.load %arg7[%c4_181, %c2_182, %c0_183] : memref<14x18x128xf32, #tpu.memory_space<vmem>>, vector<1x14x128xf32>
    %518 = vector.shape_cast %517 : vector<1x14x128xf32> to vector<14x128xf32>
    %519 = arith.mulf %518, %462 : vector<14x128xf32>
    %520 = arith.addf %405, %519 : vector<14x128xf32>
    %521 = arith.mulf %518, %465 : vector<14x128xf32>
    %522 = arith.addf %508, %521 : vector<14x128xf32>
    %523 = arith.mulf %518, %468 : vector<14x128xf32>
    %524 = arith.addf %510, %523 : vector<14x128xf32>
    %525 = arith.mulf %518, %471 : vector<14x128xf32>
    %526 = arith.addf %512, %525 : vector<14x128xf32>
    %527 = arith.mulf %518, %474 : vector<14x128xf32>
    %528 = arith.addf %514, %527 : vector<14x128xf32>
    %c5_184 = arith.constant 5 : index
    %c2_185 = arith.constant 2 : index
    %c0_186 = arith.constant 0 : index
    %529 = vector.load %arg7[%c5_184, %c2_185, %c0_186] : memref<14x18x128xf32, #tpu.memory_space<vmem>>, vector<1x14x128xf32>
    %530 = vector.shape_cast %529 : vector<1x14x128xf32> to vector<14x128xf32>
    %531 = arith.mulf %530, %462 : vector<14x128xf32>
    %532 = arith.addf %417, %531 : vector<14x128xf32>
    %533 = arith.mulf %530, %465 : vector<14x128xf32>
    %534 = arith.addf %520, %533 : vector<14x128xf32>
    %535 = arith.mulf %530, %468 : vector<14x128xf32>
    %536 = arith.addf %522, %535 : vector<14x128xf32>
    %537 = arith.mulf %530, %471 : vector<14x128xf32>
    %538 = arith.addf %524, %537 : vector<14x128xf32>
    %539 = arith.mulf %530, %474 : vector<14x128xf32>
    %540 = arith.addf %526, %539 : vector<14x128xf32>
    %c6_187 = arith.constant 6 : index
    %c2_188 = arith.constant 2 : index
    %c0_189 = arith.constant 0 : index
    %541 = vector.load %arg7[%c6_187, %c2_188, %c0_189] : memref<14x18x128xf32, #tpu.memory_space<vmem>>, vector<1x14x128xf32>
    %542 = vector.shape_cast %541 : vector<1x14x128xf32> to vector<14x128xf32>
    %543 = arith.mulf %542, %462 : vector<14x128xf32>
    %544 = arith.addf %429, %543 : vector<14x128xf32>
    %545 = arith.mulf %542, %465 : vector<14x128xf32>
    %546 = arith.addf %532, %545 : vector<14x128xf32>
    %547 = arith.mulf %542, %468 : vector<14x128xf32>
    %548 = arith.addf %534, %547 : vector<14x128xf32>
    %549 = arith.mulf %542, %471 : vector<14x128xf32>
    %550 = arith.addf %536, %549 : vector<14x128xf32>
    %551 = arith.mulf %542, %474 : vector<14x128xf32>
    %552 = arith.addf %538, %551 : vector<14x128xf32>
    %c7_190 = arith.constant 7 : index
    %c2_191 = arith.constant 2 : index
    %c0_192 = arith.constant 0 : index
    %553 = vector.load %arg7[%c7_190, %c2_191, %c0_192] : memref<14x18x128xf32, #tpu.memory_space<vmem>>, vector<1x14x128xf32>
    %554 = vector.shape_cast %553 : vector<1x14x128xf32> to vector<14x128xf32>
    %555 = arith.mulf %554, %462 : vector<14x128xf32>
    %556 = arith.addf %441, %555 : vector<14x128xf32>
    %557 = arith.mulf %554, %465 : vector<14x128xf32>
    %558 = arith.addf %544, %557 : vector<14x128xf32>
    %559 = arith.mulf %554, %468 : vector<14x128xf32>
    %560 = arith.addf %546, %559 : vector<14x128xf32>
    %561 = arith.mulf %554, %471 : vector<14x128xf32>
    %562 = arith.addf %548, %561 : vector<14x128xf32>
    %563 = arith.mulf %554, %474 : vector<14x128xf32>
    %564 = arith.addf %550, %563 : vector<14x128xf32>
    %c8_193 = arith.constant 8 : index
    %c2_194 = arith.constant 2 : index
    %c0_195 = arith.constant 0 : index
    %565 = vector.load %arg7[%c8_193, %c2_194, %c0_195] : memref<14x18x128xf32, #tpu.memory_space<vmem>>, vector<1x14x128xf32>
    %566 = vector.shape_cast %565 : vector<1x14x128xf32> to vector<14x128xf32>
    %567 = arith.mulf %566, %462 : vector<14x128xf32>
    %568 = arith.addf %451, %567 : vector<14x128xf32>
    %569 = arith.mulf %566, %465 : vector<14x128xf32>
    %570 = arith.addf %556, %569 : vector<14x128xf32>
    %571 = arith.mulf %566, %468 : vector<14x128xf32>
    %572 = arith.addf %558, %571 : vector<14x128xf32>
    %573 = arith.mulf %566, %471 : vector<14x128xf32>
    %574 = arith.addf %560, %573 : vector<14x128xf32>
    %575 = arith.mulf %566, %474 : vector<14x128xf32>
    %576 = arith.addf %562, %575 : vector<14x128xf32>
    %c9_196 = arith.constant 9 : index
    %c2_197 = arith.constant 2 : index
    %c0_198 = arith.constant 0 : index
    %577 = vector.load %arg7[%c9_196, %c2_197, %c0_198] : memref<14x18x128xf32, #tpu.memory_space<vmem>>, vector<1x14x128xf32>
    %578 = vector.shape_cast %577 : vector<1x14x128xf32> to vector<14x128xf32>
    %579 = arith.mulf %578, %462 : vector<14x128xf32>
    %580 = arith.addf %459, %579 : vector<14x128xf32>
    %581 = arith.mulf %578, %465 : vector<14x128xf32>
    %582 = arith.addf %568, %581 : vector<14x128xf32>
    %583 = arith.mulf %578, %468 : vector<14x128xf32>
    %584 = arith.addf %570, %583 : vector<14x128xf32>
    %585 = arith.mulf %578, %471 : vector<14x128xf32>
    %586 = arith.addf %572, %585 : vector<14x128xf32>
    %587 = arith.mulf %578, %474 : vector<14x128xf32>
    %588 = arith.addf %574, %587 : vector<14x128xf32>
    %c10_199 = arith.constant 10 : index
    %c2_200 = arith.constant 2 : index
    %c0_201 = arith.constant 0 : index
    %589 = vector.load %arg7[%c10_199, %c2_200, %c0_201] : memref<14x18x128xf32, #tpu.memory_space<vmem>>, vector<1x14x128xf32>
    %590 = vector.shape_cast %589 : vector<1x14x128xf32> to vector<14x128xf32>
    %591 = arith.mulf %590, %462 : vector<14x128xf32>
    %592 = arith.addf %457, %591 : vector<14x128xf32>
    %593 = arith.mulf %590, %465 : vector<14x128xf32>
    %594 = arith.addf %580, %593 : vector<14x128xf32>
    %595 = arith.mulf %590, %468 : vector<14x128xf32>
    %596 = arith.addf %582, %595 : vector<14x128xf32>
    %597 = arith.mulf %590, %471 : vector<14x128xf32>
    %598 = arith.addf %584, %597 : vector<14x128xf32>
    %599 = arith.mulf %590, %474 : vector<14x128xf32>
    %600 = arith.addf %586, %599 : vector<14x128xf32>
    %c11_202 = arith.constant 11 : index
    %c2_203 = arith.constant 2 : index
    %c0_204 = arith.constant 0 : index
    %601 = vector.load %arg7[%c11_202, %c2_203, %c0_204] : memref<14x18x128xf32, #tpu.memory_space<vmem>>, vector<1x14x128xf32>
    %602 = vector.shape_cast %601 : vector<1x14x128xf32> to vector<14x128xf32>
    %603 = arith.mulf %602, %462 : vector<14x128xf32>
    %604 = arith.addf %455, %603 : vector<14x128xf32>
    %605 = arith.mulf %602, %465 : vector<14x128xf32>
    %606 = arith.addf %592, %605 : vector<14x128xf32>
    %607 = arith.mulf %602, %468 : vector<14x128xf32>
    %608 = arith.addf %594, %607 : vector<14x128xf32>
    %609 = arith.mulf %602, %471 : vector<14x128xf32>
    %610 = arith.addf %596, %609 : vector<14x128xf32>
    %611 = arith.mulf %602, %474 : vector<14x128xf32>
    %612 = arith.addf %598, %611 : vector<14x128xf32>
    %c12_205 = arith.constant 12 : index
    %c2_206 = arith.constant 2 : index
    %c0_207 = arith.constant 0 : index
    %613 = vector.load %arg7[%c12_205, %c2_206, %c0_207] : memref<14x18x128xf32, #tpu.memory_space<vmem>>, vector<1x14x128xf32>
    %614 = vector.shape_cast %613 : vector<1x14x128xf32> to vector<14x128xf32>
    %615 = arith.mulf %614, %465 : vector<14x128xf32>
    %616 = arith.addf %604, %615 : vector<14x128xf32>
    %617 = arith.mulf %614, %468 : vector<14x128xf32>
    %618 = arith.addf %606, %617 : vector<14x128xf32>
    %619 = arith.mulf %614, %471 : vector<14x128xf32>
    %620 = arith.addf %608, %619 : vector<14x128xf32>
    %621 = arith.mulf %614, %474 : vector<14x128xf32>
    %622 = arith.addf %610, %621 : vector<14x128xf32>
    %c13_208 = arith.constant 13 : index
    %c2_209 = arith.constant 2 : index
    %c0_210 = arith.constant 0 : index
    %623 = vector.load %arg7[%c13_208, %c2_209, %c0_210] : memref<14x18x128xf32, #tpu.memory_space<vmem>>, vector<1x14x128xf32>
    %624 = vector.shape_cast %623 : vector<1x14x128xf32> to vector<14x128xf32>
    %625 = arith.mulf %624, %468 : vector<14x128xf32>
    %626 = arith.addf %616, %625 : vector<14x128xf32>
    %627 = arith.mulf %624, %471 : vector<14x128xf32>
    %628 = arith.addf %618, %627 : vector<14x128xf32>
    %629 = arith.mulf %624, %474 : vector<14x128xf32>
    %630 = arith.addf %620, %629 : vector<14x128xf32>
    %c3_211 = arith.constant 3 : index
    %c0_212 = arith.constant 0 : index
    %631 = vector.load %arg2[%c3_211, %c0_212] : memref<25x128xf32, #tpu.memory_space<vmem>>, vector<1x128xf32>
    %632 = vector.shape_cast %631 : vector<1x128xf32> to vector<1x128xf32>
    %633 = vector.broadcast %632 : vector<1x128xf32> to vector<14x128xf32>
    %c8_213 = arith.constant 8 : index
    %c0_214 = arith.constant 0 : index
    %634 = vector.load %arg2[%c8_213, %c0_214] : memref<25x128xf32, #tpu.memory_space<vmem>>, vector<1x128xf32>
    %635 = vector.shape_cast %634 : vector<1x128xf32> to vector<1x128xf32>
    %636 = vector.broadcast %635 : vector<1x128xf32> to vector<14x128xf32>
    %c13_215 = arith.constant 13 : index
    %c0_216 = arith.constant 0 : index
    %637 = vector.load %arg2[%c13_215, %c0_216] : memref<25x128xf32, #tpu.memory_space<vmem>>, vector<1x128xf32>
    %638 = vector.shape_cast %637 : vector<1x128xf32> to vector<1x128xf32>
    %639 = vector.broadcast %638 : vector<1x128xf32> to vector<14x128xf32>
    %c18 = arith.constant 18 : index
    %c0_217 = arith.constant 0 : index
    %640 = vector.load %arg2[%c18, %c0_217] : memref<25x128xf32, #tpu.memory_space<vmem>>, vector<1x128xf32>
    %641 = vector.shape_cast %640 : vector<1x128xf32> to vector<1x128xf32>
    %642 = vector.broadcast %641 : vector<1x128xf32> to vector<14x128xf32>
    %c23 = arith.constant 23 : index
    %c0_218 = arith.constant 0 : index
    %643 = vector.load %arg2[%c23, %c0_218] : memref<25x128xf32, #tpu.memory_space<vmem>>, vector<1x128xf32>
    %644 = vector.shape_cast %643 : vector<1x128xf32> to vector<1x128xf32>
    %645 = vector.broadcast %644 : vector<1x128xf32> to vector<14x128xf32>
    %c0_219 = arith.constant 0 : index
    %c3_220 = arith.constant 3 : index
    %c0_221 = arith.constant 0 : index
    %646 = vector.load %arg7[%c0_219, %c3_220, %c0_221] : memref<14x18x128xf32, #tpu.memory_space<vmem>>, vector<1x14x128xf32>
    %647 = vector.shape_cast %646 : vector<1x14x128xf32> to vector<14x128xf32>
    %648 = arith.mulf %647, %633 : vector<14x128xf32>
    %649 = arith.addf %528, %648 : vector<14x128xf32>
    %650 = arith.mulf %647, %636 : vector<14x128xf32>
    %651 = arith.addf %516, %650 : vector<14x128xf32>
    %652 = arith.mulf %647, %639 : vector<14x128xf32>
    %653 = arith.addf %504, %652 : vector<14x128xf32>
    %c1_222 = arith.constant 1 : index
    %c3_223 = arith.constant 3 : index
    %c0_224 = arith.constant 0 : index
    %654 = vector.load %arg7[%c1_222, %c3_223, %c0_224] : memref<14x18x128xf32, #tpu.memory_space<vmem>>, vector<1x14x128xf32>
    %655 = vector.shape_cast %654 : vector<1x14x128xf32> to vector<14x128xf32>
    %656 = arith.mulf %655, %633 : vector<14x128xf32>
    %657 = arith.addf %540, %656 : vector<14x128xf32>
    %658 = arith.mulf %655, %636 : vector<14x128xf32>
    %659 = arith.addf %649, %658 : vector<14x128xf32>
    %660 = arith.mulf %655, %639 : vector<14x128xf32>
    %661 = arith.addf %651, %660 : vector<14x128xf32>
    %662 = arith.mulf %655, %642 : vector<14x128xf32>
    %663 = arith.addf %653, %662 : vector<14x128xf32>
    %c2_225 = arith.constant 2 : index
    %c3_226 = arith.constant 3 : index
    %c0_227 = arith.constant 0 : index
    %664 = vector.load %arg7[%c2_225, %c3_226, %c0_227] : memref<14x18x128xf32, #tpu.memory_space<vmem>>, vector<1x14x128xf32>
    %665 = vector.shape_cast %664 : vector<1x14x128xf32> to vector<14x128xf32>
    %666 = arith.mulf %665, %633 : vector<14x128xf32>
    %667 = arith.addf %552, %666 : vector<14x128xf32>
    %668 = arith.mulf %665, %636 : vector<14x128xf32>
    %669 = arith.addf %657, %668 : vector<14x128xf32>
    %670 = arith.mulf %665, %639 : vector<14x128xf32>
    %671 = arith.addf %659, %670 : vector<14x128xf32>
    %672 = arith.mulf %665, %642 : vector<14x128xf32>
    %673 = arith.addf %661, %672 : vector<14x128xf32>
    %674 = arith.mulf %665, %645 : vector<14x128xf32>
    %675 = arith.addf %663, %674 : vector<14x128xf32>
    %c3_228 = arith.constant 3 : index
    %c3_229 = arith.constant 3 : index
    %c0_230 = arith.constant 0 : index
    %676 = vector.load %arg7[%c3_228, %c3_229, %c0_230] : memref<14x18x128xf32, #tpu.memory_space<vmem>>, vector<1x14x128xf32>
    %677 = vector.shape_cast %676 : vector<1x14x128xf32> to vector<14x128xf32>
    %678 = arith.mulf %677, %633 : vector<14x128xf32>
    %679 = arith.addf %564, %678 : vector<14x128xf32>
    %680 = arith.mulf %677, %636 : vector<14x128xf32>
    %681 = arith.addf %667, %680 : vector<14x128xf32>
    %682 = arith.mulf %677, %639 : vector<14x128xf32>
    %683 = arith.addf %669, %682 : vector<14x128xf32>
    %684 = arith.mulf %677, %642 : vector<14x128xf32>
    %685 = arith.addf %671, %684 : vector<14x128xf32>
    %686 = arith.mulf %677, %645 : vector<14x128xf32>
    %687 = arith.addf %673, %686 : vector<14x128xf32>
    %c4_231 = arith.constant 4 : index
    %c3_232 = arith.constant 3 : index
    %c0_233 = arith.constant 0 : index
    %688 = vector.load %arg7[%c4_231, %c3_232, %c0_233] : memref<14x18x128xf32, #tpu.memory_space<vmem>>, vector<1x14x128xf32>
    %689 = vector.shape_cast %688 : vector<1x14x128xf32> to vector<14x128xf32>
    %690 = arith.mulf %689, %633 : vector<14x128xf32>
    %691 = arith.addf %576, %690 : vector<14x128xf32>
    %692 = arith.mulf %689, %636 : vector<14x128xf32>
    %693 = arith.addf %679, %692 : vector<14x128xf32>
    %694 = arith.mulf %689, %639 : vector<14x128xf32>
    %695 = arith.addf %681, %694 : vector<14x128xf32>
    %696 = arith.mulf %689, %642 : vector<14x128xf32>
    %697 = arith.addf %683, %696 : vector<14x128xf32>
    %698 = arith.mulf %689, %645 : vector<14x128xf32>
    %699 = arith.addf %685, %698 : vector<14x128xf32>
    %c5_234 = arith.constant 5 : index
    %c3_235 = arith.constant 3 : index
    %c0_236 = arith.constant 0 : index
    %700 = vector.load %arg7[%c5_234, %c3_235, %c0_236] : memref<14x18x128xf32, #tpu.memory_space<vmem>>, vector<1x14x128xf32>
    %701 = vector.shape_cast %700 : vector<1x14x128xf32> to vector<14x128xf32>
    %702 = arith.mulf %701, %633 : vector<14x128xf32>
    %703 = arith.addf %588, %702 : vector<14x128xf32>
    %704 = arith.mulf %701, %636 : vector<14x128xf32>
    %705 = arith.addf %691, %704 : vector<14x128xf32>
    %706 = arith.mulf %701, %639 : vector<14x128xf32>
    %707 = arith.addf %693, %706 : vector<14x128xf32>
    %708 = arith.mulf %701, %642 : vector<14x128xf32>
    %709 = arith.addf %695, %708 : vector<14x128xf32>
    %710 = arith.mulf %701, %645 : vector<14x128xf32>
    %711 = arith.addf %697, %710 : vector<14x128xf32>
    %c6_237 = arith.constant 6 : index
    %c3_238 = arith.constant 3 : index
    %c0_239 = arith.constant 0 : index
    %712 = vector.load %arg7[%c6_237, %c3_238, %c0_239] : memref<14x18x128xf32, #tpu.memory_space<vmem>>, vector<1x14x128xf32>
    %713 = vector.shape_cast %712 : vector<1x14x128xf32> to vector<14x128xf32>
    %714 = arith.mulf %713, %633 : vector<14x128xf32>
    %715 = arith.addf %600, %714 : vector<14x128xf32>
    %716 = arith.mulf %713, %636 : vector<14x128xf32>
    %717 = arith.addf %703, %716 : vector<14x128xf32>
    %718 = arith.mulf %713, %639 : vector<14x128xf32>
    %719 = arith.addf %705, %718 : vector<14x128xf32>
    %720 = arith.mulf %713, %642 : vector<14x128xf32>
    %721 = arith.addf %707, %720 : vector<14x128xf32>
    %722 = arith.mulf %713, %645 : vector<14x128xf32>
    %723 = arith.addf %709, %722 : vector<14x128xf32>
    %c7_240 = arith.constant 7 : index
    %c3_241 = arith.constant 3 : index
    %c0_242 = arith.constant 0 : index
    %724 = vector.load %arg7[%c7_240, %c3_241, %c0_242] : memref<14x18x128xf32, #tpu.memory_space<vmem>>, vector<1x14x128xf32>
    %725 = vector.shape_cast %724 : vector<1x14x128xf32> to vector<14x128xf32>
    %726 = arith.mulf %725, %633 : vector<14x128xf32>
    %727 = arith.addf %612, %726 : vector<14x128xf32>
    %728 = arith.mulf %725, %636 : vector<14x128xf32>
    %729 = arith.addf %715, %728 : vector<14x128xf32>
    %730 = arith.mulf %725, %639 : vector<14x128xf32>
    %731 = arith.addf %717, %730 : vector<14x128xf32>
    %732 = arith.mulf %725, %642 : vector<14x128xf32>
    %733 = arith.addf %719, %732 : vector<14x128xf32>
    %734 = arith.mulf %725, %645 : vector<14x128xf32>
    %735 = arith.addf %721, %734 : vector<14x128xf32>
    %c8_243 = arith.constant 8 : index
    %c3_244 = arith.constant 3 : index
    %c0_245 = arith.constant 0 : index
    %736 = vector.load %arg7[%c8_243, %c3_244, %c0_245] : memref<14x18x128xf32, #tpu.memory_space<vmem>>, vector<1x14x128xf32>
    %737 = vector.shape_cast %736 : vector<1x14x128xf32> to vector<14x128xf32>
    %738 = arith.mulf %737, %633 : vector<14x128xf32>
    %739 = arith.addf %622, %738 : vector<14x128xf32>
    %740 = arith.mulf %737, %636 : vector<14x128xf32>
    %741 = arith.addf %727, %740 : vector<14x128xf32>
    %742 = arith.mulf %737, %639 : vector<14x128xf32>
    %743 = arith.addf %729, %742 : vector<14x128xf32>
    %744 = arith.mulf %737, %642 : vector<14x128xf32>
    %745 = arith.addf %731, %744 : vector<14x128xf32>
    %746 = arith.mulf %737, %645 : vector<14x128xf32>
    %747 = arith.addf %733, %746 : vector<14x128xf32>
    %c9_246 = arith.constant 9 : index
    %c3_247 = arith.constant 3 : index
    %c0_248 = arith.constant 0 : index
    %748 = vector.load %arg7[%c9_246, %c3_247, %c0_248] : memref<14x18x128xf32, #tpu.memory_space<vmem>>, vector<1x14x128xf32>
    %749 = vector.shape_cast %748 : vector<1x14x128xf32> to vector<14x128xf32>
    %750 = arith.mulf %749, %633 : vector<14x128xf32>
    %751 = arith.addf %630, %750 : vector<14x128xf32>
    %752 = arith.mulf %749, %636 : vector<14x128xf32>
    %753 = arith.addf %739, %752 : vector<14x128xf32>
    %754 = arith.mulf %749, %639 : vector<14x128xf32>
    %755 = arith.addf %741, %754 : vector<14x128xf32>
    %756 = arith.mulf %749, %642 : vector<14x128xf32>
    %757 = arith.addf %743, %756 : vector<14x128xf32>
    %758 = arith.mulf %749, %645 : vector<14x128xf32>
    %759 = arith.addf %745, %758 : vector<14x128xf32>
    %c10_249 = arith.constant 10 : index
    %c3_250 = arith.constant 3 : index
    %c0_251 = arith.constant 0 : index
    %760 = vector.load %arg7[%c10_249, %c3_250, %c0_251] : memref<14x18x128xf32, #tpu.memory_space<vmem>>, vector<1x14x128xf32>
    %761 = vector.shape_cast %760 : vector<1x14x128xf32> to vector<14x128xf32>
    %762 = arith.mulf %761, %633 : vector<14x128xf32>
    %763 = arith.addf %628, %762 : vector<14x128xf32>
    %764 = arith.mulf %761, %636 : vector<14x128xf32>
    %765 = arith.addf %751, %764 : vector<14x128xf32>
    %766 = arith.mulf %761, %639 : vector<14x128xf32>
    %767 = arith.addf %753, %766 : vector<14x128xf32>
    %768 = arith.mulf %761, %642 : vector<14x128xf32>
    %769 = arith.addf %755, %768 : vector<14x128xf32>
    %770 = arith.mulf %761, %645 : vector<14x128xf32>
    %771 = arith.addf %757, %770 : vector<14x128xf32>
    %c11_252 = arith.constant 11 : index
    %c3_253 = arith.constant 3 : index
    %c0_254 = arith.constant 0 : index
    %772 = vector.load %arg7[%c11_252, %c3_253, %c0_254] : memref<14x18x128xf32, #tpu.memory_space<vmem>>, vector<1x14x128xf32>
    %773 = vector.shape_cast %772 : vector<1x14x128xf32> to vector<14x128xf32>
    %774 = arith.mulf %773, %633 : vector<14x128xf32>
    %775 = arith.addf %626, %774 : vector<14x128xf32>
    %776 = arith.mulf %773, %636 : vector<14x128xf32>
    %777 = arith.addf %763, %776 : vector<14x128xf32>
    %778 = arith.mulf %773, %639 : vector<14x128xf32>
    %779 = arith.addf %765, %778 : vector<14x128xf32>
    %780 = arith.mulf %773, %642 : vector<14x128xf32>
    %781 = arith.addf %767, %780 : vector<14x128xf32>
    %782 = arith.mulf %773, %645 : vector<14x128xf32>
    %783 = arith.addf %769, %782 : vector<14x128xf32>
    %c12_255 = arith.constant 12 : index
    %c3_256 = arith.constant 3 : index
    %c0_257 = arith.constant 0 : index
    %784 = vector.load %arg7[%c12_255, %c3_256, %c0_257] : memref<14x18x128xf32, #tpu.memory_space<vmem>>, vector<1x14x128xf32>
    %785 = vector.shape_cast %784 : vector<1x14x128xf32> to vector<14x128xf32>
    %786 = arith.mulf %785, %636 : vector<14x128xf32>
    %787 = arith.addf %775, %786 : vector<14x128xf32>
    %788 = arith.mulf %785, %639 : vector<14x128xf32>
    %789 = arith.addf %777, %788 : vector<14x128xf32>
    %790 = arith.mulf %785, %642 : vector<14x128xf32>
    %791 = arith.addf %779, %790 : vector<14x128xf32>
    %792 = arith.mulf %785, %645 : vector<14x128xf32>
    %793 = arith.addf %781, %792 : vector<14x128xf32>
    %c13_258 = arith.constant 13 : index
    %c3_259 = arith.constant 3 : index
    %c0_260 = arith.constant 0 : index
    %794 = vector.load %arg7[%c13_258, %c3_259, %c0_260] : memref<14x18x128xf32, #tpu.memory_space<vmem>>, vector<1x14x128xf32>
    %795 = vector.shape_cast %794 : vector<1x14x128xf32> to vector<14x128xf32>
    %796 = arith.mulf %795, %639 : vector<14x128xf32>
    %797 = arith.addf %787, %796 : vector<14x128xf32>
    %798 = arith.mulf %795, %642 : vector<14x128xf32>
    %799 = arith.addf %789, %798 : vector<14x128xf32>
    %800 = arith.mulf %795, %645 : vector<14x128xf32>
    %801 = arith.addf %791, %800 : vector<14x128xf32>
    %c4_261 = arith.constant 4 : index
    %c0_262 = arith.constant 0 : index
    %802 = vector.load %arg2[%c4_261, %c0_262] : memref<25x128xf32, #tpu.memory_space<vmem>>, vector<1x128xf32>
    %803 = vector.shape_cast %802 : vector<1x128xf32> to vector<1x128xf32>
    %804 = vector.broadcast %803 : vector<1x128xf32> to vector<14x128xf32>
    %c9_263 = arith.constant 9 : index
    %c0_264 = arith.constant 0 : index
    %805 = vector.load %arg2[%c9_263, %c0_264] : memref<25x128xf32, #tpu.memory_space<vmem>>, vector<1x128xf32>
    %806 = vector.shape_cast %805 : vector<1x128xf32> to vector<1x128xf32>
    %807 = vector.broadcast %806 : vector<1x128xf32> to vector<14x128xf32>
    %c14 = arith.constant 14 : index
    %c0_265 = arith.constant 0 : index
    %808 = vector.load %arg2[%c14, %c0_265] : memref<25x128xf32, #tpu.memory_space<vmem>>, vector<1x128xf32>
    %809 = vector.shape_cast %808 : vector<1x128xf32> to vector<1x128xf32>
    %810 = vector.broadcast %809 : vector<1x128xf32> to vector<14x128xf32>
    %c19 = arith.constant 19 : index
    %c0_266 = arith.constant 0 : index
    %811 = vector.load %arg2[%c19, %c0_266] : memref<25x128xf32, #tpu.memory_space<vmem>>, vector<1x128xf32>
    %812 = vector.shape_cast %811 : vector<1x128xf32> to vector<1x128xf32>
    %813 = vector.broadcast %812 : vector<1x128xf32> to vector<14x128xf32>
    %c24 = arith.constant 24 : index
    %c0_267 = arith.constant 0 : index
    %814 = vector.load %arg2[%c24, %c0_267] : memref<25x128xf32, #tpu.memory_space<vmem>>, vector<1x128xf32>
    %815 = vector.shape_cast %814 : vector<1x128xf32> to vector<1x128xf32>
    %816 = vector.broadcast %815 : vector<1x128xf32> to vector<14x128xf32>
    %c0_268 = arith.constant 0 : index
    %c4_269 = arith.constant 4 : index
    %c0_270 = arith.constant 0 : index
    %817 = vector.load %arg7[%c0_268, %c4_269, %c0_270] : memref<14x18x128xf32, #tpu.memory_space<vmem>>, vector<1x14x128xf32>
    %818 = vector.shape_cast %817 : vector<1x14x128xf32> to vector<14x128xf32>
    %819 = arith.mulf %818, %804 : vector<14x128xf32>
    %820 = arith.addf %699, %819 : vector<14x128xf32>
    %821 = arith.mulf %818, %807 : vector<14x128xf32>
    %822 = arith.addf %687, %821 : vector<14x128xf32>
    %823 = arith.mulf %818, %810 : vector<14x128xf32>
    %824 = arith.addf %675, %823 : vector<14x128xf32>
    %c1_271 = arith.constant 1 : index
    %c4_272 = arith.constant 4 : index
    %c0_273 = arith.constant 0 : index
    %825 = vector.load %arg7[%c1_271, %c4_272, %c0_273] : memref<14x18x128xf32, #tpu.memory_space<vmem>>, vector<1x14x128xf32>
    %826 = vector.shape_cast %825 : vector<1x14x128xf32> to vector<14x128xf32>
    %827 = arith.mulf %826, %804 : vector<14x128xf32>
    %828 = arith.addf %711, %827 : vector<14x128xf32>
    %829 = arith.mulf %826, %807 : vector<14x128xf32>
    %830 = arith.addf %820, %829 : vector<14x128xf32>
    %831 = arith.mulf %826, %810 : vector<14x128xf32>
    %832 = arith.addf %822, %831 : vector<14x128xf32>
    %833 = arith.mulf %826, %813 : vector<14x128xf32>
    %834 = arith.addf %824, %833 : vector<14x128xf32>
    %c2_274 = arith.constant 2 : index
    %c4_275 = arith.constant 4 : index
    %c0_276 = arith.constant 0 : index
    %835 = vector.load %arg7[%c2_274, %c4_275, %c0_276] : memref<14x18x128xf32, #tpu.memory_space<vmem>>, vector<1x14x128xf32>
    %836 = vector.shape_cast %835 : vector<1x14x128xf32> to vector<14x128xf32>
    %837 = arith.mulf %836, %804 : vector<14x128xf32>
    %838 = arith.addf %723, %837 : vector<14x128xf32>
    %839 = arith.mulf %836, %807 : vector<14x128xf32>
    %840 = arith.addf %828, %839 : vector<14x128xf32>
    %841 = arith.mulf %836, %810 : vector<14x128xf32>
    %842 = arith.addf %830, %841 : vector<14x128xf32>
    %843 = arith.mulf %836, %813 : vector<14x128xf32>
    %844 = arith.addf %832, %843 : vector<14x128xf32>
    %845 = arith.mulf %836, %816 : vector<14x128xf32>
    %846 = arith.addf %834, %845 : vector<14x128xf32>
    %c3_277 = arith.constant 3 : index
    %c4_278 = arith.constant 4 : index
    %c0_279 = arith.constant 0 : index
    %847 = vector.load %arg7[%c3_277, %c4_278, %c0_279] : memref<14x18x128xf32, #tpu.memory_space<vmem>>, vector<1x14x128xf32>
    %848 = vector.shape_cast %847 : vector<1x14x128xf32> to vector<14x128xf32>
    %849 = arith.mulf %848, %804 : vector<14x128xf32>
    %850 = arith.addf %735, %849 : vector<14x128xf32>
    %851 = arith.mulf %848, %807 : vector<14x128xf32>
    %852 = arith.addf %838, %851 : vector<14x128xf32>
    %853 = arith.mulf %848, %810 : vector<14x128xf32>
    %854 = arith.addf %840, %853 : vector<14x128xf32>
    %855 = arith.mulf %848, %813 : vector<14x128xf32>
    %856 = arith.addf %842, %855 : vector<14x128xf32>
    %857 = arith.mulf %848, %816 : vector<14x128xf32>
    %858 = arith.addf %844, %857 : vector<14x128xf32>
    %c4_280 = arith.constant 4 : index
    %c4_281 = arith.constant 4 : index
    %c0_282 = arith.constant 0 : index
    %859 = vector.load %arg7[%c4_280, %c4_281, %c0_282] : memref<14x18x128xf32, #tpu.memory_space<vmem>>, vector<1x14x128xf32>
    %860 = vector.shape_cast %859 : vector<1x14x128xf32> to vector<14x128xf32>
    %861 = arith.mulf %860, %804 : vector<14x128xf32>
    %862 = arith.addf %747, %861 : vector<14x128xf32>
    %863 = arith.mulf %860, %807 : vector<14x128xf32>
    %864 = arith.addf %850, %863 : vector<14x128xf32>
    %865 = arith.mulf %860, %810 : vector<14x128xf32>
    %866 = arith.addf %852, %865 : vector<14x128xf32>
    %867 = arith.mulf %860, %813 : vector<14x128xf32>
    %868 = arith.addf %854, %867 : vector<14x128xf32>
    %869 = arith.mulf %860, %816 : vector<14x128xf32>
    %870 = arith.addf %856, %869 : vector<14x128xf32>
    %c5_283 = arith.constant 5 : index
    %c4_284 = arith.constant 4 : index
    %c0_285 = arith.constant 0 : index
    %871 = vector.load %arg7[%c5_283, %c4_284, %c0_285] : memref<14x18x128xf32, #tpu.memory_space<vmem>>, vector<1x14x128xf32>
    %872 = vector.shape_cast %871 : vector<1x14x128xf32> to vector<14x128xf32>
    %873 = arith.mulf %872, %804 : vector<14x128xf32>
    %874 = arith.addf %759, %873 : vector<14x128xf32>
    %875 = arith.mulf %872, %807 : vector<14x128xf32>
    %876 = arith.addf %862, %875 : vector<14x128xf32>
    %877 = arith.mulf %872, %810 : vector<14x128xf32>
    %878 = arith.addf %864, %877 : vector<14x128xf32>
    %879 = arith.mulf %872, %813 : vector<14x128xf32>
    %880 = arith.addf %866, %879 : vector<14x128xf32>
    %881 = arith.mulf %872, %816 : vector<14x128xf32>
    %882 = arith.addf %868, %881 : vector<14x128xf32>
    %c6_286 = arith.constant 6 : index
    %c4_287 = arith.constant 4 : index
    %c0_288 = arith.constant 0 : index
    %883 = vector.load %arg7[%c6_286, %c4_287, %c0_288] : memref<14x18x128xf32, #tpu.memory_space<vmem>>, vector<1x14x128xf32>
    %884 = vector.shape_cast %883 : vector<1x14x128xf32> to vector<14x128xf32>
    %885 = arith.mulf %884, %804 : vector<14x128xf32>
    %886 = arith.addf %771, %885 : vector<14x128xf32>
    %887 = arith.mulf %884, %807 : vector<14x128xf32>
    %888 = arith.addf %874, %887 : vector<14x128xf32>
    %889 = arith.mulf %884, %810 : vector<14x128xf32>
    %890 = arith.addf %876, %889 : vector<14x128xf32>
    %891 = arith.mulf %884, %813 : vector<14x128xf32>
    %892 = arith.addf %878, %891 : vector<14x128xf32>
    %893 = arith.mulf %884, %816 : vector<14x128xf32>
    %894 = arith.addf %880, %893 : vector<14x128xf32>
    %c7_289 = arith.constant 7 : index
    %c4_290 = arith.constant 4 : index
    %c0_291 = arith.constant 0 : index
    %895 = vector.load %arg7[%c7_289, %c4_290, %c0_291] : memref<14x18x128xf32, #tpu.memory_space<vmem>>, vector<1x14x128xf32>
    %896 = vector.shape_cast %895 : vector<1x14x128xf32> to vector<14x128xf32>
    %897 = arith.mulf %896, %804 : vector<14x128xf32>
    %898 = arith.addf %783, %897 : vector<14x128xf32>
    %899 = arith.mulf %896, %807 : vector<14x128xf32>
    %900 = arith.addf %886, %899 : vector<14x128xf32>
    %901 = arith.mulf %896, %810 : vector<14x128xf32>
    %902 = arith.addf %888, %901 : vector<14x128xf32>
    %903 = arith.mulf %896, %813 : vector<14x128xf32>
    %904 = arith.addf %890, %903 : vector<14x128xf32>
    %905 = arith.mulf %896, %816 : vector<14x128xf32>
    %906 = arith.addf %892, %905 : vector<14x128xf32>
    %c8_292 = arith.constant 8 : index
    %c4_293 = arith.constant 4 : index
    %c0_294 = arith.constant 0 : index
    %907 = vector.load %arg7[%c8_292, %c4_293, %c0_294] : memref<14x18x128xf32, #tpu.memory_space<vmem>>, vector<1x14x128xf32>
    %908 = vector.shape_cast %907 : vector<1x14x128xf32> to vector<14x128xf32>
    %909 = arith.mulf %908, %804 : vector<14x128xf32>
    %910 = arith.addf %793, %909 : vector<14x128xf32>
    %911 = arith.mulf %908, %807 : vector<14x128xf32>
    %912 = arith.addf %898, %911 : vector<14x128xf32>
    %913 = arith.mulf %908, %810 : vector<14x128xf32>
    %914 = arith.addf %900, %913 : vector<14x128xf32>
    %915 = arith.mulf %908, %813 : vector<14x128xf32>
    %916 = arith.addf %902, %915 : vector<14x128xf32>
    %917 = arith.mulf %908, %816 : vector<14x128xf32>
    %918 = arith.addf %904, %917 : vector<14x128xf32>
    %c9_295 = arith.constant 9 : index
    %c4_296 = arith.constant 4 : index
    %c0_297 = arith.constant 0 : index
    %919 = vector.load %arg7[%c9_295, %c4_296, %c0_297] : memref<14x18x128xf32, #tpu.memory_space<vmem>>, vector<1x14x128xf32>
    %920 = vector.shape_cast %919 : vector<1x14x128xf32> to vector<14x128xf32>
    %921 = arith.mulf %920, %804 : vector<14x128xf32>
    %922 = arith.addf %801, %921 : vector<14x128xf32>
    %923 = arith.mulf %920, %807 : vector<14x128xf32>
    %924 = arith.addf %910, %923 : vector<14x128xf32>
    %925 = arith.mulf %920, %810 : vector<14x128xf32>
    %926 = arith.addf %912, %925 : vector<14x128xf32>
    %927 = arith.mulf %920, %813 : vector<14x128xf32>
    %928 = arith.addf %914, %927 : vector<14x128xf32>
    %929 = arith.mulf %920, %816 : vector<14x128xf32>
    %930 = arith.addf %916, %929 : vector<14x128xf32>
    %c10_298 = arith.constant 10 : index
    %c4_299 = arith.constant 4 : index
    %c0_300 = arith.constant 0 : index
    %931 = vector.load %arg7[%c10_298, %c4_299, %c0_300] : memref<14x18x128xf32, #tpu.memory_space<vmem>>, vector<1x14x128xf32>
    %932 = vector.shape_cast %931 : vector<1x14x128xf32> to vector<14x128xf32>
    %933 = arith.mulf %932, %804 : vector<14x128xf32>
    %934 = arith.addf %799, %933 : vector<14x128xf32>
    %935 = arith.mulf %932, %807 : vector<14x128xf32>
    %936 = arith.addf %922, %935 : vector<14x128xf32>
    %937 = arith.mulf %932, %810 : vector<14x128xf32>
    %938 = arith.addf %924, %937 : vector<14x128xf32>
    %939 = arith.mulf %932, %813 : vector<14x128xf32>
    %940 = arith.addf %926, %939 : vector<14x128xf32>
    %941 = arith.mulf %932, %816 : vector<14x128xf32>
    %942 = arith.addf %928, %941 : vector<14x128xf32>
    %c11_301 = arith.constant 11 : index
    %c4_302 = arith.constant 4 : index
    %c0_303 = arith.constant 0 : index
    %943 = vector.load %arg7[%c11_301, %c4_302, %c0_303] : memref<14x18x128xf32, #tpu.memory_space<vmem>>, vector<1x14x128xf32>
    %944 = vector.shape_cast %943 : vector<1x14x128xf32> to vector<14x128xf32>
    %945 = arith.mulf %944, %804 : vector<14x128xf32>
    %946 = arith.addf %797, %945 : vector<14x128xf32>
    %947 = arith.mulf %944, %807 : vector<14x128xf32>
    %948 = arith.addf %934, %947 : vector<14x128xf32>
    %949 = arith.mulf %944, %810 : vector<14x128xf32>
    %950 = arith.addf %936, %949 : vector<14x128xf32>
    %951 = arith.mulf %944, %813 : vector<14x128xf32>
    %952 = arith.addf %938, %951 : vector<14x128xf32>
    %953 = arith.mulf %944, %816 : vector<14x128xf32>
    %954 = arith.addf %940, %953 : vector<14x128xf32>
    %c12_304 = arith.constant 12 : index
    %c4_305 = arith.constant 4 : index
    %c0_306 = arith.constant 0 : index
    %955 = vector.load %arg7[%c12_304, %c4_305, %c0_306] : memref<14x18x128xf32, #tpu.memory_space<vmem>>, vector<1x14x128xf32>
    %956 = vector.shape_cast %955 : vector<1x14x128xf32> to vector<14x128xf32>
    %957 = arith.mulf %956, %807 : vector<14x128xf32>
    %958 = arith.addf %946, %957 : vector<14x128xf32>
    %959 = arith.mulf %956, %810 : vector<14x128xf32>
    %960 = arith.addf %948, %959 : vector<14x128xf32>
    %961 = arith.mulf %956, %813 : vector<14x128xf32>
    %962 = arith.addf %950, %961 : vector<14x128xf32>
    %963 = arith.mulf %956, %816 : vector<14x128xf32>
    %964 = arith.addf %952, %963 : vector<14x128xf32>
    %c13_307 = arith.constant 13 : index
    %c4_308 = arith.constant 4 : index
    %c0_309 = arith.constant 0 : index
    %965 = vector.load %arg7[%c13_307, %c4_308, %c0_309] : memref<14x18x128xf32, #tpu.memory_space<vmem>>, vector<1x14x128xf32>
    %966 = vector.shape_cast %965 : vector<1x14x128xf32> to vector<14x128xf32>
    %967 = arith.mulf %966, %810 : vector<14x128xf32>
    %968 = arith.addf %958, %967 : vector<14x128xf32>
    %969 = arith.mulf %966, %813 : vector<14x128xf32>
    %970 = arith.addf %960, %969 : vector<14x128xf32>
    %971 = arith.mulf %966, %816 : vector<14x128xf32>
    %972 = arith.addf %962, %971 : vector<14x128xf32>
    %c0_310 = arith.constant 0 : index
    %c0_311 = arith.constant 0 : index
    %973 = vector.load %arg8[%c0_310, %c0_311] : memref<256x128xf32, #tpu.memory_space<vmem>>, vector<14x128xf32>
    tpu.vector_store %arg8[%c0_310, %c0_311], %846 {strides = array<i32>} : memref<256x128xf32, #tpu.memory_space<vmem>>, vector<14x128xf32>,
    %c14_312 = arith.constant 14 : index
    %c0_313 = arith.constant 0 : index
    %974 = vector.load %arg8[%c14_312, %c0_313] : memref<256x128xf32, #tpu.memory_space<vmem>>, vector<14x128xf32>
    tpu.vector_store %arg8[%c14_312, %c0_313], %858 {strides = array<i32>} : memref<256x128xf32, #tpu.memory_space<vmem>>, vector<14x128xf32>,
    %c28 = arith.constant 28 : index
    %c0_314 = arith.constant 0 : index
    %975 = vector.load %arg8[%c28, %c0_314] : memref<256x128xf32, #tpu.memory_space<vmem>>, vector<14x128xf32>
    tpu.vector_store %arg8[%c28, %c0_314], %870 {strides = array<i32>} : memref<256x128xf32, #tpu.memory_space<vmem>>, vector<14x128xf32>,
    %c42 = arith.constant 42 : index
    %c0_315 = arith.constant 0 : index
    %976 = vector.load %arg8[%c42, %c0_315] : memref<256x128xf32, #tpu.memory_space<vmem>>, vector<14x128xf32>
    tpu.vector_store %arg8[%c42, %c0_315], %882 {strides = array<i32>} : memref<256x128xf32, #tpu.memory_space<vmem>>, vector<14x128xf32>,
    %c56 = arith.constant 56 : index
    %c0_316 = arith.constant 0 : index
    %977 = vector.load %arg8[%c56, %c0_316] : memref<256x128xf32, #tpu.memory_space<vmem>>, vector<14x128xf32>
    tpu.vector_store %arg8[%c56, %c0_316], %894 {strides = array<i32>} : memref<256x128xf32, #tpu.memory_space<vmem>>, vector<14x128xf32>,
    %c70 = arith.constant 70 : index
    %c0_317 = arith.constant 0 : index
    %978 = vector.load %arg8[%c70, %c0_317] : memref<256x128xf32, #tpu.memory_space<vmem>>, vector<14x128xf32>
    tpu.vector_store %arg8[%c70, %c0_317], %906 {strides = array<i32>} : memref<256x128xf32, #tpu.memory_space<vmem>>, vector<14x128xf32>,
    %c84 = arith.constant 84 : index
    %c0_318 = arith.constant 0 : index
    %979 = vector.load %arg8[%c84, %c0_318] : memref<256x128xf32, #tpu.memory_space<vmem>>, vector<14x128xf32>
    tpu.vector_store %arg8[%c84, %c0_318], %918 {strides = array<i32>} : memref<256x128xf32, #tpu.memory_space<vmem>>, vector<14x128xf32>,
    %c98 = arith.constant 98 : index
    %c0_319 = arith.constant 0 : index
    %980 = vector.load %arg8[%c98, %c0_319] : memref<256x128xf32, #tpu.memory_space<vmem>>, vector<14x128xf32>
    tpu.vector_store %arg8[%c98, %c0_319], %930 {strides = array<i32>} : memref<256x128xf32, #tpu.memory_space<vmem>>, vector<14x128xf32>,
    %c112 = arith.constant 112 : index
    %c0_320 = arith.constant 0 : index
    %981 = vector.load %arg8[%c112, %c0_320] : memref<256x128xf32, #tpu.memory_space<vmem>>, vector<14x128xf32>
    tpu.vector_store %arg8[%c112, %c0_320], %942 {strides = array<i32>} : memref<256x128xf32, #tpu.memory_space<vmem>>, vector<14x128xf32>,
    %c126 = arith.constant 126 : index
    %c0_321 = arith.constant 0 : index
    %982 = vector.load %arg8[%c126, %c0_321] : memref<256x128xf32, #tpu.memory_space<vmem>>, vector<14x128xf32>
    tpu.vector_store %arg8[%c126, %c0_321], %954 {strides = array<i32>} : memref<256x128xf32, #tpu.memory_space<vmem>>, vector<14x128xf32>,
    %c140 = arith.constant 140 : index
    %c0_322 = arith.constant 0 : index
    %983 = vector.load %arg8[%c140, %c0_322] : memref<256x128xf32, #tpu.memory_space<vmem>>, vector<14x128xf32>
    tpu.vector_store %arg8[%c140, %c0_322], %964 {strides = array<i32>} : memref<256x128xf32, #tpu.memory_space<vmem>>, vector<14x128xf32>,
    %c154 = arith.constant 154 : index
    %c0_323 = arith.constant 0 : index
    %984 = vector.load %arg8[%c154, %c0_323] : memref<256x128xf32, #tpu.memory_space<vmem>>, vector<14x128xf32>
    tpu.vector_store %arg8[%c154, %c0_323], %972 {strides = array<i32>} : memref<256x128xf32, #tpu.memory_space<vmem>>, vector<14x128xf32>,
    %c168 = arith.constant 168 : index
    %c0_324 = arith.constant 0 : index
    %985 = vector.load %arg8[%c168, %c0_324] : memref<256x128xf32, #tpu.memory_space<vmem>>, vector<14x128xf32>
    tpu.vector_store %arg8[%c168, %c0_324], %970 {strides = array<i32>} : memref<256x128xf32, #tpu.memory_space<vmem>>, vector<14x128xf32>,
    %c182 = arith.constant 182 : index
    %c0_325 = arith.constant 0 : index
    %986 = vector.load %arg8[%c182, %c0_325] : memref<256x128xf32, #tpu.memory_space<vmem>>, vector<14x128xf32>
    tpu.vector_store %arg8[%c182, %c0_325], %968 {strides = array<i32>} : memref<256x128xf32, #tpu.memory_space<vmem>>, vector<14x128xf32>,
    %c0_326 = arith.constant 0 : index
    %c0_327 = arith.constant 0 : index
    %987 = vector.load %arg8[%c0_326, %c0_327] : memref<256x128xf32, #tpu.memory_space<vmem>>, vector<256x128xf32>
    %988 = tpu.transpose %987, [1, 0] : vector<256x128xf32> -> vector<128x256xf32>
    %989 = vector.extract_strided_slice %988 {offsets = [0, 0], sizes = [128, 196], strides = [1, 1]} : vector<128x256xf32> to vector<128x196xf32>
    %c0_328 = arith.constant 0 : index
    %c0_329 = arith.constant 0 : index
    %990 = vector.load %arg5[%c0_328, %c0_329] : memref<128x196xf32, #tpu.memory_space<vmem>>, vector<128x196xf32>
    tpu.vector_store %arg5[%c0_328, %c0_329], %989 {strides = array<i32>} : memref<128x196xf32, #tpu.memory_space<vmem>>, vector<128x196xf32>,
    return
  }
  func.func @transform_0(%arg0: i32) -> (i32, i32) {
    %c0_i32 = arith.constant 0 : i32
    %c0_i32_0 = arith.constant 0 : i32
    return %arg0, %c0_i32 : i32, i32
  }
  func.func @transform_1(%arg0: i32) -> (i32, i32) {
    %c0_i32 = arith.constant 0 : i32
    %c0_i32_0 = arith.constant 0 : i32
    return %c0_i32, %arg0 : i32, i32
  }
  func.func @transform_2(%arg0: i32) -> (i32, i32) {
    %c0_i32 = arith.constant 0 : i32
    %c0_i32_0 = arith.constant 0 : i32
    return %c0_i32, %arg0 : i32, i32
  }
  func.func @transform_3(%arg0: i32) -> (i32, i32) {
    %c0_i32 = arith.constant 0 : i32
    %c0_i32_0 = arith.constant 0 : i32
    return %c0_i32, %arg0 : i32, i32
  }
  func.func @transform_4(%arg0: i32) -> (i32, i32) {
    %c0_i32 = arith.constant 0 : i32
    %c0_i32_0 = arith.constant 0 : i32
    return %arg0, %c0_i32 : i32, i32
  }
}

</mosaic_0001>

<llo_original>
// kernel: bn_relu_dwconv.1
$region0: #{bn_relu_dwconv.1}
  #allocation0 [shape = 'u32[]', space=smem, size = 0x4, offset = 0x4, fixed_abs, tag = 'smem constant byte address 0x4 - core index']
  #allocation1 [shape = 'u32[144,128]{1,0:T(1,128)}', space=vmem, size = 0x12000, scoped, tag = 'internal scratch']
  #allocation2 [shape = 'f32[128,256]{1,0:T(8,128)}', space=vmem, size = 0x20000, scoped, tag = 'scratch operand']
  #allocation3 [shape = 'f32[14,18,128]{2,1,0:T(8,128)}', space=vmem, size = 0x2a000, scoped, tag = 'scratch operand']
  #allocation4 [shape = 'f32[256,128]{1,0:T(8,128)}', space=vmem, size = 0x20000, scoped, tag = 'scratch operand']
  %s0 = inlined_call_operand.vmem [shape: f32[384,196], index: 0, kind: input, shape index: {}]
  %s1 = inlined_call_operand.vmem [shape: f32[25,384], index: 1, kind: input, shape index: {}]
  %s2 = inlined_call_operand.vmem [shape: f32[1,384], index: 2, kind: input, shape index: {}]
  %s3 = inlined_call_operand.vmem [shape: f32[1,384], index: 3, kind: input, shape index: {}]
  %s4 = inlined_call_operand.vmem [shape: f32[384,196], index: 4, kind: output, shape index: {}]
  %s5 = sld [smem:[#allocation0]]
  $region87: #{bn_relu_dwconv.1} parent=0
    _
  %s7 = ssub.s32 1, %s5
  %s8 = scalar_select 0, %s7, %s5
  $region1: #{bn_relu_dwconv.1} parent=0
    #allocation5 [shape = 'u8[32768]{0}', space=vmem, size = 0x8000, scoped, tag = 'input window, operand 1']
    loop: start=0, step=1, limit=5
    $region2: #{bn_relu_dwconv.1} parent=1 // loop_pre_header
      _
    $region3: #{bn_relu_dwconv.1} parent=1 // loop_header
      %s10 = sphi 0, %s14
      %p11 = scmp.ge.s32.totalorder %s10, 5
      %s20 = sphi 0, %s22
      %s23 = sphi 0, %s20
      %s24 = sphi 0, %s23
      %s40 = sphi 0, %s24
      %s46 = sphi 0, %s48
      %s49 = sphi 0, %s46
      %s50 = sphi 0, %s49
      %s66 = sphi 0, %s50
      %s72 = sphi 0, %s74
      %s75 = sphi 0, %s72
      %s76 = sphi 0, %s75
      %s92 = sphi 0, %s76
      %s98 = sphi 0, %s100
      %s101 = sphi 0, %s98
      %s102 = sphi 0, %s101
      %s118 = sphi 0, %s102
      %s124 = sphi 0, %s126
      %s127 = sphi 0, %s124
      %s128 = sphi 0, %s127
      %s144 = sphi 0, %s128
    $region4: #{bn_relu_dwconv.1} parent=1 // loop_header_branch
      %13 = sbr.rel (%p11) target = $region8
    $region5: #{bn_relu_dwconv.1} parent=1 // loop_body
      %s15 = ssub.s32 %s10, 1
      %s16 = ssub.s32 %s10, 2
      %s17 = sadd.s32 %s10, 1
      %s18 = ssub.s32 %s10, %s17
      %p19 = scmp.eq.s32.totalorder %s18, 0
      %s21 = sadd.s32 %s20, 1
      %s22 = scalar_select %p19, %s20, %s21
      %p25 = pneg %p19
      %p26 = scmp.eq.s32.totalorder %s10, 2
      %p27 = por %p25, %p26
      %p28 = scmp.ne.s32.totalorder %s20, %s23
      %p29 = scmp.eq.s32.totalorder %s10, 0
      %p30 = por %p28, %p29
      %p31 = scmp.ne.s32.totalorder %s20, %s23
      %p32 = scmp.eq.s32.totalorder %s15, 2
      %p33 = por %p31, %p32
      %p34 = scmp.ne.s32.totalorder %s23, %s24
      %p35 = scmp.eq.s32.totalorder %s15, 0
      %p36 = por %p34, %p35
      %p37 = scmp.ne.s32.totalorder %s23, %s24
      %p38 = scmp.eq.s32.totalorder %s16, 2
      %p39 = por %p37, %p38
      %p41 = scmp.ne.s32.totalorder %s24, %s40
      %p42 = scmp.eq.s32.totalorder %s16, 0
      %p43 = por %p41, %p42
      %s44 = ssub.s32 %s10, %s17
      %p45 = scmp.eq.s32.totalorder %s44, 0
      %s47 = sadd.s32 %s46, 1
      %s48 = scalar_select %p45, %s46, %s47
      %p51 = pneg %p45
      %p52 = scmp.eq.s32.totalorder %s10, 2
      %p53 = por %p51, %p52
      %p54 = scmp.ne.s32.totalorder %s46, %s49
      %p55 = scmp.eq.s32.totalorder %s10, 0
      %p56 = por %p54, %p55
      %p57 = scmp.ne.s32.totalorder %s46, %s49
      %p58 = scmp.eq.s32.totalorder %s15, 2
      %p59 = por %p57, %p58
      %p60 = scmp.ne.s32.totalorder %s49, %s50
      %p61 = scmp.eq.s32.totalorder %s15, 0
      %p62 = por %p60, %p61
      %p63 = scmp.ne.s32.totalorder %s49, %s50
      %p64 = scmp.eq.s32.totalorder %s16, 2
      %p65 = por %p63, %p64
      %p67 = scmp.ne.s32.totalorder %s50, %s66
      %p68 = scmp.eq.s32.totalorder %s16, 0
      %p69 = por %p67, %p68
      %s70 = ssub.s32 %s10, %s17
      %p71 = scmp.eq.s32.totalorder %s70, 0
      %s73 = sadd.s32 %s72, 1
      %s74 = scalar_select %p71, %s72, %s73
      %p77 = pneg %p71
      %p78 = scmp.eq.s32.totalorder %s10, 2
      %p79 = por %p77, %p78
      %p80 = scmp.ne.s32.totalorder %s72, %s75
      %p81 = scmp.eq.s32.totalorder %s10, 0
      %p82 = por %p80, %p81
      %p83 = scmp.ne.s32.totalorder %s72, %s75
      %p84 = scmp.eq.s32.totalorder %s15, 2
      %p85 = por %p83, %p84
      %p86 = scmp.ne.s32.totalorder %s75, %s76
      %p87 = scmp.eq.s32.totalorder %s15, 0
      %p88 = por %p86, %p87
      %p89 = scmp.ne.s32.totalorder %s75, %s76
      %p90 = scmp.eq.s32.totalorder %s16, 2
      %p91 = por %p89, %p90
      %p93 = scmp.ne.s32.totalorder %s76, %s92
      %p94 = scmp.eq.s32.totalorder %s16, 0
      %p95 = por %p93, %p94
      %s96 = ssub.s32 %s10, %s17
      %p97 = scmp.eq.s32.totalorder %s96, 0
      %s99 = sadd.s32 %s98, 1
      %s100 = scalar_select %p97, %s98, %s99
      %p103 = pneg %p97
      %p104 = scmp.eq.s32.totalorder %s10, 2
      %p105 = por %p103, %p104
      %p106 = scmp.ne.s32.totalorder %s98, %s101
      %p107 = scmp.eq.s32.totalorder %s10, 0
      %p108 = por %p106, %p107
      %p109 = scmp.ne.s32.totalorder %s98, %s101
      %p110 = scmp.eq.s32.totalorder %s15, 2
      %p111 = por %p109, %p110
      %p112 = scmp.ne.s32.totalorder %s101, %s102
      %p113 = scmp.eq.s32.totalorder %s15, 0
      %p114 = por %p112, %p113
      %p115 = scmp.ne.s32.totalorder %s101, %s102
      %p116 = scmp.eq.s32.totalorder %s16, 2
      %p117 = por %p115, %p116
      %p119 = scmp.ne.s32.totalorder %s102, %s118
      %p120 = scmp.eq.s32.totalorder %s16, 0
      %p121 = por %p119, %p120
      %s122 = ssub.s32 %s10, %s17
      %p123 = scmp.eq.s32.totalorder %s122, 0
      %s125 = sadd.s32 %s124, 1
      %s126 = scalar_select %p123, %s124, %s125
      %p129 = pneg %p123
      %p130 = scmp.eq.s32.totalorder %s10, 2
      %p131 = por %p129, %p130
      %p132 = scmp.ne.s32.totalorder %s124, %s127
      %p133 = scmp.eq.s32.totalorder %s10, 0
      %p134 = por %p132, %p133
      %p135 = scmp.ne.s32.totalorder %s124, %s127
      %p136 = scmp.eq.s32.totalorder %s15, 2
      %p137 = por %p135, %p136
      %p138 = scmp.ne.s32.totalorder %s127, %s128
      %p139 = scmp.eq.s32.totalorder %s15, 0
      %p140 = por %p138, %p139
      %p141 = scmp.ne.s32.totalorder %s127, %s128
      %p142 = scmp.eq.s32.totalorder %s16, 2
      %p143 = por %p141, %p142
      %p145 = scmp.ne.s32.totalorder %s128, %s144
      %p146 = scmp.eq.s32.totalorder %s16, 0
      %p147 = por %p145, %p146
      %p148 = scmp.le.s32.totalorder 1, %s10
      %p149 = scmp.lt.s32.totalorder %s10, 4
      %p150 = pnand %p148, %p149
      %p151 = pneg %p150
      // Predicated region
      $region9: #{bn_relu_dwconv.1} parent=5 // pred_check
        _
      $region10: #{bn_relu_dwconv.1} parent=5 // pred_check_branch
        %153 = sbr.rel (%p150) target = $region12
      $region11: #{bn_relu_dwconv.1} parent=5 // pred_region
        %s154 = ssub.s32 %s10, 1
      $region12: #{bn_relu_dwconv.1} parent=5 // pred_fallthru
        _
      %p155 = scmp.lt.s32.totalorder %s10, 3
      // Predicated region
      $region13: #{bn_relu_dwconv.1} parent=5 // pred_check
        %p156 = pneg %p155
      $region14: #{bn_relu_dwconv.1} parent=5 // pred_check_branch
        %158 = sbr.rel (%p156) target = $region16
      $region15: #{bn_relu_dwconv.1} parent=5 // pred_region
        // Predicated region
        $region17: #{bn_relu_dwconv.1} parent=15 // pred_check
          %p159 = pneg %p30
        $region18: #{bn_relu_dwconv.1} parent=15 // pred_check_branch
          %161 = sbr.rel (%p159) target = $region20
        $region19: #{bn_relu_dwconv.1} parent=15 // pred_region
          %s162 = smul.u32 16, %s10
          %p163 = scmp.lt.s32.totalorder %s162, 47
          %s164 = scalar_select %p163, %s162, 47
          %s165 = smul.addr %s164, 2
          %s166 = smul.addr %s165, 8
          %s167 = scalar_lea.vmem %s0, %s166
          %s168 = smul.u32 16, %s10
        $region20: #{bn_relu_dwconv.1} parent=15 // pred_fallthru
          _
        // Predicated region
        $region21: #{bn_relu_dwconv.1} parent=15 // pred_check
          %p169 = pneg %p56
        $region22: #{bn_relu_dwconv.1} parent=15 // pred_check_branch
          %171 = sbr.rel (%p169) target = $region24
        $region23: #{bn_relu_dwconv.1} parent=15 // pred_region
          %s172 = sand.u32 %s46, 1
          %s173 = sand.u32 %s46, 1
          %s174 = smul.addr %s173, 32
          %s175 = scalar_lea.vmem [#allocation5], %s174
          %s176 = smul.addr %s10, 8
          %s177 = scalar_lea.vmem %s1, %s176
          // Predicated region
          $region25: #{bn_relu_dwconv.1} parent=23 // pred_check
            _
          $region26: #{bn_relu_dwconv.1} parent=23 // pred_check_branch
            %179 = sbr.rel (0) target = $region28
          $region27: #{bn_relu_dwconv.1} parent=23 // pred_region
            // Predicated region
            $region29: #{bn_relu_dwconv.1} parent=27 // pred_check
              _
            $region30: #{bn_relu_dwconv.1} parent=27 // pred_check_branch
              %181 = sbr.rel (0) target = $region32
            $region31: #{bn_relu_dwconv.1} parent=27 // pred_region
              // Predicated region
              $region44: #{bn_relu_dwconv.1} parent=31 // pred_check
                _
              $region45: #{bn_relu_dwconv.1} parent=31 // pred_check_branch
                %202 = sbr.rel (0) target = $region47
              $region46: #{bn_relu_dwconv.1} parent=31 // pred_region
                loop: start=0, step=1, limit=1
                $region48: #{bn_relu_dwconv.1} parent=46 // loop_pre_header
                  _
                $region49: #{bn_relu_dwconv.1} parent=46 // loop_header
                  %s204 = sphi 0, %s208
                  %p205 = scmp.ge.s32.totalorder %s204, 1
                  %s209 = sphi %s177, %s177
                  %s210 = sphi %s175, %s175
                $region50: #{bn_relu_dwconv.1} parent=46 // loop_header_branch
                  %207 = sbr.rel (%p205) target = $region54
                $region51: #{bn_relu_dwconv.1} parent=46 // loop_body
                  %v211 = vld [vmem:[%s209] sm:$0xff]
                  %212 = vst [vmem:[%s210] sm:$0xff] %v211
                  %v213 = vld [vmem:[%s209 + $0x18] sm:$0xff]
                  %214 = vst [vmem:[%s210 + $0x8] sm:$0xff] %v213
                  %v215 = vld [vmem:[%s209 + $0x30] sm:$0xff]
                  %216 = vst [vmem:[%s210 + $0x10] sm:$0xff] %v215
                  %v217 = vld [vmem:[%s209 + $0x48] sm:$0xff]
                  %218 = vst [vmem:[%s210 + $0x18] sm:$0xff] %v217
                $region52: #{bn_relu_dwconv.1} parent=46 // loop_footer
                  %s208 = sadd.s32 1, %s204
                $region53: #{bn_relu_dwconv.1} parent=46 // loop_footer_branch
                  %203 = sbr.rel target = $region49
                $region54: #{bn_relu_dwconv.1} parent=46 // loop_exit
                  _
              $region47: #{bn_relu_dwconv.1} parent=31 // pred_fallthru
                _
              // Predicated region
              $region55: #{bn_relu_dwconv.1} parent=31 // pred_check
                _
              $region56: #{bn_relu_dwconv.1} parent=31 // pred_check_branch
                %220 = sbr.rel target = $region58
              $region57: #{bn_relu_dwconv.1} parent=31 // pred_region
                _
              $region58: #{bn_relu_dwconv.1} parent=31 // pred_fallthru
                _
            $region32: #{bn_relu_dwconv.1} parent=27 // pred_fallthru
              _
            // Predicated region
            $region33: #{bn_relu_dwconv.1} parent=27 // pred_check
              _
            $region34: #{bn_relu_dwconv.1} parent=27 // pred_check_branch
              %183 = sbr.rel target = $region36
            $region35: #{bn_relu_dwconv.1} parent=27 // pred_region
              loop: start=0, step=1, limit=1
              $region37: #{bn_relu_dwconv.1} parent=35 // loop_pre_header
                _
              $region38: #{bn_relu_dwconv.1} parent=35 // loop_header
                %s186 = sphi 0, %s190
                %p187 = scmp.ge.s32.totalorder %s186, 1
                %s191 = sphi %s177, %s177
                %s192 = sphi %s175, %s175
              $region39: #{bn_relu_dwconv.1} parent=35 // loop_header_branch
                %189 = sbr.rel (%p187) target = $region43
              $region40: #{bn_relu_dwconv.1} parent=35 // loop_body
                %v193 = vld [vmem:[%s191] sm:$0xff]
                %194 = vst [vmem:[%s192] sm:$0xff] %v193
                %v195 = vld [vmem:[%s191 + $0x18] sm:$0xff]
                %196 = vst [vmem:[%s192 + $0x8] sm:$0xff] %v195
                %v197 = vld [vmem:[%s191 + $0x30] sm:$0xff]
                %198 = vst [vmem:[%s192 + $0x10] sm:$0xff] %v197
                %v199 = vld [vmem:[%s191 + $0x48] sm:$0xff]
                %200 = vst [vmem:[%s192 + $0x18] sm:$0xff] %v199
              $region41: #{bn_relu_dwconv.1} parent=35 // loop_footer
                %s190 = sadd.s32 1, %s186
              $region42: #{bn_relu_dwconv.1} parent=35 // loop_footer_branch
                %185 = sbr.rel target = $region38
              $region43: #{bn_relu_dwconv.1} parent=35 // loop_exit
                _
            $region36: #{bn_relu_dwconv.1} parent=27 // pred_fallthru
              _
          $region28: #{bn_relu_dwconv.1} parent=23 // pred_fallthru
            _
          %221 = vnop
        $region24: #{bn_relu_dwconv.1} parent=15 // pred_fallthru
          _
        // Predicated region
        $region59: #{bn_relu_dwconv.1} parent=15 // pred_check
          %p222 = pneg %p82
        $region60: #{bn_relu_dwconv.1} parent=15 // pred_check_branch
          %224 = sbr.rel (%p222) target = $region62
        $region61: #{bn_relu_dwconv.1} parent=15 // pred_region
          %p225 = scmp.lt.s32.totalorder %s10, 2
          %s226 = scalar_select %p225, %s10, 2
          %s227 = scalar_lea.vmem %s2, %s226
        $region62: #{bn_relu_dwconv.1} parent=15 // pred_fallthru
          _
        // Predicated region
        $region63: #{bn_relu_dwconv.1} parent=15 // pred_check
          %p228 = pneg %p108
        $region64: #{bn_relu_dwconv.1} parent=15 // pred_check_branch
          %230 = sbr.rel (%p228) target = $region66
        $region65: #{bn_relu_dwconv.1} parent=15 // pred_region
          %p231 = scmp.lt.s32.totalorder %s10, 2
          %s232 = scalar_select %p231, %s10, 2
          %s233 = scalar_lea.vmem %s3, %s232
        $region66: #{bn_relu_dwconv.1} parent=15 // pred_fallthru
          _
      $region16: #{bn_relu_dwconv.1} parent=5 // pred_fallthru
        _
      %p234 = scmp.le.s32.totalorder 1, %s10
      %p235 = scmp.lt.s32.totalorder %s10, 4
      %p236 = pnand %p234, %p235
      %p237 = pneg %p236
      // Predicated region
      $region67: #{bn_relu_dwconv.1} parent=5 // pred_check
        _
      $region68: #{bn_relu_dwconv.1} parent=5 // pred_check_branch
        %239 = sbr.rel (%p236) target = $region70
      $region69: #{bn_relu_dwconv.1} parent=5 // pred_region
        %s240 = ssub.s32 %s10, 1
        %s241 = sand.u32 %s49, 1
        %s242 = sand.u32 %s49, 1
        %s243 = smul.addr %s242, 32
        %s244 = scalar_lea.vmem [#allocation5], %s243
        // Predicated region
        $region71: #{bn_relu_dwconv.1} parent=69 // pred_check
          %p245 = pneg %p62
        $region72: #{bn_relu_dwconv.1} parent=69 // pred_check_branch
          %247 = sbr.rel (%p245) target = $region74
        $region73: #{bn_relu_dwconv.1} parent=69 // pred_region
          _
        $region74: #{bn_relu_dwconv.1} parent=69 // pred_fallthru
          _
        %s248 = smul.u32 16, %s15
        %p249 = scmp.lt.s32.totalorder %s248, 47
        %s250 = scalar_select %p249, %s248, 47
        %s251 = smul.addr %s250, 2
        %s252 = smul.addr %s251, 8
        %s253 = scalar_lea.vmem %s0, %s252
        %p254 = pneg %p36
        %p255 = pneg %p33
        %s256 = sand.u32 %s49, 1
        %s257 = sand.u32 %s49, 1
        %s258 = smul.addr %s257, 32
        %s259 = scalar_lea.vmem [#allocation5], %s258
        %p260 = pneg %p62
        %p261 = pneg %p59
        %p262 = scmp.lt.s32.totalorder %s15, 2
        %s263 = scalar_select %p262, %s15, 2
        %s264 = scalar_lea.vmem %s2, %s263
        %p265 = pneg %p88
        %p266 = pneg %p85
        %p267 = scmp.lt.s32.totalorder %s15, 2
        %s268 = scalar_select %p267, %s15, 2
        %s269 = scalar_lea.vmem %s3, %s268
        %p270 = pneg %p114
        %p271 = pneg %p111
        %p272 = pneg %p140
        %p273 = pneg %p137
        %s274 = smul.u32 16, %s15
        %p275 = scmp.lt.s32.totalorder %s274, 47
        %s276 = scalar_select %p275, %s274, 47
        %s277 = smul.addr %s276, 2
        %s278 = smul.addr %s277, 8
        %s279 = scalar_lea.vmem %s4, %s278
        %s280 = smul.u32 16, %s15
        %p281 = scmp.lt.s32.totalorder %s280, 47
        %s282 = scalar_select %p281, %s280, 47
        %s283 = smul.addr %s282, 2
        %s284 = smul.addr %s283, 8
        %s285 = scalar_lea.vmem %s0, %s284
        %s286 = smul.u32 16, %s15
        %p287 = scmp.lt.s32.totalorder %s15, 2
        %s288 = scalar_select %p287, %s15, 2
        %s289 = scalar_lea.vmem %s2, %s288
        %p290 = scmp.lt.s32.totalorder %s15, 2
        %s291 = scalar_select %p290, %s15, 2
        %s292 = scalar_lea.vmem %s3, %s291
        %s293 = smul.u32 16, %s15
        %p294 = scmp.lt.s32.totalorder %s293, 47
        %s295 = scalar_select %p294, %s293, 47
        %s296 = smul.addr %s295, 2
        %s297 = smul.addr %s296, 8
        %s298 = scalar_lea.vmem %s4, %s297
        %s299 = smul.u32 16, %s15
        %vm300 = vcmask 1048096
        %301 = vst.msk [vmem:[#allocation2 + $0x8] sm:$0xff] %vm300, 0.0
        %302 = vst.msk [vmem:[#allocation2 + $0x18] sm:$0xff] %vm300, 0.0
        %303 = vst.msk [vmem:[#allocation2 + $0x28] sm:$0xff] %vm300, 0.0
        %304 = vst.msk [vmem:[#allocation2 + $0x38] sm:$0xff] %vm300, 0.0
        %305 = vst.msk [vmem:[#allocation2 + $0x48] sm:$0xff] %vm300, 0.0
        %306 = vst.msk [vmem:[#allocation2 + $0x58] sm:$0xff] %vm300, 0.0
        %307 = vst.msk [vmem:[#allocation2 + $0x68] sm:$0xff] %vm300, 0.0
        %308 = vst.msk [vmem:[#allocation2 + $0x78] sm:$0xff] %vm300, 0.0
        %309 = vst.msk [vmem:[#allocation2 + $0x88] sm:$0xff] %vm300, 0.0
        %310 = vst.msk [vmem:[#allocation2 + $0x98] sm:$0xff] %vm300, 0.0
        %311 = vst.msk [vmem:[#allocation2 + $0xa8] sm:$0xff] %vm300, 0.0
        %312 = vst.msk [vmem:[#allocation2 + $0xb8] sm:$0xff] %vm300, 0.0
        %313 = vst.msk [vmem:[#allocation2 + $0xc8] sm:$0xff] %vm300, 0.0
        %314 = vst.msk [vmem:[#allocation2 + $0xd8] sm:$0xff] %vm300, 0.0
        %315 = vst.msk [vmem:[#allocation2 + $0xe8] sm:$0xff] %vm300, 0.0
        %316 = vst.msk [vmem:[#allocation2 + $0xf8] sm:$0xff] %vm300, 0.0
        %v317 = vld [vmem:[%s285] sm:$0xff]
        %v318 = vld [vmem:[%s285 + $0x8] sm:$0xff]
        %v319 = vld [vmem:[%s285 + $0x10] sm:$0xff]
        %v320 = vld [vmem:[%s285 + $0x18] sm:$0xff]
        %v321 = vld [vmem:[%s285 + $0x20] sm:$0xff]
        %v322 = vld [vmem:[%s285 + $0x28] sm:$0xff]
        %v323 = vld [vmem:[%s285 + $0x30] sm:$0xff]
        %v324 = vld [vmem:[%s285 + $0x38] sm:$0xff]
        %v325 = vld [vmem:[%s285 + $0x40] sm:$0xff]
        %v326 = vld [vmem:[%s285 + $0x48] sm:$0xff]
        %v327 = vld [vmem:[%s285 + $0x50] sm:$0xff]
        %v328 = vld [vmem:[%s285 + $0x58] sm:$0xff]
        %v329 = vld [vmem:[%s285 + $0x60] sm:$0xff]
        %v330 = vld [vmem:[%s285 + $0x68] sm:$0xff]
        %v331 = vld [vmem:[%s285 + $0x70] sm:$0xff]
        %v332 = vld [vmem:[%s285 + $0x78] sm:$0xff]
        %v333 = vld [vmem:[%s285 + $0x80] sm:$0xff]
        %v334 = vld [vmem:[%s285 + $0x88] sm:$0xff]
        %v335 = vld [vmem:[%s285 + $0x90] sm:$0xff]
        %v336 = vld [vmem:[%s285 + $0x98] sm:$0xff]
        %v337 = vld [vmem:[%s285 + $0xa0] sm:$0xff]
        %v338 = vld [vmem:[%s285 + $0xa8] sm:$0xff]
        %v339 = vld [vmem:[%s285 + $0xb0] sm:$0xff]
        %v340 = vld [vmem:[%s285 + $0xb8] sm:$0xff]
        %v341 = vld [vmem:[%s285 + $0xc0] sm:$0xff]
        %v342 = vld [vmem:[%s285 + $0xc8] sm:$0xff]
        %v343 = vld [vmem:[%s285 + $0xd0] sm:$0xff]
        %v344 = vld [vmem:[%s285 + $0xd8] sm:$0xff]
        %v345 = vld [vmem:[%s285 + $0xe0] sm:$0xff]
        %v346 = vld [vmem:[%s285 + $0xe8] sm:$0xff]
        %v347 = vld [vmem:[%s285 + $0xf0] sm:$0xff]
        %v348 = vld [vmem:[%s285 + $0xf8] sm:$0xff]
        %349 = vst [vmem:[#allocation2] sm:$0xff] %v317
        %vm350 = vcmask 556032
        %351 = vst.msk [vmem:[#allocation2 + $0x8] sm:$0xff] %vm350, %v318
        %352 = vst [vmem:[#allocation2 + $0x10] sm:$0xff] %v319
        %353 = vst.msk [vmem:[#allocation2 + $0x18] sm:$0xff] %vm350, %v320
        %354 = vst [vmem:[#allocation2 + $0x20] sm:$0xff] %v321
        %355 = vst.msk [vmem:[#allocation2 + $0x28] sm:$0xff] %vm350, %v322
        %356 = vst [vmem:[#allocation2 + $0x30] sm:$0xff] %v323
        %357 = vst.msk [vmem:[#allocation2 + $0x38] sm:$0xff] %vm350, %v324
        %358 = vst [vmem:[#allocation2 + $0x40] sm:$0xff] %v325
        %359 = vst.msk [vmem:[#allocation2 + $0x48] sm:$0xff] %vm350, %v326
        %360 = vst [vmem:[#allocation2 + $0x50] sm:$0xff] %v327
        %361 = vst.msk [vmem:[#allocation2 + $0x58] sm:$0xff] %vm350, %v328
        %362 = vst [vmem:[#allocation2 + $0x60] sm:$0xff] %v329
        %363 = vst.msk [vmem:[#allocation2 + $0x68] sm:$0xff] %vm350, %v330
        %364 = vst [vmem:[#allocation2 + $0x70] sm:$0xff] %v331
        %365 = vst.msk [vmem:[#allocation2 + $0x78] sm:$0xff] %vm350, %v332
        %366 = vst [vmem:[#allocation2 + $0x80] sm:$0xff] %v333
        %367 = vst.msk [vmem:[#allocation2 + $0x88] sm:$0xff] %vm350, %v334
        %368 = vst [vmem:[#allocation2 + $0x90] sm:$0xff] %v335
        %369 = vst.msk [vmem:[#allocation2 + $0x98] sm:$0xff] %vm350, %v336
        %370 = vst [vmem:[#allocation2 + $0xa0] sm:$0xff] %v337
        %371 = vst.msk [vmem:[#allocation2 + $0xa8] sm:$0xff] %vm350, %v338
        %372 = vst [vmem:[#allocation2 + $0xb0] sm:$0xff] %v339
        %373 = vst.msk [vmem:[#allocation2 + $0xb8] sm:$0xff] %vm350, %v340
        %374 = vst [vmem:[#allocation2 + $0xc0] sm:$0xff] %v341
        %375 = vst.msk [vmem:[#allocation2 + $0xc8] sm:$0xff] %vm350, %v342
        %376 = vst [vmem:[#allocation2 + $0xd0] sm:$0xff] %v343
        %377 = vst.msk [vmem:[#allocation2 + $0xd8] sm:$0xff] %vm350, %v344
        %378 = vst [vmem:[#allocation2 + $0xe0] sm:$0xff] %v345
        %379 = vst.msk [vmem:[#allocation2 + $0xe8] sm:$0xff] %vm350, %v346
        %380 = vst [vmem:[#allocation2 + $0xf0] sm:$0xff] %v347
        %381 = vst.msk [vmem:[#allocation2 + $0xf8] sm:$0xff] %vm350, %v348
        %v382 = vld [vmem:[#allocation2] sm:$0xff]
        %v383 = vld [vmem:[#allocation2 + $0x8] sm:$0xff]
        %v384 = vld [vmem:[#allocation2 + $0x10] sm:$0xff]
        %v385 = vld [vmem:[#allocation2 + $0x18] sm:$0xff]
        %v386 = vld [vmem:[#allocation2 + $0x20] sm:$0xff]
        %v387 = vld [vmem:[#allocation2 + $0x28] sm:$0xff]
        %v388 = vld [vmem:[#allocation2 + $0x30] sm:$0xff]
        %v389 = vld [vmem:[#allocation2 + $0x38] sm:$0xff]
        %v390 = vld [vmem:[#allocation2 + $0x40] sm:$0xff]
        %v391 = vld [vmem:[#allocation2 + $0x48] sm:$0xff]
        %v392 = vld [vmem:[#allocation2 + $0x50] sm:$0xff]
        %v393 = vld [vmem:[#allocation2 + $0x58] sm:$0xff]
        %v394 = vld [vmem:[#allocation2 + $0x60] sm:$0xff]
        %v395 = vld [vmem:[#allocation2 + $0x68] sm:$0xff]
        %v396 = vld [vmem:[#allocation2 + $0x70] sm:$0xff]
        %v397 = vld [vmem:[#allocation2 + $0x78] sm:$0xff]
        %v398 = vld [vmem:[#allocation2 + $0x80] sm:$0xff]
        %v399 = vld [vmem:[#allocation2 + $0x88] sm:$0xff]
        %v400 = vld [vmem:[#allocation2 + $0x90] sm:$0xff]
        %v401 = vld [vmem:[#allocation2 + $0x98] sm:$0xff]
        %v402 = vld [vmem:[#allocation2 + $0xa0] sm:$0xff]
        %v403 = vld [vmem:[#allocation2 + $0xa8] sm:$0xff]
        %v404 = vld [vmem:[#allocation2 + $0xb0] sm:$0xff]
        %v405 = vld [vmem:[#allocation2 + $0xb8] sm:$0xff]
        %v406 = vld [vmem:[#allocation2 + $0xc0] sm:$0xff]
        %v407 = vld [vmem:[#allocation2 + $0xc8] sm:$0xff]
        %v408 = vld [vmem:[#allocation2 + $0xd0] sm:$0xff]
        %v409 = vld [vmem:[#allocation2 + $0xd8] sm:$0xff]
        %v410 = vld [vmem:[#allocation2 + $0xe0] sm:$0xff]
        %v411 = vld [vmem:[#allocation2 + $0xe8] sm:$0xff]
        %v412 = vld [vmem:[#allocation2 + $0xf0] sm:$0xff]
        %v413 = vld [vmem:[#allocation2 + $0xf8] sm:$0xff]
        %414 = vxpose.xlu0.b32.start [1/16] %v382, 128
        %415 = vxpose.xlu0.b32.cont [2/16] %v384, 128
        %416 = vxpose.xlu0.b32.cont [3/16] %v386, 128
        %417 = vxpose.xlu0.b32.cont [4/16] %v388, 128
        %418 = vxpose.xlu0.b32.cont [5/16] %v390, 128
        %419 = vxpose.xlu0.b32.cont [6/16] %v392, 128
        %420 = vxpose.xlu0.b32.cont [7/16] %v394, 128
        %421 = vxpose.xlu0.b32.cont [8/16] %v396, 128
        %422 = vxpose.xlu0.b32.cont [9/16] %v398, 128
        %423 = vxpose.xlu0.b32.cont [10/16] %v400, 128
        %424 = vxpose.xlu0.b32.cont [11/16] %v402, 128
        %425 = vxpose.xlu0.b32.cont [12/16] %v404, 128
        %426 = vxpose.xlu0.b32.cont [13/16] %v406, 128
        %427 = vxpose.xlu0.b32.cont [14/16] %v408, 128
        %428 = vxpose.xlu0.b32.cont [15/16] %v410, 128
        %429 = vxpose.xlu0.b32.end [16/16] %v412, 128
        %v430 = vpop.trf.xlu0
        %v431 = vpop.trf.xlu0
        %v432 = vpop.trf.xlu0
        %v433 = vpop.trf.xlu0
        %v434 = vpop.trf.xlu0
        %v435 = vpop.trf.xlu0
        %v436 = vpop.trf.xlu0
        %v437 = vpop.trf.xlu0
        %v438 = vpop.trf.xlu0
        %v439 = vpop.trf.xlu0
        %v440 = vpop.trf.xlu0
        %v441 = vpop.trf.xlu0
        %v442 = vpop.trf.xlu0
        %v443 = vpop.trf.xlu0
        %v444 = vpop.trf.xlu0
        %v445 = vpop.trf.xlu0
        %446 = vxpose.xlu0.b32.start [1/16] %v383, 128
        %447 = vxpose.xlu0.b32.cont [2/16] %v385, 128
        %448 = vxpose.xlu0.b32.cont [3/16] %v387, 128
        %449 = vxpose.xlu0.b32.cont [4/16] %v389, 128
        %450 = vxpose.xlu0.b32.cont [5/16] %v391, 128
        %451 = vxpose.xlu0.b32.cont [6/16] %v393, 128
        %452 = vxpose.xlu0.b32.cont [7/16] %v395, 128
        %453 = vxpose.xlu0.b32.cont [8/16] %v397, 128
        %454 = vxpose.xlu0.b32.cont [9/16] %v399, 128
        %455 = vxpose.xlu0.b32.cont [10/16] %v401, 128
        %456 = vxpose.xlu0.b32.cont [11/16] %v403, 128
        %457 = vxpose.xlu0.b32.cont [12/16] %v405, 128
        %458 = vxpose.xlu0.b32.cont [13/16] %v407, 128
        %459 = vxpose.xlu0.b32.cont [14/16] %v409, 128
        %460 = vxpose.xlu0.b32.cont [15/16] %v411, 128
        %461 = vxpose.xlu0.b32.end [16/16] %v413, 128
        %v462 = vpop.trf.xlu0
        %v463 = vpop.trf.xlu0
        %v464 = vpop.trf.xlu0
        %v465 = vpop.trf.xlu0
        %v466 = vpop.trf.xlu0
        %v467 = vpop.trf.xlu0
        %v468 = vpop.trf.xlu0
        %v469 = vpop.trf.xlu0
        %v470 = vpop.trf.xlu0
        %v471 = vpop.trf.xlu0
        %v472 = vpop.trf.xlu0
        %v473 = vpop.trf.xlu0
        %v474 = vpop.trf.xlu0
        %v475 = vpop.trf.xlu0
        %v476 = vpop.trf.xlu0
        %v477 = vpop.trf.xlu0
        %v478 = vadd.f32 %v430, %v431
        %v479 = vadd.f32 %v478, %v432
        %v480 = vadd.f32 %v479, %v433
        %v481 = vadd.f32 %v480, %v434
        %v482 = vadd.f32 %v481, %v435
        %v483 = vadd.f32 %v482, %v436
        %v484 = vadd.f32 %v483, %v437
        %v485 = vadd.f32 %v484, %v438
        %v486 = vadd.f32 %v485, %v439
        %v487 = vadd.f32 %v486, %v440
        %v488 = vadd.f32 %v487, %v441
        %v489 = vadd.f32 %v488, %v442
        %v490 = vadd.f32 %v489, %v443
        %v491 = vadd.f32 %v490, %v444
        %v492 = vadd.f32 %v491, %v445
        %v493 = vadd.f32 %v492, %v462
        %v494 = vadd.f32 %v493, %v463
        %v495 = vadd.f32 %v494, %v464
        %v496 = vadd.f32 %v495, %v465
        %v497 = vadd.f32 %v496, %v466
        %v498 = vadd.f32 %v497, %v467
        %v499 = vadd.f32 %v498, %v468
        %v500 = vadd.f32 %v499, %v469
        %v501 = vadd.f32 %v500, %v470
        %v502 = vadd.f32 %v501, %v471
        %v503 = vadd.f32 %v502, %v472
        %v504 = vadd.f32 %v503, %v473
        %v505 = vadd.f32 %v504, %v474
        %v506 = vadd.f32 %v505, %v475
        %v507 = vadd.f32 %v506, %v476
        %v508 = vadd.f32 %v507, %v477
        %v509 = vrot.slane %v508, 4
        %v510 = vadd.f32 %v508, %v509
        %v511 = vrot.slane %v510, 2
        %v512 = vadd.f32 %v510, %v511
        %v513 = vrot.slane %v512, 1
        %v514 = vadd.f32 %v512, %v513
        %v515 = vmul.f32 %v430, %v430
        %v516 = vmul.f32 %v431, %v431
        %v517 = vmul.f32 %v432, %v432
        %v518 = vmul.f32 %v433, %v433
        %v519 = vmul.f32 %v434, %v434
        %v520 = vmul.f32 %v435, %v435
        %v521 = vmul.f32 %v436, %v436
        %v522 = vmul.f32 %v437, %v437
        %v523 = vmul.f32 %v438, %v438
        %v524 = vmul.f32 %v439, %v439
        %v525 = vmul.f32 %v440, %v440
        %v526 = vmul.f32 %v441, %v441
        %v527 = vmul.f32 %v442, %v442
        %v528 = vmul.f32 %v443, %v443
        %v529 = vmul.f32 %v444, %v444
        %v530 = vmul.f32 %v445, %v445
        %v531 = vmul.f32 %v462, %v462
        %v532 = vmul.f32 %v463, %v463
        %v533 = vmul.f32 %v464, %v464
        %v534 = vmul.f32 %v465, %v465
        %v535 = vmul.f32 %v466, %v466
        %v536 = vmul.f32 %v467, %v467
        %v537 = vmul.f32 %v468, %v468
        %v538 = vmul.f32 %v469, %v469
        %v539 = vmul.f32 %v470, %v470
        %v540 = vmul.f32 %v471, %v471
        %v541 = vmul.f32 %v472, %v472
        %v542 = vmul.f32 %v473, %v473
        %v543 = vmul.f32 %v474, %v474
        %v544 = vmul.f32 %v475, %v475
        %v545 = vmul.f32 %v476, %v476
        %v546 = vmul.f32 %v477, %v477
        %v547 = vadd.f32 %v515, %v516
        %v548 = vadd.f32 %v547, %v517
        %v549 = vadd.f32 %v548, %v518
        %v550 = vadd.f32 %v549, %v519
        %v551 = vadd.f32 %v550, %v520
        %v552 = vadd.f32 %v551, %v521
        %v553 = vadd.f32 %v552, %v522
        %v554 = vadd.f32 %v553, %v523
        %v555 = vadd.f32 %v554, %v524
        %v556 = vadd.f32 %v555, %v525
        %v557 = vadd.f32 %v556, %v526
        %v558 = vadd.f32 %v557, %v527
        %v559 = vadd.f32 %v558, %v528
        %v560 = vadd.f32 %v559, %v529
        %v561 = vadd.f32 %v560, %v530
        %v562 = vadd.f32 %v561, %v531
        %v563 = vadd.f32 %v562, %v532
        %v564 = vadd.f32 %v563, %v533
        %v565 = vadd.f32 %v564, %v534
        %v566 = vadd.f32 %v565, %v535
        %v567 = vadd.f32 %v566, %v536
        %v568 = vadd.f32 %v567, %v537
        %v569 = vadd.f32 %v568, %v538
        %v570 = vadd.f32 %v569, %v539
        %v571 = vadd.f32 %v570, %v540
        %v572 = vadd.f32 %v571, %v541
        %v573 = vadd.f32 %v572, %v542
        %v574 = vadd.f32 %v573, %v543
        %v575 = vadd.f32 %v574, %v544
        %v576 = vadd.f32 %v575, %v545
        %v577 = vadd.f32 %v576, %v546
        %v578 = vrot.slane %v577, 4
        %v579 = vadd.f32 %v577, %v578
        %v580 = vrot.slane %v579, 2
        %v581 = vadd.f32 %v579, %v580
        %v582 = vrot.slane %v581, 1
        %v583 = vadd.f32 %v581, %v582
        %v584 = vmul.f32 %v514, 0.0051020407
        %v585 = vmul.f32 %v583, 0.0051020407
        %v586 = vmul.f32 %v584, %v584
        %v587 = vsub.f32 %v585, %v586
        %v588 = vmax.f32 %v587, 0.0
        %v589 = vld [vmem:[%s289] sm:$0x1]
        %v590 = vadd.f32 %v588, 1e-05
        %v591 = vrsqrt.pop %v590
        %v592 = vmul.f32 %v589, %v591
        %v593 = vld [vmem:[%s292] sm:$0x1]
        %v594 = vmul.f32 %v584, %v592
        %v595 = vsub.f32 %v593, %v594
        %v597 = vlaneseq
        %v598 = vshrl.u32 %v597, 7
        %v599 = vsub.s32 0, %v598
        %v600 = vrot.slane %v592, %v599
        %v602 = vmul.f32 %v430, %v600
        %v603 = vmul.f32 %v431, %v600
        %v604 = vmul.f32 %v432, %v600
        %v605 = vmul.f32 %v433, %v600
        %v606 = vmul.f32 %v434, %v600
        %v607 = vmul.f32 %v435, %v600
        %v608 = vmul.f32 %v436, %v600
        %v609 = vmul.f32 %v437, %v600
        %v610 = vmul.f32 %v438, %v600
        %v611 = vmul.f32 %v439, %v600
        %v612 = vmul.f32 %v440, %v600
        %v613 = vmul.f32 %v441, %v600
        %v614 = vmul.f32 %v442, %v600
        %v615 = vmul.f32 %v443, %v600
        %v616 = vmul.f32 %v444, %v600
        %v617 = vmul.f32 %v445, %v600
        %v618 = vmul.f32 %v462, %v600
        %v619 = vmul.f32 %v463, %v600
        %v620 = vmul.f32 %v464, %v600
        %v621 = vmul.f32 %v465, %v600
        %v622 = vmul.f32 %v466, %v600
        %v623 = vmul.f32 %v467, %v600
        %v624 = vmul.f32 %v468, %v600
        %v625 = vmul.f32 %v469, %v600
        %v626 = vmul.f32 %v470, %v600
        %v628 = vlaneseq
        %v629 = vshrl.u32 %v628, 7
        %v630 = vsub.s32 0, %v629
        %v631 = vrot.slane %v595, %v630
        %v633 = vadd.f32 %v602, %v631
        %v634 = vadd.f32 %v603, %v631
        %v635 = vadd.f32 %v604, %v631
        %v636 = vadd.f32 %v605, %v631
        %v637 = vadd.f32 %v606, %v631
        %v638 = vadd.f32 %v607, %v631
        %v639 = vadd.f32 %v608, %v631
        %v640 = vadd.f32 %v609, %v631
        %v641 = vadd.f32 %v610, %v631
        %v642 = vadd.f32 %v611, %v631
        %v643 = vadd.f32 %v612, %v631
        %v644 = vadd.f32 %v613, %v631
        %v645 = vadd.f32 %v614, %v631
        %v646 = vadd.f32 %v615, %v631
        %v647 = vadd.f32 %v616, %v631
        %v648 = vadd.f32 %v617, %v631
        %v649 = vadd.f32 %v618, %v631
        %v650 = vadd.f32 %v619, %v631
        %v651 = vadd.f32 %v620, %v631
        %v652 = vadd.f32 %v621, %v631
        %v653 = vadd.f32 %v622, %v631
        %v654 = vadd.f32 %v623, %v631
        %v655 = vadd.f32 %v624, %v631
        %v656 = vadd.f32 %v625, %v631
        %v657 = vadd.f32 %v626, %v631
        %v658 = vmax.f32 %v633, 0.0
        %v659 = vmax.f32 %v634, 0.0
        %v660 = vmax.f32 %v635, 0.0
        %v661 = vmax.f32 %v636, 0.0
        %v662 = vmax.f32 %v637, 0.0
        %v663 = vmax.f32 %v638, 0.0
        %v664 = vmax.f32 %v639, 0.0
        %v665 = vmax.f32 %v640, 0.0
        %v666 = vmax.f32 %v641, 0.0
        %v667 = vmax.f32 %v642, 0.0
        %v668 = vmax.f32 %v643, 0.0
        %v669 = vmax.f32 %v644, 0.0
        %v670 = vmax.f32 %v645, 0.0
        %v671 = vmax.f32 %v646, 0.0
        %v672 = vmax.f32 %v647, 0.0
        %v673 = vmax.f32 %v648, 0.0
        %v674 = vmax.f32 %v649, 0.0
        %v675 = vmax.f32 %v650, 0.0
        %v676 = vmax.f32 %v651, 0.0
        %v677 = vmax.f32 %v652, 0.0
        %v678 = vmax.f32 %v653, 0.0
        %v679 = vmax.f32 %v654, 0.0
        %v680 = vmax.f32 %v655, 0.0
        %v681 = vmax.f32 %v656, 0.0
        %v682 = vmax.f32 %v657, 0.0
        %vm685 = vcmask 1041408
        %v686 = vrot.slane %v658, 6
        %v687 = vrot.slane %v659, 6
        %v688 = vsel %vm685, %v686, %v687
        %v691 = vsel %vm685, 0.0, %v686
        %692 = vst [vmem:[#allocation3] sm:$0xff] %v691
        %693 = vst [vmem:[#allocation3 + $0x8] sm:$0xff] %v688
        %694 = vst [vmem:[#allocation3 + $0x10] sm:$0x3] 0.0
        %vm697 = vcmask 1043456
        %v698 = vrot.slane %v659, 4
        %v699 = vrot.slane %v660, 4
        %v700 = vsel %vm697, %v698, %v699
        %v701 = vrot.slane %v661, 4
        %v702 = vsel %vm697, %v699, %v701
        %v705 = vsel %vm685, 0.0, %v700
        %s706 = scalar_lea.vmem [#allocation3], 24
        %707 = vst [vmem:[%s706] sm:$0xff] %v705
        %708 = vst [vmem:[%s706 + $0x8] sm:$0xff] %v702
        %709 = vst [vmem:[%s706 + $0x10] sm:$0x3] 0.0
        %vm712 = vcmask 1045504
        %v713 = vrot.slane %v661, 2
        %v714 = vrot.slane %v662, 2
        %v715 = vsel %vm712, %v713, %v714
        %v716 = vrot.slane %v663, 2
        %v717 = vsel %vm712, %v714, %v716
        %v720 = vsel %vm685, 0.0, %v715
        %s721 = scalar_lea.vmem [#allocation3], 48
        %722 = vst [vmem:[%s721] sm:$0xff] %v720
        %723 = vst [vmem:[%s721 + $0x8] sm:$0xff] %v717
        %724 = vst [vmem:[%s721 + $0x10] sm:$0x3] 0.0
        %v725 = vsel %vm685, 0.0, %v663
        %s726 = scalar_lea.vmem [#allocation3], 72
        %727 = vst [vmem:[%s726] sm:$0xff] %v725
        %728 = vst [vmem:[%s726 + $0x8] sm:$0xff] %v664
        %729 = vst [vmem:[%s726 + $0x10] sm:$0x3] 0.0
        %v732 = vrot.slane %v665, 6
        %v733 = vrot.slane %v666, 6
        %v734 = vsel %vm685, %v732, %v733
        %v737 = vsel %vm685, 0.0, %v732
        %s738 = scalar_lea.vmem [#allocation3], 96
        %739 = vst [vmem:[%s738] sm:$0xff] %v737
        %740 = vst [vmem:[%s738 + $0x8] sm:$0xff] %v734
        %741 = vst [vmem:[%s738 + $0x10] sm:$0x3] 0.0
        %v744 = vrot.slane %v666, 4
        %v745 = vrot.slane %v667, 4
        %v746 = vsel %vm697, %v744, %v745
        %v747 = vrot.slane %v668, 4
        %v748 = vsel %vm697, %v745, %v747
        %v751 = vsel %vm685, 0.0, %v746
        %s752 = scalar_lea.vmem [#allocation3], 120
        %753 = vst [vmem:[%s752] sm:$0xff] %v751
        %754 = vst [vmem:[%s752 + $0x8] sm:$0xff] %v748
        %755 = vst [vmem:[%s752 + $0x10] sm:$0x3] 0.0
        %v758 = vrot.slane %v668, 2
        %v759 = vrot.slane %v669, 2
        %v760 = vsel %vm712, %v758, %v759
        %v761 = vrot.slane %v670, 2
        %v762 = vsel %vm712, %v759, %v761
        %v765 = vsel %vm685, 0.0, %v760
        %s766 = scalar_lea.vmem [#allocation3], 144
        %767 = vst [vmem:[%s766] sm:$0xff] %v765
        %768 = vst [vmem:[%s766 + $0x8] sm:$0xff] %v762
        %769 = vst [vmem:[%s766 + $0x10] sm:$0x3] 0.0
        %v770 = vsel %vm685, 0.0, %v670
        %s771 = scalar_lea.vmem [#allocation3], 168
        %772 = vst [vmem:[%s771] sm:$0xff] %v770
        %773 = vst [vmem:[%s771 + $0x8] sm:$0xff] %v671
        %774 = vst [vmem:[%s771 + $0x10] sm:$0x3] 0.0
        %v777 = vrot.slane %v672, 6
        %v778 = vrot.slane %v673, 6
        %v779 = vsel %vm685, %v777, %v778
        %v782 = vsel %vm685, 0.0, %v777
        %s783 = scalar_lea.vmem [#allocation3], 192
        %784 = vst [vmem:[%s783] sm:$0xff] %v782
        %785 = vst [vmem:[%s783 + $0x8] sm:$0xff] %v779
        %786 = vst [vmem:[%s783 + $0x10] sm:$0x3] 0.0
        %v789 = vrot.slane %v673, 4
        %v790 = vrot.slane %v674, 4
        %v791 = vsel %vm697, %v789, %v790
        %v792 = vrot.slane %v675, 4
        %v793 = vsel %vm697, %v790, %v792
        %v796 = vsel %vm685, 0.0, %v791
        %s797 = scalar_lea.vmem [#allocation3], 216
        %798 = vst [vmem:[%s797] sm:$0xff] %v796
        %799 = vst [vmem:[%s797 + $0x8] sm:$0xff] %v793
        %800 = vst [vmem:[%s797 + $0x10] sm:$0x3] 0.0
        %v803 = vrot.slane %v675, 2
        %v804 = vrot.slane %v676, 2
        %v805 = vsel %vm712, %v803, %v804
        %v806 = vrot.slane %v677, 2
        %v807 = vsel %vm712, %v804, %v806
        %v810 = vsel %vm685, 0.0, %v805
        %s811 = scalar_lea.vmem [#allocation3], 240
        %812 = vst [vmem:[%s811] sm:$0xff] %v810
        %813 = vst [vmem:[%s811 + $0x8] sm:$0xff] %v807
        %814 = vst [vmem:[%s811 + $0x10] sm:$0x3] 0.0
        %v815 = vsel %vm685, 0.0, %v677
        %s816 = scalar_lea.vmem [#allocation3], 264
        %817 = vst [vmem:[%s816] sm:$0xff] %v815
        %818 = vst [vmem:[%s816 + $0x8] sm:$0xff] %v678
        %819 = vst [vmem:[%s816 + $0x10] sm:$0x3] 0.0
        %v822 = vrot.slane %v679, 6
        %v823 = vrot.slane %v680, 6
        %v824 = vsel %vm685, %v822, %v823
        %v827 = vsel %vm685, 0.0, %v822
        %s828 = scalar_lea.vmem [#allocation3], 288
        %829 = vst [vmem:[%s828] sm:$0xff] %v827
        %830 = vst [vmem:[%s828 + $0x8] sm:$0xff] %v824
        %831 = vst [vmem:[%s828 + $0x10] sm:$0x3] 0.0
        %v834 = vrot.slane %v680, 4
        %v835 = vrot.slane %v681, 4
        %v836 = vsel %vm697, %v834, %v835
        %v837 = vrot.slane %v682, 4
        %v838 = vsel %vm697, %v835, %v837
        %v841 = vsel %vm685, 0.0, %v836
        %s842 = scalar_lea.vmem [#allocation3], 312
        %843 = vst [vmem:[%s842] sm:$0xff] %v841
        %844 = vst [vmem:[%s842 + $0x8] sm:$0xff] %v838
        %845 = vst [vmem:[%s842 + $0x10] sm:$0x3] 0.0
        %v846 = vld [vmem:[%s244] sm:$0x1]
        %v847 = vlaneseq
        %v848 = vshrl.u32 %v847, 7
        %v849 = vsub.s32 0, %v848
        %v850 = vrot.slane %v846, %v849
        %v851 = vld [vmem:[%s244 + $0x5] sm:$0x1]
        %v852 = vlaneseq
        %v853 = vshrl.u32 %v852, 7
        %v854 = vsub.s32 0, %v853
        %v855 = vrot.slane %v851, %v854
        %v856 = vld [vmem:[%s244 + $0xa] sm:$0x1]
        %v857 = vlaneseq
        %v858 = vshrl.u32 %v857, 7
        %v859 = vsub.s32 0, %v858
        %v860 = vrot.slane %v856, %v859
        %v861 = vld [vmem:[%s244 + $0xf] sm:$0x1]
        %v862 = vlaneseq
        %v863 = vshrl.u32 %v862, 7
        %v864 = vsub.s32 0, %v863
        %v865 = vrot.slane %v861, %v864
        %v866 = vld [vmem:[%s244 + $0x14] sm:$0x1]
        %v867 = vlaneseq
        %v868 = vshrl.u32 %v867, 7
        %v869 = vsub.s32 0, %v868
        %v870 = vrot.slane %v866, %v869
        %v871 = vld [vmem:[#allocation3] sm:$0xff]
        %v872 = vld [vmem:[#allocation3 + $0x8] sm:$0x3f]
        %v873 = vmul.f32 %v871, %v850
        %v874 = vmul.f32 %v872, %v850
        %v875 = vadd.f32 %v873, 0.0
        %v876 = vadd.f32 %v874, 0.0
        %v877 = vmul.f32 %v871, %v855
        %v878 = vmul.f32 %v872, %v855
        %v879 = vadd.f32 %v877, 0.0
        %v880 = vadd.f32 %v878, 0.0
        %v881 = vmul.f32 %v871, %v860
        %v882 = vmul.f32 %v872, %v860
        %v883 = vadd.f32 %v881, 0.0
        %v884 = vadd.f32 %v882, 0.0
        %v885 = vld [vmem:[%s706] sm:$0xff]
        %v886 = vld [vmem:[%s706 + $0x8] sm:$0x3f]
        %v887 = vmul.f32 %v885, %v850
        %v888 = vmul.f32 %v886, %v850
        %v889 = vadd.f32 %v887, 0.0
        %v890 = vadd.f32 %v888, 0.0
        %v891 = vmul.f32 %v885, %v855
        %v892 = vmul.f32 %v886, %v855
        %v893 = vadd.f32 %v875, %v891
        %v894 = vadd.f32 %v876, %v892
        %v895 = vmul.f32 %v885, %v860
        %v896 = vmul.f32 %v886, %v860
        %v897 = vadd.f32 %v879, %v895
        %v898 = vadd.f32 %v880, %v896
        %v899 = vmul.f32 %v885, %v865
        %v900 = vmul.f32 %v886, %v865
        %v901 = vadd.f32 %v883, %v899
        %v902 = vadd.f32 %v884, %v900
        %v903 = vld [vmem:[%s721] sm:$0xff]
        %v904 = vld [vmem:[%s721 + $0x8] sm:$0x3f]
        %v905 = vmul.f32 %v903, %v850
        %v906 = vmul.f32 %v904, %v850
        %v907 = vadd.f32 %v905, 0.0
        %v908 = vadd.f32 %v906, 0.0
        %v909 = vmul.f32 %v903, %v855
        %v910 = vmul.f32 %v904, %v855
        %v911 = vadd.f32 %v889, %v909
        %v912 = vadd.f32 %v890, %v910
        %v913 = vmul.f32 %v903, %v860
        %v914 = vmul.f32 %v904, %v860
        %v915 = vadd.f32 %v893, %v913
        %v916 = vadd.f32 %v894, %v914
        %v917 = vmul.f32 %v903, %v865
        %v918 = vmul.f32 %v904, %v865
        %v919 = vadd.f32 %v897, %v917
        %v920 = vadd.f32 %v898, %v918
        %v921 = vmul.f32 %v903, %v870
        %v922 = vmul.f32 %v904, %v870
        %v923 = vadd.f32 %v901, %v921
        %v924 = vadd.f32 %v902, %v922
        %v925 = vld [vmem:[%s726] sm:$0xff]
        %v926 = vld [vmem:[%s726 + $0x8] sm:$0x3f]
        %v927 = vmul.f32 %v925, %v850
        %v928 = vmul.f32 %v926, %v850
        %v929 = vadd.f32 %v927, 0.0
        %v930 = vadd.f32 %v928, 0.0
        %v931 = vmul.f32 %v925, %v855
        %v932 = vmul.f32 %v926, %v855
        %v933 = vadd.f32 %v907, %v931
        %v934 = vadd.f32 %v908, %v932
        %v935 = vmul.f32 %v925, %v860
        %v936 = vmul.f32 %v926, %v860
        %v937 = vadd.f32 %v911, %v935
        %v938 = vadd.f32 %v912, %v936
        %v939 = vmul.f32 %v925, %v865
        %v940 = vmul.f32 %v926, %v865
        %v941 = vadd.f32 %v915, %v939
        %v942 = vadd.f32 %v916, %v940
        %v943 = vmul.f32 %v925, %v870
        %v944 = vmul.f32 %v926, %v870
        %v945 = vadd.f32 %v919, %v943
        %v946 = vadd.f32 %v920, %v944
        %v947 = vld [vmem:[%s738] sm:$0xff]
        %v948 = vld [vmem:[%s738 + $0x8] sm:$0x3f]
        %v949 = vmul.f32 %v947, %v850
        %v950 = vmul.f32 %v948, %v850
        %v951 = vadd.f32 %v949, 0.0
        %v952 = vadd.f32 %v950, 0.0
        %v953 = vmul.f32 %v947, %v855
        %v954 = vmul.f32 %v948, %v855
        %v955 = vadd.f32 %v929, %v953
        %v956 = vadd.f32 %v930, %v954
        %v957 = vmul.f32 %v947, %v860
        %v958 = vmul.f32 %v948, %v860
        %v959 = vadd.f32 %v933, %v957
        %v960 = vadd.f32 %v934, %v958
        %v961 = vmul.f32 %v947, %v865
        %v962 = vmul.f32 %v948, %v865
        %v963 = vadd.f32 %v937, %v961
        %v964 = vadd.f32 %v938, %v962
        %v965 = vmul.f32 %v947, %v870
        %v966 = vmul.f32 %v948, %v870
        %v967 = vadd.f32 %v941, %v965
        %v968 = vadd.f32 %v942, %v966
        %v969 = vld [vmem:[%s752] sm:$0xff]
        %v970 = vld [vmem:[%s752 + $0x8] sm:$0x3f]
        %v971 = vmul.f32 %v969, %v850
        %v972 = vmul.f32 %v970, %v850
        %v973 = vadd.f32 %v971, 0.0
        %v974 = vadd.f32 %v972, 0.0
        %v975 = vmul.f32 %v969, %v855
        %v976 = vmul.f32 %v970, %v855
        %v977 = vadd.f32 %v951, %v975
        %v978 = vadd.f32 %v952, %v976
        %v979 = vmul.f32 %v969, %v860
        %v980 = vmul.f32 %v970, %v860
        %v981 = vadd.f32 %v955, %v979
        %v982 = vadd.f32 %v956, %v980
        %v983 = vmul.f32 %v969, %v865
        %v984 = vmul.f32 %v970, %v865
        %v985 = vadd.f32 %v959, %v983
        %v986 = vadd.f32 %v960, %v984
        %v987 = vmul.f32 %v969, %v870
        %v988 = vmul.f32 %v970, %v870
        %v989 = vadd.f32 %v963, %v987
        %v990 = vadd.f32 %v964, %v988
        %v991 = vld [vmem:[%s766] sm:$0xff]
        %v992 = vld [vmem:[%s766 + $0x8] sm:$0x3f]
        %v993 = vmul.f32 %v991, %v850
        %v994 = vmul.f32 %v992, %v850
        %v995 = vadd.f32 %v993, 0.0
        %v996 = vadd.f32 %v994, 0.0
        %v997 = vmul.f32 %v991, %v855
        %v998 = vmul.f32 %v992, %v855
        %v999 = vadd.f32 %v973, %v997
        %v1000 = vadd.f32 %v974, %v998
        %v1001 = vmul.f32 %v991, %v860
        %v1002 = vmul.f32 %v992, %v860
        %v1003 = vadd.f32 %v977, %v1001
        %v1004 = vadd.f32 %v978, %v1002
        %v1005 = vmul.f32 %v991, %v865
        %v1006 = vmul.f32 %v992, %v865
        %v1007 = vadd.f32 %v981, %v1005
        %v1008 = vadd.f32 %v982, %v1006
        %v1009 = vmul.f32 %v991, %v870
        %v1010 = vmul.f32 %v992, %v870
        %v1011 = vadd.f32 %v985, %v1009
        %v1012 = vadd.f32 %v986, %v1010
        %v1013 = vld [vmem:[%s771] sm:$0xff]
        %v1014 = vld [vmem:[%s771 + $0x8] sm:$0x3f]
        %v1015 = vmul.f32 %v1013, %v850
        %v1016 = vmul.f32 %v1014, %v850
        %v1017 = vadd.f32 %v1015, 0.0
        %v1018 = vadd.f32 %v1016, 0.0
        %v1019 = vmul.f32 %v1013, %v855
        %v1020 = vmul.f32 %v1014, %v855
        %v1021 = vadd.f32 %v995, %v1019
        %v1022 = vadd.f32 %v996, %v1020
        %v1023 = vmul.f32 %v1013, %v860
        %v1024 = vmul.f32 %v1014, %v860
        %v1025 = vadd.f32 %v999, %v1023
        %v1026 = vadd.f32 %v1000, %v1024
        %v1027 = vmul.f32 %v1013, %v865
        %v1028 = vmul.f32 %v1014, %v865
        %v1029 = vadd.f32 %v1003, %v1027
        %v1030 = vadd.f32 %v1004, %v1028
        %v1031 = vmul.f32 %v1013, %v870
        %v1032 = vmul.f32 %v1014, %v870
        %v1033 = vadd.f32 %v1007, %v1031
        %v1034 = vadd.f32 %v1008, %v1032
        %v1035 = vld [vmem:[%s783] sm:$0xff]
        %v1036 = vld [vmem:[%s783 + $0x8] sm:$0x3f]
        %v1037 = vmul.f32 %v1035, %v850
        %v1038 = vmul.f32 %v1036, %v850
        %v1039 = vadd.f32 %v1037, 0.0
        %v1040 = vadd.f32 %v1038, 0.0
        %v1041 = vmul.f32 %v1035, %v855
        %v1042 = vmul.f32 %v1036, %v855
        %v1043 = vadd.f32 %v1017, %v1041
        %v1044 = vadd.f32 %v1018, %v1042
        %v1045 = vmul.f32 %v1035, %v860
        %v1046 = vmul.f32 %v1036, %v860
        %v1047 = vadd.f32 %v1021, %v1045
        %v1048 = vadd.f32 %v1022, %v1046
        %v1049 = vmul.f32 %v1035, %v865
        %v1050 = vmul.f32 %v1036, %v865
        %v1051 = vadd.f32 %v1025, %v1049
        %v1052 = vadd.f32 %v1026, %v1050
        %v1053 = vmul.f32 %v1035, %v870
        %v1054 = vmul.f32 %v1036, %v870
        %v1055 = vadd.f32 %v1029, %v1053
        %v1056 = vadd.f32 %v1030, %v1054
        %v1057 = vld [vmem:[%s797] sm:$0xff]
        %v1058 = vld [vmem:[%s797 + $0x8] sm:$0x3f]
        %v1059 = vmul.f32 %v1057, %v850
        %v1060 = vmul.f32 %v1058, %v850
        %v1061 = vadd.f32 %v1059, 0.0
        %v1062 = vadd.f32 %v1060, 0.0
        %v1063 = vmul.f32 %v1057, %v855
        %v1064 = vmul.f32 %v1058, %v855
        %v1065 = vadd.f32 %v1039, %v1063
        %v1066 = vadd.f32 %v1040, %v1064
        %v1067 = vmul.f32 %v1057, %v860
        %v1068 = vmul.f32 %v1058, %v860
        %v1069 = vadd.f32 %v1043, %v1067
        %v1070 = vadd.f32 %v1044, %v1068
        %v1071 = vmul.f32 %v1057, %v865
        %v1072 = vmul.f32 %v1058, %v865
        %v1073 = vadd.f32 %v1047, %v1071
        %v1074 = vadd.f32 %v1048, %v1072
        %v1075 = vmul.f32 %v1057, %v870
        %v1076 = vmul.f32 %v1058, %v870
        %v1077 = vadd.f32 %v1051, %v1075
        %v1078 = vadd.f32 %v1052, %v1076
        %v1079 = vld [vmem:[%s811] sm:$0xff]
        %v1080 = vld [vmem:[%s811 + $0x8] sm:$0x3f]
        %v1081 = vmul.f32 %v1079, %v850
        %v1082 = vmul.f32 %v1080, %v850
        %v1083 = vadd.f32 %v1081, 0.0
        %v1084 = vadd.f32 %v1082, 0.0
        %v1085 = vmul.f32 %v1079, %v855
        %v1086 = vmul.f32 %v1080, %v855
        %v1087 = vadd.f32 %v1061, %v1085
        %v1088 = vadd.f32 %v1062, %v1086
        %v1089 = vmul.f32 %v1079, %v860
        %v1090 = vmul.f32 %v1080, %v860
        %v1091 = vadd.f32 %v1065, %v1089
        %v1092 = vadd.f32 %v1066, %v1090
        %v1093 = vmul.f32 %v1079, %v865
        %v1094 = vmul.f32 %v1080, %v865
        %v1095 = vadd.f32 %v1069, %v1093
        %v1096 = vadd.f32 %v1070, %v1094
        %v1097 = vmul.f32 %v1079, %v870
        %v1098 = vmul.f32 %v1080, %v870
        %v1099 = vadd.f32 %v1073, %v1097
        %v1100 = vadd.f32 %v1074, %v1098
        %v1101 = vld [vmem:[%s816] sm:$0xff]
        %v1102 = vld [vmem:[%s816 + $0x8] sm:$0x3f]
        %v1103 = vmul.f32 %v1101, %v850
        %v1104 = vmul.f32 %v1102, %v850
        %v1105 = vadd.f32 %v1103, 0.0
        %v1106 = vadd.f32 %v1104, 0.0
        %v1107 = vmul.f32 %v1101, %v855
        %v1108 = vmul.f32 %v1102, %v855
        %v1109 = vadd.f32 %v1083, %v1107
        %v1110 = vadd.f32 %v1084, %v1108
        %v1111 = vmul.f32 %v1101, %v860
        %v1112 = vmul.f32 %v1102, %v860
        %v1113 = vadd.f32 %v1087, %v1111
        %v1114 = vadd.f32 %v1088, %v1112
        %v1115 = vmul.f32 %v1101, %v865
        %v1116 = vmul.f32 %v1102, %v865
        %v1117 = vadd.f32 %v1091, %v1115
        %v1118 = vadd.f32 %v1092, %v1116
        %v1119 = vmul.f32 %v1101, %v870
        %v1120 = vmul.f32 %v1102, %v870
        %v1121 = vadd.f32 %v1095, %v1119
        %v1122 = vadd.f32 %v1096, %v1120
        %v1123 = vld [vmem:[%s828] sm:$0xff]
        %v1124 = vld [vmem:[%s828 + $0x8] sm:$0x3f]
        %v1125 = vmul.f32 %v1123, %v855
        %v1126 = vmul.f32 %v1124, %v855
        %v1127 = vadd.f32 %v1105, %v1125
        %v1128 = vadd.f32 %v1106, %v1126
        %v1129 = vmul.f32 %v1123, %v860
        %v1130 = vmul.f32 %v1124, %v860
        %v1131 = vadd.f32 %v1109, %v1129
        %v1132 = vadd.f32 %v1110, %v1130
        %v1133 = vmul.f32 %v1123, %v865
        %v1134 = vmul.f32 %v1124, %v865
        %v1135 = vadd.f32 %v1113, %v1133
        %v1136 = vadd.f32 %v1114, %v1134
        %v1137 = vmul.f32 %v1123, %v870
        %v1138 = vmul.f32 %v1124, %v870
        %v1139 = vadd.f32 %v1117, %v1137
        %v1140 = vadd.f32 %v1118, %v1138
        %v1141 = vld [vmem:[%s842] sm:$0xff]
        %v1142 = vld [vmem:[%s842 + $0x8] sm:$0x3f]
        %v1143 = vmul.f32 %v1141, %v860
        %v1144 = vmul.f32 %v1142, %v860
        %v1145 = vadd.f32 %v1127, %v1143
        %v1146 = vadd.f32 %v1128, %v1144
        %v1147 = vmul.f32 %v1141, %v865
        %v1148 = vmul.f32 %v1142, %v865
        %v1149 = vadd.f32 %v1131, %v1147
        %v1150 = vadd.f32 %v1132, %v1148
        %v1151 = vmul.f32 %v1141, %v870
        %v1152 = vmul.f32 %v1142, %v870
        %v1153 = vadd.f32 %v1135, %v1151
        %v1154 = vadd.f32 %v1136, %v1152
        %v1155 = vld [vmem:[%s244 + $0x1] sm:$0x1]
        %v1156 = vlaneseq
        %v1157 = vshrl.u32 %v1156, 7
        %v1158 = vsub.s32 0, %v1157
        %v1159 = vrot.slane %v1155, %v1158
        %v1160 = vld [vmem:[%s244 + $0x6] sm:$0x1]
        %v1161 = vlaneseq
        %v1162 = vshrl.u32 %v1161, 7
        %v1163 = vsub.s32 0, %v1162
        %v1164 = vrot.slane %v1160, %v1163
        %v1165 = vld [vmem:[%s244 + $0xb] sm:$0x1]
        %v1166 = vlaneseq
        %v1167 = vshrl.u32 %v1166, 7
        %v1168 = vsub.s32 0, %v1167
        %v1169 = vrot.slane %v1165, %v1168
        %v1170 = vld [vmem:[%s244 + $0x10] sm:$0x1]
        %v1171 = vlaneseq
        %v1172 = vshrl.u32 %v1171, 7
        %v1173 = vsub.s32 0, %v1172
        %v1174 = vrot.slane %v1170, %v1173
        %v1175 = vld [vmem:[%s244 + $0x15] sm:$0x1]
        %v1176 = vlaneseq
        %v1177 = vshrl.u32 %v1176, 7
        %v1178 = vsub.s32 0, %v1177
        %v1179 = vrot.slane %v1175, %v1178
        %v1180 = vld [vmem:[#allocation3 + $0x1] sm:$0xff]
        %v1181 = vld [vmem:[#allocation3 + $0x9] sm:$0x3f]
        %v1182 = vmul.f32 %v1180, %v1159
        %v1183 = vmul.f32 %v1181, %v1159
        %v1184 = vadd.f32 %v967, %v1182
        %v1185 = vadd.f32 %v968, %v1183
        %v1186 = vmul.f32 %v1180, %v1164
        %v1187 = vmul.f32 %v1181, %v1164
        %v1188 = vadd.f32 %v945, %v1186
        %v1189 = vadd.f32 %v946, %v1187
        %v1190 = vmul.f32 %v1180, %v1169
        %v1191 = vmul.f32 %v1181, %v1169
        %v1192 = vadd.f32 %v923, %v1190
        %v1193 = vadd.f32 %v924, %v1191
        %v1194 = vld [vmem:[%s706 + $0x1] sm:$0xff]
        %v1195 = vld [vmem:[%s706 + $0x9] sm:$0x3f]
        %v1196 = vmul.f32 %v1194, %v1159
        %v1197 = vmul.f32 %v1195, %v1159
        %v1198 = vadd.f32 %v989, %v1196
        %v1199 = vadd.f32 %v990, %v1197
        %v1200 = vmul.f32 %v1194, %v1164
        %v1201 = vmul.f32 %v1195, %v1164
        %v1202 = vadd.f32 %v1184, %v1200
        %v1203 = vadd.f32 %v1185, %v1201
        %v1204 = vmul.f32 %v1194, %v1169
        %v1205 = vmul.f32 %v1195, %v1169
        %v1206 = vadd.f32 %v1188, %v1204
        %v1207 = vadd.f32 %v1189, %v1205
        %v1208 = vmul.f32 %v1194, %v1174
        %v1209 = vmul.f32 %v1195, %v1174
        %v1210 = vadd.f32 %v1192, %v1208
        %v1211 = vadd.f32 %v1193, %v1209
        %v1212 = vld [vmem:[%s721 + $0x1] sm:$0xff]
        %v1213 = vld [vmem:[%s721 + $0x9] sm:$0x3f]
        %v1214 = vmul.f32 %v1212, %v1159
        %v1215 = vmul.f32 %v1213, %v1159
        %v1216 = vadd.f32 %v1011, %v1214
        %v1217 = vadd.f32 %v1012, %v1215
        %v1218 = vmul.f32 %v1212, %v1164
        %v1219 = vmul.f32 %v1213, %v1164
        %v1220 = vadd.f32 %v1198, %v1218
        %v1221 = vadd.f32 %v1199, %v1219
        %v1222 = vmul.f32 %v1212, %v1169
        %v1223 = vmul.f32 %v1213, %v1169
        %v1224 = vadd.f32 %v1202, %v1222
        %v1225 = vadd.f32 %v1203, %v1223
        %v1226 = vmul.f32 %v1212, %v1174
        %v1227 = vmul.f32 %v1213, %v1174
        %v1228 = vadd.f32 %v1206, %v1226
        %v1229 = vadd.f32 %v1207, %v1227
        %v1230 = vmul.f32 %v1212, %v1179
        %v1231 = vmul.f32 %v1213, %v1179
        %v1232 = vadd.f32 %v1210, %v1230
        %v1233 = vadd.f32 %v1211, %v1231
        %v1234 = vld [vmem:[%s726 + $0x1] sm:$0xff]
        %v1235 = vld [vmem:[%s726 + $0x9] sm:$0x3f]
        %v1236 = vmul.f32 %v1234, %v1159
        %v1237 = vmul.f32 %v1235, %v1159
        %v1238 = vadd.f32 %v1033, %v1236
        %v1239 = vadd.f32 %v1034, %v1237
        %v1240 = vmul.f32 %v1234, %v1164
        %v1241 = vmul.f32 %v1235, %v1164
        %v1242 = vadd.f32 %v1216, %v1240
        %v1243 = vadd.f32 %v1217, %v1241
        %v1244 = vmul.f32 %v1234, %v1169
        %v1245 = vmul.f32 %v1235, %v1169
        %v1246 = vadd.f32 %v1220, %v1244
        %v1247 = vadd.f32 %v1221, %v1245
        %v1248 = vmul.f32 %v1234, %v1174
        %v1249 = vmul.f32 %v1235, %v1174
        %v1250 = vadd.f32 %v1224, %v1248
        %v1251 = vadd.f32 %v1225, %v1249
        %v1252 = vmul.f32 %v1234, %v1179
        %v1253 = vmul.f32 %v1235, %v1179
        %v1254 = vadd.f32 %v1228, %v1252
        %v1255 = vadd.f32 %v1229, %v1253
        %v1256 = vld [vmem:[%s738 + $0x1] sm:$0xff]
        %v1257 = vld [vmem:[%s738 + $0x9] sm:$0x3f]
        %v1258 = vmul.f32 %v1256, %v1159
        %v1259 = vmul.f32 %v1257, %v1159
        %v1260 = vadd.f32 %v1055, %v1258
        %v1261 = vadd.f32 %v1056, %v1259
        %v1262 = vmul.f32 %v1256, %v1164
        %v1263 = vmul.f32 %v1257, %v1164
        %v1264 = vadd.f32 %v1238, %v1262
        %v1265 = vadd.f32 %v1239, %v1263
        %v1266 = vmul.f32 %v1256, %v1169
        %v1267 = vmul.f32 %v1257, %v1169
        %v1268 = vadd.f32 %v1242, %v1266
        %v1269 = vadd.f32 %v1243, %v1267
        %v1270 = vmul.f32 %v1256, %v1174
        %v1271 = vmul.f32 %v1257, %v1174
        %v1272 = vadd.f32 %v1246, %v1270
        %v1273 = vadd.f32 %v1247, %v1271
        %v1274 = vmul.f32 %v1256, %v1179
        %v1275 = vmul.f32 %v1257, %v1179
        %v1276 = vadd.f32 %v1250, %v1274
        %v1277 = vadd.f32 %v1251, %v1275
        %v1278 = vld [vmem:[%s752 + $0x1] sm:$0xff]
        %v1279 = vld [vmem:[%s752 + $0x9] sm:$0x3f]
        %v1280 = vmul.f32 %v1278, %v1159
        %v1281 = vmul.f32 %v1279, %v1159
        %v1282 = vadd.f32 %v1077, %v1280
        %v1283 = vadd.f32 %v1078, %v1281
        %v1284 = vmul.f32 %v1278, %v1164
        %v1285 = vmul.f32 %v1279, %v1164
        %v1286 = vadd.f32 %v1260, %v1284
        %v1287 = vadd.f32 %v1261, %v1285
        %v1288 = vmul.f32 %v1278, %v1169
        %v1289 = vmul.f32 %v1279, %v1169
        %v1290 = vadd.f32 %v1264, %v1288
        %v1291 = vadd.f32 %v1265, %v1289
        %v1292 = vmul.f32 %v1278, %v1174
        %v1293 = vmul.f32 %v1279, %v1174
        %v1294 = vadd.f32 %v1268, %v1292
        %v1295 = vadd.f32 %v1269, %v1293
        %v1296 = vmul.f32 %v1278, %v1179
        %v1297 = vmul.f32 %v1279, %v1179
        %v1298 = vadd.f32 %v1272, %v1296
        %v1299 = vadd.f32 %v1273, %v1297
        %v1300 = vld [vmem:[%s766 + $0x1] sm:$0xff]
        %v1301 = vld [vmem:[%s766 + $0x9] sm:$0x3f]
        %v1302 = vmul.f32 %v1300, %v1159
        %v1303 = vmul.f32 %v1301, %v1159
        %v1304 = vadd.f32 %v1099, %v1302
        %v1305 = vadd.f32 %v1100, %v1303
        %v1306 = vmul.f32 %v1300, %v1164
        %v1307 = vmul.f32 %v1301, %v1164
        %v1308 = vadd.f32 %v1282, %v1306
        %v1309 = vadd.f32 %v1283, %v1307
        %v1310 = vmul.f32 %v1300, %v1169
        %v1311 = vmul.f32 %v1301, %v1169
        %v1312 = vadd.f32 %v1286, %v1310
        %v1313 = vadd.f32 %v1287, %v1311
        %v1314 = vmul.f32 %v1300, %v1174
        %v1315 = vmul.f32 %v1301, %v1174
        %v1316 = vadd.f32 %v1290, %v1314
        %v1317 = vadd.f32 %v1291, %v1315
        %v1318 = vmul.f32 %v1300, %v1179
        %v1319 = vmul.f32 %v1301, %v1179
        %v1320 = vadd.f32 %v1294, %v1318
        %v1321 = vadd.f32 %v1295, %v1319
        %v1322 = vld [vmem:[%s771 + $0x1] sm:$0xff]
        %v1323 = vld [vmem:[%s771 + $0x9] sm:$0x3f]
        %v1324 = vmul.f32 %v1322, %v1159
        %v1325 = vmul.f32 %v1323, %v1159
        %v1326 = vadd.f32 %v1121, %v1324
        %v1327 = vadd.f32 %v1122, %v1325
        %v1328 = vmul.f32 %v1322, %v1164
        %v1329 = vmul.f32 %v1323, %v1164
        %v1330 = vadd.f32 %v1304, %v1328
        %v1331 = vadd.f32 %v1305, %v1329
        %v1332 = vmul.f32 %v1322, %v1169
        %v1333 = vmul.f32 %v1323, %v1169
        %v1334 = vadd.f32 %v1308, %v1332
        %v1335 = vadd.f32 %v1309, %v1333
        %v1336 = vmul.f32 %v1322, %v1174
        %v1337 = vmul.f32 %v1323, %v1174
        %v1338 = vadd.f32 %v1312, %v1336
        %v1339 = vadd.f32 %v1313, %v1337
        %v1340 = vmul.f32 %v1322, %v1179
        %v1341 = vmul.f32 %v1323, %v1179
        %v1342 = vadd.f32 %v1316, %v1340
        %v1343 = vadd.f32 %v1317, %v1341
        %v1344 = vld [vmem:[%s783 + $0x1] sm:$0xff]
        %v1345 = vld [vmem:[%s783 + $0x9] sm:$0x3f]
        %v1346 = vmul.f32 %v1344, %v1159
        %v1347 = vmul.f32 %v1345, %v1159
        %v1348 = vadd.f32 %v1139, %v1346
        %v1349 = vadd.f32 %v1140, %v1347
        %v1350 = vmul.f32 %v1344, %v1164
        %v1351 = vmul.f32 %v1345, %v1164
        %v1352 = vadd.f32 %v1326, %v1350
        %v1353 = vadd.f32 %v1327, %v1351
        %v1354 = vmul.f32 %v1344, %v1169
        %v1355 = vmul.f32 %v1345, %v1169
        %v1356 = vadd.f32 %v1330, %v1354
        %v1357 = vadd.f32 %v1331, %v1355
        %v1358 = vmul.f32 %v1344, %v1174
        %v1359 = vmul.f32 %v1345, %v1174
        %v1360 = vadd.f32 %v1334, %v1358
        %v1361 = vadd.f32 %v1335, %v1359
        %v1362 = vmul.f32 %v1344, %v1179
        %v1363 = vmul.f32 %v1345, %v1179
        %v1364 = vadd.f32 %v1338, %v1362
        %v1365 = vadd.f32 %v1339, %v1363
        %v1366 = vld [vmem:[%s797 + $0x1] sm:$0xff]
        %v1367 = vld [vmem:[%s797 + $0x9] sm:$0x3f]
        %v1368 = vmul.f32 %v1366, %v1159
        %v1369 = vmul.f32 %v1367, %v1159
        %v1370 = vadd.f32 %v1153, %v1368
        %v1371 = vadd.f32 %v1154, %v1369
        %v1372 = vmul.f32 %v1366, %v1164
        %v1373 = vmul.f32 %v1367, %v1164
        %v1374 = vadd.f32 %v1348, %v1372
        %v1375 = vadd.f32 %v1349, %v1373
        %v1376 = vmul.f32 %v1366, %v1169
        %v1377 = vmul.f32 %v1367, %v1169
        %v1378 = vadd.f32 %v1352, %v1376
        %v1379 = vadd.f32 %v1353, %v1377
        %v1380 = vmul.f32 %v1366, %v1174
        %v1381 = vmul.f32 %v1367, %v1174
        %v1382 = vadd.f32 %v1356, %v1380
        %v1383 = vadd.f32 %v1357, %v1381
        %v1384 = vmul.f32 %v1366, %v1179
        %v1385 = vmul.f32 %v1367, %v1179
        %v1386 = vadd.f32 %v1360, %v1384
        %v1387 = vadd.f32 %v1361, %v1385
        %v1388 = vld [vmem:[%s811 + $0x1] sm:$0xff]
        %v1389 = vld [vmem:[%s811 + $0x9] sm:$0x3f]
        %v1390 = vmul.f32 %v1388, %v1159
        %v1391 = vmul.f32 %v1389, %v1159
        %v1392 = vadd.f32 %v1149, %v1390
        %v1393 = vadd.f32 %v1150, %v1391
        %v1394 = vmul.f32 %v1388, %v1164
        %v1395 = vmul.f32 %v1389, %v1164
        %v1396 = vadd.f32 %v1370, %v1394
        %v1397 = vadd.f32 %v1371, %v1395
        %v1398 = vmul.f32 %v1388, %v1169
        %v1399 = vmul.f32 %v1389, %v1169
        %v1400 = vadd.f32 %v1374, %v1398
        %v1401 = vadd.f32 %v1375, %v1399
        %v1402 = vmul.f32 %v1388, %v1174
        %v1403 = vmul.f32 %v1389, %v1174
        %v1404 = vadd.f32 %v1378, %v1402
        %v1405 = vadd.f32 %v1379, %v1403
        %v1406 = vmul.f32 %v1388, %v1179
        %v1407 = vmul.f32 %v1389, %v1179
        %v1408 = vadd.f32 %v1382, %v1406
        %v1409 = vadd.f32 %v1383, %v1407
        %v1410 = vld [vmem:[%s816 + $0x1] sm:$0xff]
        %v1411 = vld [vmem:[%s816 + $0x9] sm:$0x3f]
        %v1412 = vmul.f32 %v1410, %v1159
        %v1413 = vmul.f32 %v1411, %v1159
        %v1414 = vadd.f32 %v1145, %v1412
        %v1415 = vadd.f32 %v1146, %v1413
        %v1416 = vmul.f32 %v1410, %v1164
        %v1417 = vmul.f32 %v1411, %v1164
        %v1418 = vadd.f32 %v1392, %v1416
        %v1419 = vadd.f32 %v1393, %v1417
        %v1420 = vmul.f32 %v1410, %v1169
        %v1421 = vmul.f32 %v1411, %v1169
        %v1422 = vadd.f32 %v1396, %v1420
        %v1423 = vadd.f32 %v1397, %v1421
        %v1424 = vmul.f32 %v1410, %v1174
        %v1425 = vmul.f32 %v1411, %v1174
        %v1426 = vadd.f32 %v1400, %v1424
        %v1427 = vadd.f32 %v1401, %v1425
        %v1428 = vmul.f32 %v1410, %v1179
        %v1429 = vmul.f32 %v1411, %v1179
        %v1430 = vadd.f32 %v1404, %v1428
        %v1431 = vadd.f32 %v1405, %v1429
        %v1432 = vld [vmem:[%s828 + $0x1] sm:$0xff]
        %v1433 = vld [vmem:[%s828 + $0x9] sm:$0x3f]
        %v1434 = vmul.f32 %v1432, %v1164
        %v1435 = vmul.f32 %v1433, %v1164
        %v1436 = vadd.f32 %v1414, %v1434
        %v1437 = vadd.f32 %v1415, %v1435
        %v1438 = vmul.f32 %v1432, %v1169
        %v1439 = vmul.f32 %v1433, %v1169
        %v1440 = vadd.f32 %v1418, %v1438
        %v1441 = vadd.f32 %v1419, %v1439
        %v1442 = vmul.f32 %v1432, %v1174
        %v1443 = vmul.f32 %v1433, %v1174
        %v1444 = vadd.f32 %v1422, %v1442
        %v1445 = vadd.f32 %v1423, %v1443
        %v1446 = vmul.f32 %v1432, %v1179
        %v1447 = vmul.f32 %v1433, %v1179
        %v1448 = vadd.f32 %v1426, %v1446
        %v1449 = vadd.f32 %v1427, %v1447
        %v1450 = vld [vmem:[%s842 + $0x1] sm:$0xff]
        %v1451 = vld [vmem:[%s842 + $0x9] sm:$0x3f]
        %v1452 = vmul.f32 %v1450, %v1169
        %v1453 = vmul.f32 %v1451, %v1169
        %v1454 = vadd.f32 %v1436, %v1452
        %v1455 = vadd.f32 %v1437, %v1453
        %v1456 = vmul.f32 %v1450, %v1174
        %v1457 = vmul.f32 %v1451, %v1174
        %v1458 = vadd.f32 %v1440, %v1456
        %v1459 = vadd.f32 %v1441, %v1457
        %v1460 = vmul.f32 %v1450, %v1179
        %v1461 = vmul.f32 %v1451, %v1179
        %v1462 = vadd.f32 %v1444, %v1460
        %v1463 = vadd.f32 %v1445, %v1461
        %v1464 = vld [vmem:[%s244 + $0x2] sm:$0x1]
        %v1465 = vlaneseq
        %v1466 = vshrl.u32 %v1465, 7
        %v1467 = vsub.s32 0, %v1466
        %v1468 = vrot.slane %v1464, %v1467
        %v1469 = vld [vmem:[%s244 + $0x7] sm:$0x1]
        %v1470 = vlaneseq
        %v1471 = vshrl.u32 %v1470, 7
        %v1472 = vsub.s32 0, %v1471
        %v1473 = vrot.slane %v1469, %v1472
        %v1474 = vld [vmem:[%s244 + $0xc] sm:$0x1]
        %v1475 = vlaneseq
        %v1476 = vshrl.u32 %v1475, 7
        %v1477 = vsub.s32 0, %v1476
        %v1478 = vrot.slane %v1474, %v1477
        %v1479 = vld [vmem:[%s244 + $0x11] sm:$0x1]
        %v1480 = vlaneseq
        %v1481 = vshrl.u32 %v1480, 7
        %v1482 = vsub.s32 0, %v1481
        %v1483 = vrot.slane %v1479, %v1482
        %v1484 = vld [vmem:[%s244 + $0x16] sm:$0x1]
        %v1485 = vlaneseq
        %v1486 = vshrl.u32 %v1485, 7
        %v1487 = vsub.s32 0, %v1486
        %v1488 = vrot.slane %v1484, %v1487
        %v1489 = vld [vmem:[#allocation3 + $0x2] sm:$0xff]
        %v1490 = vld [vmem:[#allocation3 + $0xa] sm:$0x3f]
        %v1491 = vmul.f32 %v1489, %v1468
        %v1492 = vmul.f32 %v1490, %v1468
        %v1493 = vadd.f32 %v1276, %v1491
        %v1494 = vadd.f32 %v1277, %v1492
        %v1495 = vmul.f32 %v1489, %v1473
        %v1496 = vmul.f32 %v1490, %v1473
        %v1497 = vadd.f32 %v1254, %v1495
        %v1498 = vadd.f32 %v1255, %v1496
        %v1499 = vmul.f32 %v1489, %v1478
        %v1500 = vmul.f32 %v1490, %v1478
        %v1501 = vadd.f32 %v1232, %v1499
        %v1502 = vadd.f32 %v1233, %v1500
        %v1503 = vld [vmem:[%s706 + $0x2] sm:$0xff]
        %v1504 = vld [vmem:[%s706 + $0xa] sm:$0x3f]
        %v1505 = vmul.f32 %v1503, %v1468
        %v1506 = vmul.f32 %v1504, %v1468
        %v1507 = vadd.f32 %v1298, %v1505
        %v1508 = vadd.f32 %v1299, %v1506
        %v1509 = vmul.f32 %v1503, %v1473
        %v1510 = vmul.f32 %v1504, %v1473
        %v1511 = vadd.f32 %v1493, %v1509
        %v1512 = vadd.f32 %v1494, %v1510
        %v1513 = vmul.f32 %v1503, %v1478
        %v1514 = vmul.f32 %v1504, %v1478
        %v1515 = vadd.f32 %v1497, %v1513
        %v1516 = vadd.f32 %v1498, %v1514
        %v1517 = vmul.f32 %v1503, %v1483
        %v1518 = vmul.f32 %v1504, %v1483
        %v1519 = vadd.f32 %v1501, %v1517
        %v1520 = vadd.f32 %v1502, %v1518
        %v1521 = vld [vmem:[%s721 + $0x2] sm:$0xff]
        %v1522 = vld [vmem:[%s721 + $0xa] sm:$0x3f]
        %v1523 = vmul.f32 %v1521, %v1468
        %v1524 = vmul.f32 %v1522, %v1468
        %v1525 = vadd.f32 %v1320, %v1523
        %v1526 = vadd.f32 %v1321, %v1524
        %v1527 = vmul.f32 %v1521, %v1473
        %v1528 = vmul.f32 %v1522, %v1473
        %v1529 = vadd.f32 %v1507, %v1527
        %v1530 = vadd.f32 %v1508, %v1528
        %v1531 = vmul.f32 %v1521, %v1478
        %v1532 = vmul.f32 %v1522, %v1478
        %v1533 = vadd.f32 %v1511, %v1531
        %v1534 = vadd.f32 %v1512, %v1532
        %v1535 = vmul.f32 %v1521, %v1483
        %v1536 = vmul.f32 %v1522, %v1483
        %v1537 = vadd.f32 %v1515, %v1535
        %v1538 = vadd.f32 %v1516, %v1536
        %v1539 = vmul.f32 %v1521, %v1488
        %v1540 = vmul.f32 %v1522, %v1488
        %v1541 = vadd.f32 %v1519, %v1539
        %v1542 = vadd.f32 %v1520, %v1540
        %v1543 = vld [vmem:[%s726 + $0x2] sm:$0xff]
        %v1544 = vld [vmem:[%s726 + $0xa] sm:$0x3f]
        %v1545 = vmul.f32 %v1543, %v1468
        %v1546 = vmul.f32 %v1544, %v1468
        %v1547 = vadd.f32 %v1342, %v1545
        %v1548 = vadd.f32 %v1343, %v1546
        %v1549 = vmul.f32 %v1543, %v1473
        %v1550 = vmul.f32 %v1544, %v1473
        %v1551 = vadd.f32 %v1525, %v1549
        %v1552 = vadd.f32 %v1526, %v1550
        %v1553 = vmul.f32 %v1543, %v1478
        %v1554 = vmul.f32 %v1544, %v1478
        %v1555 = vadd.f32 %v1529, %v1553
        %v1556 = vadd.f32 %v1530, %v1554
        %v1557 = vmul.f32 %v1543, %v1483
        %v1558 = vmul.f32 %v1544, %v1483
        %v1559 = vadd.f32 %v1533, %v1557
        %v1560 = vadd.f32 %v1534, %v1558
        %v1561 = vmul.f32 %v1543, %v1488
        %v1562 = vmul.f32 %v1544, %v1488
        %v1563 = vadd.f32 %v1537, %v1561
        %v1564 = vadd.f32 %v1538, %v1562
        %v1565 = vld [vmem:[%s738 + $0x2] sm:$0xff]
        %v1566 = vld [vmem:[%s738 + $0xa] sm:$0x3f]
        %v1567 = vmul.f32 %v1565, %v1468
        %v1568 = vmul.f32 %v1566, %v1468
        %v1569 = vadd.f32 %v1364, %v1567
        %v1570 = vadd.f32 %v1365, %v1568
        %v1571 = vmul.f32 %v1565, %v1473
        %v1572 = vmul.f32 %v1566, %v1473
        %v1573 = vadd.f32 %v1547, %v1571
        %v1574 = vadd.f32 %v1548, %v1572
        %v1575 = vmul.f32 %v1565, %v1478
        %v1576 = vmul.f32 %v1566, %v1478
        %v1577 = vadd.f32 %v1551, %v1575
        %v1578 = vadd.f32 %v1552, %v1576
        %v1579 = vmul.f32 %v1565, %v1483
        %v1580 = vmul.f32 %v1566, %v1483
        %v1581 = vadd.f32 %v1555, %v1579
        %v1582 = vadd.f32 %v1556, %v1580
        %v1583 = vmul.f32 %v1565, %v1488
        %v1584 = vmul.f32 %v1566, %v1488
        %v1585 = vadd.f32 %v1559, %v1583
        %v1586 = vadd.f32 %v1560, %v1584
        %v1587 = vld [vmem:[%s752 + $0x2] sm:$0xff]
        %v1588 = vld [vmem:[%s752 + $0xa] sm:$0x3f]
        %v1589 = vmul.f32 %v1587, %v1468
        %v1590 = vmul.f32 %v1588, %v1468
        %v1591 = vadd.f32 %v1386, %v1589
        %v1592 = vadd.f32 %v1387, %v1590
        %v1593 = vmul.f32 %v1587, %v1473
        %v1594 = vmul.f32 %v1588, %v1473
        %v1595 = vadd.f32 %v1569, %v1593
        %v1596 = vadd.f32 %v1570, %v1594
        %v1597 = vmul.f32 %v1587, %v1478
        %v1598 = vmul.f32 %v1588, %v1478
        %v1599 = vadd.f32 %v1573, %v1597
        %v1600 = vadd.f32 %v1574, %v1598
        %v1601 = vmul.f32 %v1587, %v1483
        %v1602 = vmul.f32 %v1588, %v1483
        %v1603 = vadd.f32 %v1577, %v1601
        %v1604 = vadd.f32 %v1578, %v1602
        %v1605 = vmul.f32 %v1587, %v1488
        %v1606 = vmul.f32 %v1588, %v1488
        %v1607 = vadd.f32 %v1581, %v1605
        %v1608 = vadd.f32 %v1582, %v1606
        %v1609 = vld [vmem:[%s766 + $0x2] sm:$0xff]
        %v1610 = vld [vmem:[%s766 + $0xa] sm:$0x3f]
        %v1611 = vmul.f32 %v1609, %v1468
        %v1612 = vmul.f32 %v1610, %v1468
        %v1613 = vadd.f32 %v1408, %v1611
        %v1614 = vadd.f32 %v1409, %v1612
        %v1615 = vmul.f32 %v1609, %v1473
        %v1616 = vmul.f32 %v1610, %v1473
        %v1617 = vadd.f32 %v1591, %v1615
        %v1618 = vadd.f32 %v1592, %v1616
        %v1619 = vmul.f32 %v1609, %v1478
        %v1620 = vmul.f32 %v1610, %v1478
        %v1621 = vadd.f32 %v1595, %v1619
        %v1622 = vadd.f32 %v1596, %v1620
        %v1623 = vmul.f32 %v1609, %v1483
        %v1624 = vmul.f32 %v1610, %v1483
        %v1625 = vadd.f32 %v1599, %v1623
        %v1626 = vadd.f32 %v1600, %v1624
        %v1627 = vmul.f32 %v1609, %v1488
        %v1628 = vmul.f32 %v1610, %v1488
        %v1629 = vadd.f32 %v1603, %v1627
        %v1630 = vadd.f32 %v1604, %v1628
        %v1631 = vld [vmem:[%s771 + $0x2] sm:$0xff]
        %v1632 = vld [vmem:[%s771 + $0xa] sm:$0x3f]
        %v1633 = vmul.f32 %v1631, %v1468
        %v1634 = vmul.f32 %v1632, %v1468
        %v1635 = vadd.f32 %v1430, %v1633
        %v1636 = vadd.f32 %v1431, %v1634
        %v1637 = vmul.f32 %v1631, %v1473
        %v1638 = vmul.f32 %v1632, %v1473
        %v1639 = vadd.f32 %v1613, %v1637
        %v1640 = vadd.f32 %v1614, %v1638
        %v1641 = vmul.f32 %v1631, %v1478
        %v1642 = vmul.f32 %v1632, %v1478
        %v1643 = vadd.f32 %v1617, %v1641
        %v1644 = vadd.f32 %v1618, %v1642
        %v1645 = vmul.f32 %v1631, %v1483
        %v1646 = vmul.f32 %v1632, %v1483
        %v1647 = vadd.f32 %v1621, %v1645
        %v1648 = vadd.f32 %v1622, %v1646
        %v1649 = vmul.f32 %v1631, %v1488
        %v1650 = vmul.f32 %v1632, %v1488
        %v1651 = vadd.f32 %v1625, %v1649
        %v1652 = vadd.f32 %v1626, %v1650
        %v1653 = vld [vmem:[%s783 + $0x2] sm:$0xff]
        %v1654 = vld [vmem:[%s783 + $0xa] sm:$0x3f]
        %v1655 = vmul.f32 %v1653, %v1468
        %v1656 = vmul.f32 %v1654, %v1468
        %v1657 = vadd.f32 %v1448, %v1655
        %v1658 = vadd.f32 %v1449, %v1656
        %v1659 = vmul.f32 %v1653, %v1473
        %v1660 = vmul.f32 %v1654, %v1473
        %v1661 = vadd.f32 %v1635, %v1659
        %v1662 = vadd.f32 %v1636, %v1660
        %v1663 = vmul.f32 %v1653, %v1478
        %v1664 = vmul.f32 %v1654, %v1478
        %v1665 = vadd.f32 %v1639, %v1663
        %v1666 = vadd.f32 %v1640, %v1664
        %v1667 = vmul.f32 %v1653, %v1483
        %v1668 = vmul.f32 %v1654, %v1483
        %v1669 = vadd.f32 %v1643, %v1667
        %v1670 = vadd.f32 %v1644, %v1668
        %v1671 = vmul.f32 %v1653, %v1488
        %v1672 = vmul.f32 %v1654, %v1488
        %v1673 = vadd.f32 %v1647, %v1671
        %v1674 = vadd.f32 %v1648, %v1672
        %v1675 = vld [vmem:[%s797 + $0x2] sm:$0xff]
        %v1676 = vld [vmem:[%s797 + $0xa] sm:$0x3f]
        %v1677 = vmul.f32 %v1675, %v1468
        %v1678 = vmul.f32 %v1676, %v1468
        %v1679 = vadd.f32 %v1462, %v1677
        %v1680 = vadd.f32 %v1463, %v1678
        %v1681 = vmul.f32 %v1675, %v1473
        %v1682 = vmul.f32 %v1676, %v1473
        %v1683 = vadd.f32 %v1657, %v1681
        %v1684 = vadd.f32 %v1658, %v1682
        %v1685 = vmul.f32 %v1675, %v1478
        %v1686 = vmul.f32 %v1676, %v1478
        %v1687 = vadd.f32 %v1661, %v1685
        %v1688 = vadd.f32 %v1662, %v1686
        %v1689 = vmul.f32 %v1675, %v1483
        %v1690 = vmul.f32 %v1676, %v1483
        %v1691 = vadd.f32 %v1665, %v1689
        %v1692 = vadd.f32 %v1666, %v1690
        %v1693 = vmul.f32 %v1675, %v1488
        %v1694 = vmul.f32 %v1676, %v1488
        %v1695 = vadd.f32 %v1669, %v1693
        %v1696 = vadd.f32 %v1670, %v1694
        %v1697 = vld [vmem:[%s811 + $0x2] sm:$0xff]
        %v1698 = vld [vmem:[%s811 + $0xa] sm:$0x3f]
        %v1699 = vmul.f32 %v1697, %v1468
        %v1700 = vmul.f32 %v1698, %v1468
        %v1701 = vadd.f32 %v1458, %v1699
        %v1702 = vadd.f32 %v1459, %v1700
        %v1703 = vmul.f32 %v1697, %v1473
        %v1704 = vmul.f32 %v1698, %v1473
        %v1705 = vadd.f32 %v1679, %v1703
        %v1706 = vadd.f32 %v1680, %v1704
        %v1707 = vmul.f32 %v1697, %v1478
        %v1708 = vmul.f32 %v1698, %v1478
        %v1709 = vadd.f32 %v1683, %v1707
        %v1710 = vadd.f32 %v1684, %v1708
        %v1711 = vmul.f32 %v1697, %v1483
        %v1712 = vmul.f32 %v1698, %v1483
        %v1713 = vadd.f32 %v1687, %v1711
        %v1714 = vadd.f32 %v1688, %v1712
        %v1715 = vmul.f32 %v1697, %v1488
        %v1716 = vmul.f32 %v1698, %v1488
        %v1717 = vadd.f32 %v1691, %v1715
        %v1718 = vadd.f32 %v1692, %v1716
        %v1719 = vld [vmem:[%s816 + $0x2] sm:$0xff]
        %v1720 = vld [vmem:[%s816 + $0xa] sm:$0x3f]
        %v1721 = vmul.f32 %v1719, %v1468
        %v1722 = vmul.f32 %v1720, %v1468
        %v1723 = vadd.f32 %v1454, %v1721
        %v1724 = vadd.f32 %v1455, %v1722
        %v1725 = vmul.f32 %v1719, %v1473
        %v1726 = vmul.f32 %v1720, %v1473
        %v1727 = vadd.f32 %v1701, %v1725
        %v1728 = vadd.f32 %v1702, %v1726
        %v1729 = vmul.f32 %v1719, %v1478
        %v1730 = vmul.f32 %v1720, %v1478
        %v1731 = vadd.f32 %v1705, %v1729
        %v1732 = vadd.f32 %v1706, %v1730
        %v1733 = vmul.f32 %v1719, %v1483
        %v1734 = vmul.f32 %v1720, %v1483
        %v1735 = vadd.f32 %v1709, %v1733
        %v1736 = vadd.f32 %v1710, %v1734
        %v1737 = vmul.f32 %v1719, %v1488
        %v1738 = vmul.f32 %v1720, %v1488
        %v1739 = vadd.f32 %v1713, %v1737
        %v1740 = vadd.f32 %v1714, %v1738
        %v1741 = vld [vmem:[%s828 + $0x2] sm:$0xff]
        %v1742 = vld [vmem:[%s828 + $0xa] sm:$0x3f]
        %v1743 = vmul.f32 %v1741, %v1473
        %v1744 = vmul.f32 %v1742, %v1473
        %v1745 = vadd.f32 %v1723, %v1743
        %v1746 = vadd.f32 %v1724, %v1744
        %v1747 = vmul.f32 %v1741, %v1478
        %v1748 = vmul.f32 %v1742, %v1478
        %v1749 = vadd.f32 %v1727, %v1747
        %v1750 = vadd.f32 %v1728, %v1748
        %v1751 = vmul.f32 %v1741, %v1483
        %v1752 = vmul.f32 %v1742, %v1483
        %v1753 = vadd.f32 %v1731, %v1751
        %v1754 = vadd.f32 %v1732, %v1752
        %v1755 = vmul.f32 %v1741, %v1488
        %v1756 = vmul.f32 %v1742, %v1488
        %v1757 = vadd.f32 %v1735, %v1755
        %v1758 = vadd.f32 %v1736, %v1756
        %v1759 = vld [vmem:[%s842 + $0x2] sm:$0xff]
        %v1760 = vld [vmem:[%s842 + $0xa] sm:$0x3f]
        %v1761 = vmul.f32 %v1759, %v1478
        %v1762 = vmul.f32 %v1760, %v1478
        %v1763 = vadd.f32 %v1745, %v1761
        %v1764 = vadd.f32 %v1746, %v1762
        %v1765 = vmul.f32 %v1759, %v1483
        %v1766 = vmul.f32 %v1760, %v1483
        %v1767 = vadd.f32 %v1749, %v1765
        %v1768 = vadd.f32 %v1750, %v1766
        %v1769 = vmul.f32 %v1759, %v1488
        %v1770 = vmul.f32 %v1760, %v1488
        %v1771 = vadd.f32 %v1753, %v1769
        %v1772 = vadd.f32 %v1754, %v1770
        %v1773 = vld [vmem:[%s244 + $0x3] sm:$0x1]
        %v1774 = vlaneseq
        %v1775 = vshrl.u32 %v1774, 7
        %v1776 = vsub.s32 0, %v1775
        %v1777 = vrot.slane %v1773, %v1776
        %v1778 = vld [vmem:[%s244 + $0x8] sm:$0x1]
        %v1779 = vlaneseq
        %v1780 = vshrl.u32 %v1779, 7
        %v1781 = vsub.s32 0, %v1780
        %v1782 = vrot.slane %v1778, %v1781
        %v1783 = vld [vmem:[%s244 + $0xd] sm:$0x1]
        %v1784 = vlaneseq
        %v1785 = vshrl.u32 %v1784, 7
        %v1786 = vsub.s32 0, %v1785
        %v1787 = vrot.slane %v1783, %v1786
        %v1788 = vld [vmem:[%s244 + $0x12] sm:$0x1]
        %v1789 = vlaneseq
        %v1790 = vshrl.u32 %v1789, 7
        %v1791 = vsub.s32 0, %v1790
        %v1792 = vrot.slane %v1788, %v1791
        %v1793 = vld [vmem:[%s244 + $0x17] sm:$0x1]
        %v1794 = vlaneseq
        %v1795 = vshrl.u32 %v1794, 7
        %v1796 = vsub.s32 0, %v1795
        %v1797 = vrot.slane %v1793, %v1796
        %v1798 = vld [vmem:[#allocation3 + $0x3] sm:$0xff]
        %v1799 = vld [vmem:[#allocation3 + $0xb] sm:$0x3f]
        %v1800 = vmul.f32 %v1798, %v1777
        %v1801 = vmul.f32 %v1799, %v1777
        %v1802 = vadd.f32 %v1585, %v1800
        %v1803 = vadd.f32 %v1586, %v1801
        %v1804 = vmul.f32 %v1798, %v1782
        %v1805 = vmul.f32 %v1799, %v1782
        %v1806 = vadd.f32 %v1563, %v1804
        %v1807 = vadd.f32 %v1564, %v1805
        %v1808 = vmul.f32 %v1798, %v1787
        %v1809 = vmul.f32 %v1799, %v1787
        %v1810 = vadd.f32 %v1541, %v1808
        %v1811 = vadd.f32 %v1542, %v1809
        %v1812 = vld [vmem:[%s706 + $0x3] sm:$0xff]
        %v1813 = vld [vmem:[%s706 + $0xb] sm:$0x3f]
        %v1814 = vmul.f32 %v1812, %v1777
        %v1815 = vmul.f32 %v1813, %v1777
        %v1816 = vadd.f32 %v1607, %v1814
        %v1817 = vadd.f32 %v1608, %v1815
        %v1818 = vmul.f32 %v1812, %v1782
        %v1819 = vmul.f32 %v1813, %v1782
        %v1820 = vadd.f32 %v1802, %v1818
        %v1821 = vadd.f32 %v1803, %v1819
        %v1822 = vmul.f32 %v1812, %v1787
        %v1823 = vmul.f32 %v1813, %v1787
        %v1824 = vadd.f32 %v1806, %v1822
        %v1825 = vadd.f32 %v1807, %v1823
        %v1826 = vmul.f32 %v1812, %v1792
        %v1827 = vmul.f32 %v1813, %v1792
        %v1828 = vadd.f32 %v1810, %v1826
        %v1829 = vadd.f32 %v1811, %v1827
        %v1830 = vld [vmem:[%s721 + $0x3] sm:$0xff]
        %v1831 = vld [vmem:[%s721 + $0xb] sm:$0x3f]
        %v1832 = vmul.f32 %v1830, %v1777
        %v1833 = vmul.f32 %v1831, %v1777
        %v1834 = vadd.f32 %v1629, %v1832
        %v1835 = vadd.f32 %v1630, %v1833
        %v1836 = vmul.f32 %v1830, %v1782
        %v1837 = vmul.f32 %v1831, %v1782
        %v1838 = vadd.f32 %v1816, %v1836
        %v1839 = vadd.f32 %v1817, %v1837
        %v1840 = vmul.f32 %v1830, %v1787
        %v1841 = vmul.f32 %v1831, %v1787
        %v1842 = vadd.f32 %v1820, %v1840
        %v1843 = vadd.f32 %v1821, %v1841
        %v1844 = vmul.f32 %v1830, %v1792
        %v1845 = vmul.f32 %v1831, %v1792
        %v1846 = vadd.f32 %v1824, %v1844
        %v1847 = vadd.f32 %v1825, %v1845
        %v1848 = vmul.f32 %v1830, %v1797
        %v1849 = vmul.f32 %v1831, %v1797
        %v1850 = vadd.f32 %v1828, %v1848
        %v1851 = vadd.f32 %v1829, %v1849
        %v1852 = vld [vmem:[%s726 + $0x3] sm:$0xff]
        %v1853 = vld [vmem:[%s726 + $0xb] sm:$0x3f]
        %v1854 = vmul.f32 %v1852, %v1777
        %v1855 = vmul.f32 %v1853, %v1777
        %v1856 = vadd.f32 %v1651, %v1854
        %v1857 = vadd.f32 %v1652, %v1855
        %v1858 = vmul.f32 %v1852, %v1782
        %v1859 = vmul.f32 %v1853, %v1782
        %v1860 = vadd.f32 %v1834, %v1858
        %v1861 = vadd.f32 %v1835, %v1859
        %v1862 = vmul.f32 %v1852, %v1787
        %v1863 = vmul.f32 %v1853, %v1787
        %v1864 = vadd.f32 %v1838, %v1862
        %v1865 = vadd.f32 %v1839, %v1863
        %v1866 = vmul.f32 %v1852, %v1792
        %v1867 = vmul.f32 %v1853, %v1792
        %v1868 = vadd.f32 %v1842, %v1866
        %v1869 = vadd.f32 %v1843, %v1867
        %v1870 = vmul.f32 %v1852, %v1797
        %v1871 = vmul.f32 %v1853, %v1797
        %v1872 = vadd.f32 %v1846, %v1870
        %v1873 = vadd.f32 %v1847, %v1871
        %v1874 = vld [vmem:[%s738 + $0x3] sm:$0xff]
        %v1875 = vld [vmem:[%s738 + $0xb] sm:$0x3f]
        %v1876 = vmul.f32 %v1874, %v1777
        %v1877 = vmul.f32 %v1875, %v1777
        %v1878 = vadd.f32 %v1673, %v1876
        %v1879 = vadd.f32 %v1674, %v1877
        %v1880 = vmul.f32 %v1874, %v1782
        %v1881 = vmul.f32 %v1875, %v1782
        %v1882 = vadd.f32 %v1856, %v1880
        %v1883 = vadd.f32 %v1857, %v1881
        %v1884 = vmul.f32 %v1874, %v1787
        %v1885 = vmul.f32 %v1875, %v1787
        %v1886 = vadd.f32 %v1860, %v1884
        %v1887 = vadd.f32 %v1861, %v1885
        %v1888 = vmul.f32 %v1874, %v1792
        %v1889 = vmul.f32 %v1875, %v1792
        %v1890 = vadd.f32 %v1864, %v1888
        %v1891 = vadd.f32 %v1865, %v1889
        %v1892 = vmul.f32 %v1874, %v1797
        %v1893 = vmul.f32 %v1875, %v1797
        %v1894 = vadd.f32 %v1868, %v1892
        %v1895 = vadd.f32 %v1869, %v1893
        %v1896 = vld [vmem:[%s752 + $0x3] sm:$0xff]
        %v1897 = vld [vmem:[%s752 + $0xb] sm:$0x3f]
        %v1898 = vmul.f32 %v1896, %v1777
        %v1899 = vmul.f32 %v1897, %v1777
        %v1900 = vadd.f32 %v1695, %v1898
        %v1901 = vadd.f32 %v1696, %v1899
        %v1902 = vmul.f32 %v1896, %v1782
        %v1903 = vmul.f32 %v1897, %v1782
        %v1904 = vadd.f32 %v1878, %v1902
        %v1905 = vadd.f32 %v1879, %v1903
        %v1906 = vmul.f32 %v1896, %v1787
        %v1907 = vmul.f32 %v1897, %v1787
        %v1908 = vadd.f32 %v1882, %v1906
        %v1909 = vadd.f32 %v1883, %v1907
        %v1910 = vmul.f32 %v1896, %v1792
        %v1911 = vmul.f32 %v1897, %v1792
        %v1912 = vadd.f32 %v1886, %v1910
        %v1913 = vadd.f32 %v1887, %v1911
        %v1914 = vmul.f32 %v1896, %v1797
        %v1915 = vmul.f32 %v1897, %v1797
        %v1916 = vadd.f32 %v1890, %v1914
        %v1917 = vadd.f32 %v1891, %v1915
        %v1918 = vld [vmem:[%s766 + $0x3] sm:$0xff]
        %v1919 = vld [vmem:[%s766 + $0xb] sm:$0x3f]
        %v1920 = vmul.f32 %v1918, %v1777
        %v1921 = vmul.f32 %v1919, %v1777
        %v1922 = vadd.f32 %v1717, %v1920
        %v1923 = vadd.f32 %v1718, %v1921
        %v1924 = vmul.f32 %v1918, %v1782
        %v1925 = vmul.f32 %v1919, %v1782
        %v1926 = vadd.f32 %v1900, %v1924
        %v1927 = vadd.f32 %v1901, %v1925
        %v1928 = vmul.f32 %v1918, %v1787
        %v1929 = vmul.f32 %v1919, %v1787
        %v1930 = vadd.f32 %v1904, %v1928
        %v1931 = vadd.f32 %v1905, %v1929
        %v1932 = vmul.f32 %v1918, %v1792
        %v1933 = vmul.f32 %v1919, %v1792
        %v1934 = vadd.f32 %v1908, %v1932
        %v1935 = vadd.f32 %v1909, %v1933
        %v1936 = vmul.f32 %v1918, %v1797
        %v1937 = vmul.f32 %v1919, %v1797
        %v1938 = vadd.f32 %v1912, %v1936
        %v1939 = vadd.f32 %v1913, %v1937
        %v1940 = vld [vmem:[%s771 + $0x3] sm:$0xff]
        %v1941 = vld [vmem:[%s771 + $0xb] sm:$0x3f]
        %v1942 = vmul.f32 %v1940, %v1777
        %v1943 = vmul.f32 %v1941, %v1777
        %v1944 = vadd.f32 %v1739, %v1942
        %v1945 = vadd.f32 %v1740, %v1943
        %v1946 = vmul.f32 %v1940, %v1782
        %v1947 = vmul.f32 %v1941, %v1782
        %v1948 = vadd.f32 %v1922, %v1946
        %v1949 = vadd.f32 %v1923, %v1947
        %v1950 = vmul.f32 %v1940, %v1787
        %v1951 = vmul.f32 %v1941, %v1787
        %v1952 = vadd.f32 %v1926, %v1950
        %v1953 = vadd.f32 %v1927, %v1951
        %v1954 = vmul.f32 %v1940, %v1792
        %v1955 = vmul.f32 %v1941, %v1792
        %v1956 = vadd.f32 %v1930, %v1954
        %v1957 = vadd.f32 %v1931, %v1955
        %v1958 = vmul.f32 %v1940, %v1797
        %v1959 = vmul.f32 %v1941, %v1797
        %v1960 = vadd.f32 %v1934, %v1958
        %v1961 = vadd.f32 %v1935, %v1959
        %v1962 = vld [vmem:[%s783 + $0x3] sm:$0xff]
        %v1963 = vld [vmem:[%s783 + $0xb] sm:$0x3f]
        %v1964 = vmul.f32 %v1962, %v1777
        %v1965 = vmul.f32 %v1963, %v1777
        %v1966 = vadd.f32 %v1757, %v1964
        %v1967 = vadd.f32 %v1758, %v1965
        %v1968 = vmul.f32 %v1962, %v1782
        %v1969 = vmul.f32 %v1963, %v1782
        %v1970 = vadd.f32 %v1944, %v1968
        %v1971 = vadd.f32 %v1945, %v1969
        %v1972 = vmul.f32 %v1962, %v1787
        %v1973 = vmul.f32 %v1963, %v1787
        %v1974 = vadd.f32 %v1948, %v1972
        %v1975 = vadd.f32 %v1949, %v1973
        %v1976 = vmul.f32 %v1962, %v1792
        %v1977 = vmul.f32 %v1963, %v1792
        %v1978 = vadd.f32 %v1952, %v1976
        %v1979 = vadd.f32 %v1953, %v1977
        %v1980 = vmul.f32 %v1962, %v1797
        %v1981 = vmul.f32 %v1963, %v1797
        %v1982 = vadd.f32 %v1956, %v1980
        %v1983 = vadd.f32 %v1957, %v1981
        %v1984 = vld [vmem:[%s797 + $0x3] sm:$0xff]
        %v1985 = vld [vmem:[%s797 + $0xb] sm:$0x3f]
        %v1986 = vmul.f32 %v1984, %v1777
        %v1987 = vmul.f32 %v1985, %v1777
        %v1988 = vadd.f32 %v1771, %v1986
        %v1989 = vadd.f32 %v1772, %v1987
        %v1990 = vmul.f32 %v1984, %v1782
        %v1991 = vmul.f32 %v1985, %v1782
        %v1992 = vadd.f32 %v1966, %v1990
        %v1993 = vadd.f32 %v1967, %v1991
        %v1994 = vmul.f32 %v1984, %v1787
        %v1995 = vmul.f32 %v1985, %v1787
        %v1996 = vadd.f32 %v1970, %v1994
        %v1997 = vadd.f32 %v1971, %v1995
        %v1998 = vmul.f32 %v1984, %v1792
        %v1999 = vmul.f32 %v1985, %v1792
        %v2000 = vadd.f32 %v1974, %v1998
        %v2001 = vadd.f32 %v1975, %v1999
        %v2002 = vmul.f32 %v1984, %v1797
        %v2003 = vmul.f32 %v1985, %v1797
        %v2004 = vadd.f32 %v1978, %v2002
        %v2005 = vadd.f32 %v1979, %v2003
        %v2006 = vld [vmem:[%s811 + $0x3] sm:$0xff]
        %v2007 = vld [vmem:[%s811 + $0xb] sm:$0x3f]
        %v2008 = vmul.f32 %v2006, %v1777
        %v2009 = vmul.f32 %v2007, %v1777
        %v2010 = vadd.f32 %v1767, %v2008
        %v2011 = vadd.f32 %v1768, %v2009
        %v2012 = vmul.f32 %v2006, %v1782
        %v2013 = vmul.f32 %v2007, %v1782
        %v2014 = vadd.f32 %v1988, %v2012
        %v2015 = vadd.f32 %v1989, %v2013
        %v2016 = vmul.f32 %v2006, %v1787
        %v2017 = vmul.f32 %v2007, %v1787
        %v2018 = vadd.f32 %v1992, %v2016
        %v2019 = vadd.f32 %v1993, %v2017
        %v2020 = vmul.f32 %v2006, %v1792
        %v2021 = vmul.f32 %v2007, %v1792
        %v2022 = vadd.f32 %v1996, %v2020
        %v2023 = vadd.f32 %v1997, %v2021
        %v2024 = vmul.f32 %v2006, %v1797
        %v2025 = vmul.f32 %v2007, %v1797
        %v2026 = vadd.f32 %v2000, %v2024
        %v2027 = vadd.f32 %v2001, %v2025
        %v2028 = vld [vmem:[%s816 + $0x3] sm:$0xff]
        %v2029 = vld [vmem:[%s816 + $0xb] sm:$0x3f]
        %v2030 = vmul.f32 %v2028, %v1777
        %v2031 = vmul.f32 %v2029, %v1777
        %v2032 = vadd.f32 %v1763, %v2030
        %v2033 = vadd.f32 %v1764, %v2031
        %v2034 = vmul.f32 %v2028, %v1782
        %v2035 = vmul.f32 %v2029, %v1782
        %v2036 = vadd.f32 %v2010, %v2034
        %v2037 = vadd.f32 %v2011, %v2035
        %v2038 = vmul.f32 %v2028, %v1787
        %v2039 = vmul.f32 %v2029, %v1787
        %v2040 = vadd.f32 %v2014, %v2038
        %v2041 = vadd.f32 %v2015, %v2039
        %v2042 = vmul.f32 %v2028, %v1792
        %v2043 = vmul.f32 %v2029, %v1792
        %v2044 = vadd.f32 %v2018, %v2042
        %v2045 = vadd.f32 %v2019, %v2043
        %v2046 = vmul.f32 %v2028, %v1797
        %v2047 = vmul.f32 %v2029, %v1797
        %v2048 = vadd.f32 %v2022, %v2046
        %v2049 = vadd.f32 %v2023, %v2047
        %v2050 = vld [vmem:[%s828 + $0x3] sm:$0xff]
        %v2051 = vld [vmem:[%s828 + $0xb] sm:$0x3f]
        %v2052 = vmul.f32 %v2050, %v1782
        %v2053 = vmul.f32 %v2051, %v1782
        %v2054 = vadd.f32 %v2032, %v2052
        %v2055 = vadd.f32 %v2033, %v2053
        %v2056 = vmul.f32 %v2050, %v1787
        %v2057 = vmul.f32 %v2051, %v1787
        %v2058 = vadd.f32 %v2036, %v2056
        %v2059 = vadd.f32 %v2037, %v2057
        %v2060 = vmul.f32 %v2050, %v1792
        %v2061 = vmul.f32 %v2051, %v1792
        %v2062 = vadd.f32 %v2040, %v2060
        %v2063 = vadd.f32 %v2041, %v2061
        %v2064 = vmul.f32 %v2050, %v1797
        %v2065 = vmul.f32 %v2051, %v1797
        %v2066 = vadd.f32 %v2044, %v2064
        %v2067 = vadd.f32 %v2045, %v2065
        %v2068 = vld [vmem:[%s842 + $0x3] sm:$0xff]
        %v2069 = vld [vmem:[%s842 + $0xb] sm:$0x3f]
        %v2070 = vmul.f32 %v2068, %v1787
        %v2071 = vmul.f32 %v2069, %v1787
        %v2072 = vadd.f32 %v2054, %v2070
        %v2073 = vadd.f32 %v2055, %v2071
        %v2074 = vmul.f32 %v2068, %v1792
        %v2075 = vmul.f32 %v2069, %v1792
        %v2076 = vadd.f32 %v2058, %v2074
        %v2077 = vadd.f32 %v2059, %v2075
        %v2078 = vmul.f32 %v2068, %v1797
        %v2079 = vmul.f32 %v2069, %v1797
        %v2080 = vadd.f32 %v2062, %v2078
        %v2081 = vadd.f32 %v2063, %v2079
        %v2082 = vld [vmem:[%s244 + $0x4] sm:$0x1]
        %v2083 = vlaneseq
        %v2084 = vshrl.u32 %v2083, 7
        %v2085 = vsub.s32 0, %v2084
        %v2086 = vrot.slane %v2082, %v2085
        %v2087 = vld [vmem:[%s244 + $0x9] sm:$0x1]
        %v2088 = vlaneseq
        %v2089 = vshrl.u32 %v2088, 7
        %v2090 = vsub.s32 0, %v2089
        %v2091 = vrot.slane %v2087, %v2090
        %v2092 = vld [vmem:[%s244 + $0xe] sm:$0x1]
        %v2093 = vlaneseq
        %v2094 = vshrl.u32 %v2093, 7
        %v2095 = vsub.s32 0, %v2094
        %v2096 = vrot.slane %v2092, %v2095
        %v2097 = vld [vmem:[%s244 + $0x13] sm:$0x1]
        %v2098 = vlaneseq
        %v2099 = vshrl.u32 %v2098, 7
        %v2100 = vsub.s32 0, %v2099
        %v2101 = vrot.slane %v2097, %v2100
        %v2102 = vld [vmem:[%s244 + $0x18] sm:$0x1]
        %v2103 = vlaneseq
        %v2104 = vshrl.u32 %v2103, 7
        %v2105 = vsub.s32 0, %v2104
        %v2106 = vrot.slane %v2102, %v2105
        %v2107 = vld [vmem:[#allocation3 + $0x4] sm:$0xff]
        %v2108 = vld [vmem:[#allocation3 + $0xc] sm:$0x3f]
        %v2109 = vmul.f32 %v2107, %v2086
        %v2110 = vmul.f32 %v2108, %v2086
        %v2111 = vadd.f32 %v1894, %v2109
        %v2112 = vadd.f32 %v1895, %v2110
        %v2113 = vmul.f32 %v2107, %v2091
        %v2114 = vmul.f32 %v2108, %v2091
        %v2115 = vadd.f32 %v1872, %v2113
        %v2116 = vadd.f32 %v1873, %v2114
        %v2117 = vmul.f32 %v2107, %v2096
        %v2118 = vmul.f32 %v2108, %v2096
        %v2119 = vadd.f32 %v1850, %v2117
        %v2120 = vadd.f32 %v1851, %v2118
        %v2121 = vld [vmem:[%s706 + $0x4] sm:$0xff]
        %v2122 = vld [vmem:[%s706 + $0xc] sm:$0x3f]
        %v2123 = vmul.f32 %v2121, %v2086
        %v2124 = vmul.f32 %v2122, %v2086
        %v2125 = vadd.f32 %v1916, %v2123
        %v2126 = vadd.f32 %v1917, %v2124
        %v2127 = vmul.f32 %v2121, %v2091
        %v2128 = vmul.f32 %v2122, %v2091
        %v2129 = vadd.f32 %v2111, %v2127
        %v2130 = vadd.f32 %v2112, %v2128
        %v2131 = vmul.f32 %v2121, %v2096
        %v2132 = vmul.f32 %v2122, %v2096
        %v2133 = vadd.f32 %v2115, %v2131
        %v2134 = vadd.f32 %v2116, %v2132
        %v2135 = vmul.f32 %v2121, %v2101
        %v2136 = vmul.f32 %v2122, %v2101
        %v2137 = vadd.f32 %v2119, %v2135
        %v2138 = vadd.f32 %v2120, %v2136
        %v2139 = vld [vmem:[%s721 + $0x4] sm:$0xff]
        %v2140 = vld [vmem:[%s721 + $0xc] sm:$0x3f]
        %v2141 = vmul.f32 %v2139, %v2086
        %v2142 = vmul.f32 %v2140, %v2086
        %v2143 = vadd.f32 %v1938, %v2141
        %v2144 = vadd.f32 %v1939, %v2142
        %v2145 = vmul.f32 %v2139, %v2091
        %v2146 = vmul.f32 %v2140, %v2091
        %v2147 = vadd.f32 %v2125, %v2145
        %v2148 = vadd.f32 %v2126, %v2146
        %v2149 = vmul.f32 %v2139, %v2096
        %v2150 = vmul.f32 %v2140, %v2096
        %v2151 = vadd.f32 %v2129, %v2149
        %v2152 = vadd.f32 %v2130, %v2150
        %v2153 = vmul.f32 %v2139, %v2101
        %v2154 = vmul.f32 %v2140, %v2101
        %v2155 = vadd.f32 %v2133, %v2153
        %v2156 = vadd.f32 %v2134, %v2154
        %v2157 = vmul.f32 %v2139, %v2106
        %v2158 = vmul.f32 %v2140, %v2106
        %v2159 = vadd.f32 %v2137, %v2157
        %v2160 = vadd.f32 %v2138, %v2158
        %v2161 = vld [vmem:[%s726 + $0x4] sm:$0xff]
        %v2162 = vld [vmem:[%s726 + $0xc] sm:$0x3f]
        %v2163 = vmul.f32 %v2161, %v2086
        %v2164 = vmul.f32 %v2162, %v2086
        %v2165 = vadd.f32 %v1960, %v2163
        %v2166 = vadd.f32 %v1961, %v2164
        %v2167 = vmul.f32 %v2161, %v2091
        %v2168 = vmul.f32 %v2162, %v2091
        %v2169 = vadd.f32 %v2143, %v2167
        %v2170 = vadd.f32 %v2144, %v2168
        %v2171 = vmul.f32 %v2161, %v2096
        %v2172 = vmul.f32 %v2162, %v2096
        %v2173 = vadd.f32 %v2147, %v2171
        %v2174 = vadd.f32 %v2148, %v2172
        %v2175 = vmul.f32 %v2161, %v2101
        %v2176 = vmul.f32 %v2162, %v2101
        %v2177 = vadd.f32 %v2151, %v2175
        %v2178 = vadd.f32 %v2152, %v2176
        %v2179 = vmul.f32 %v2161, %v2106
        %v2180 = vmul.f32 %v2162, %v2106
        %v2181 = vadd.f32 %v2155, %v2179
        %v2182 = vadd.f32 %v2156, %v2180
        %v2183 = vld [vmem:[%s738 + $0x4] sm:$0xff]
        %v2184 = vld [vmem:[%s738 + $0xc] sm:$0x3f]
        %v2185 = vmul.f32 %v2183, %v2086
        %v2186 = vmul.f32 %v2184, %v2086
        %v2187 = vadd.f32 %v1982, %v2185
        %v2188 = vadd.f32 %v1983, %v2186
        %v2189 = vmul.f32 %v2183, %v2091
        %v2190 = vmul.f32 %v2184, %v2091
        %v2191 = vadd.f32 %v2165, %v2189
        %v2192 = vadd.f32 %v2166, %v2190
        %v2193 = vmul.f32 %v2183, %v2096
        %v2194 = vmul.f32 %v2184, %v2096
        %v2195 = vadd.f32 %v2169, %v2193
        %v2196 = vadd.f32 %v2170, %v2194
        %v2197 = vmul.f32 %v2183, %v2101
        %v2198 = vmul.f32 %v2184, %v2101
        %v2199 = vadd.f32 %v2173, %v2197
        %v2200 = vadd.f32 %v2174, %v2198
        %v2201 = vmul.f32 %v2183, %v2106
        %v2202 = vmul.f32 %v2184, %v2106
        %v2203 = vadd.f32 %v2177, %v2201
        %v2204 = vadd.f32 %v2178, %v2202
        %v2205 = vld [vmem:[%s752 + $0x4] sm:$0xff]
        %v2206 = vld [vmem:[%s752 + $0xc] sm:$0x3f]
        %v2207 = vmul.f32 %v2205, %v2086
        %v2208 = vmul.f32 %v2206, %v2086
        %v2209 = vadd.f32 %v2004, %v2207
        %v2210 = vadd.f32 %v2005, %v2208
        %v2211 = vmul.f32 %v2205, %v2091
        %v2212 = vmul.f32 %v2206, %v2091
        %v2213 = vadd.f32 %v2187, %v2211
        %v2214 = vadd.f32 %v2188, %v2212
        %v2215 = vmul.f32 %v2205, %v2096
        %v2216 = vmul.f32 %v2206, %v2096
        %v2217 = vadd.f32 %v2191, %v2215
        %v2218 = vadd.f32 %v2192, %v2216
        %v2219 = vmul.f32 %v2205, %v2101
        %v2220 = vmul.f32 %v2206, %v2101
        %v2221 = vadd.f32 %v2195, %v2219
        %v2222 = vadd.f32 %v2196, %v2220
        %v2223 = vmul.f32 %v2205, %v2106
        %v2224 = vmul.f32 %v2206, %v2106
        %v2225 = vadd.f32 %v2199, %v2223
        %v2226 = vadd.f32 %v2200, %v2224
        %v2227 = vld [vmem:[%s766 + $0x4] sm:$0xff]
        %v2228 = vld [vmem:[%s766 + $0xc] sm:$0x3f]
        %v2229 = vmul.f32 %v2227, %v2086
        %v2230 = vmul.f32 %v2228, %v2086
        %v2231 = vadd.f32 %v2026, %v2229
        %v2232 = vadd.f32 %v2027, %v2230
        %v2233 = vmul.f32 %v2227, %v2091
        %v2234 = vmul.f32 %v2228, %v2091
        %v2235 = vadd.f32 %v2209, %v2233
        %v2236 = vadd.f32 %v2210, %v2234
        %v2237 = vmul.f32 %v2227, %v2096
        %v2238 = vmul.f32 %v2228, %v2096
        %v2239 = vadd.f32 %v2213, %v2237
        %v2240 = vadd.f32 %v2214, %v2238
        %v2241 = vmul.f32 %v2227, %v2101
        %v2242 = vmul.f32 %v2228, %v2101
        %v2243 = vadd.f32 %v2217, %v2241
        %v2244 = vadd.f32 %v2218, %v2242
        %v2245 = vmul.f32 %v2227, %v2106
        %v2246 = vmul.f32 %v2228, %v2106
        %v2247 = vadd.f32 %v2221, %v2245
        %v2248 = vadd.f32 %v2222, %v2246
        %v2249 = vld [vmem:[%s771 + $0x4] sm:$0xff]
        %v2250 = vld [vmem:[%s771 + $0xc] sm:$0x3f]
        %v2251 = vmul.f32 %v2249, %v2086
        %v2252 = vmul.f32 %v2250, %v2086
        %v2253 = vadd.f32 %v2048, %v2251
        %v2254 = vadd.f32 %v2049, %v2252
        %v2255 = vmul.f32 %v2249, %v2091
        %v2256 = vmul.f32 %v2250, %v2091
        %v2257 = vadd.f32 %v2231, %v2255
        %v2258 = vadd.f32 %v2232, %v2256
        %v2259 = vmul.f32 %v2249, %v2096
        %v2260 = vmul.f32 %v2250, %v2096
        %v2261 = vadd.f32 %v2235, %v2259
        %v2262 = vadd.f32 %v2236, %v2260
        %v2263 = vmul.f32 %v2249, %v2101
        %v2264 = vmul.f32 %v2250, %v2101
        %v2265 = vadd.f32 %v2239, %v2263
        %v2266 = vadd.f32 %v2240, %v2264
        %v2267 = vmul.f32 %v2249, %v2106
        %v2268 = vmul.f32 %v2250, %v2106
        %v2269 = vadd.f32 %v2243, %v2267
        %v2270 = vadd.f32 %v2244, %v2268
        %v2271 = vld [vmem:[%s783 + $0x4] sm:$0xff]
        %v2272 = vld [vmem:[%s783 + $0xc] sm:$0x3f]
        %v2273 = vmul.f32 %v2271, %v2086
        %v2274 = vmul.f32 %v2272, %v2086
        %v2275 = vadd.f32 %v2066, %v2273
        %v2276 = vadd.f32 %v2067, %v2274
        %v2277 = vmul.f32 %v2271, %v2091
        %v2278 = vmul.f32 %v2272, %v2091
        %v2279 = vadd.f32 %v2253, %v2277
        %v2280 = vadd.f32 %v2254, %v2278
        %v2281 = vmul.f32 %v2271, %v2096
        %v2282 = vmul.f32 %v2272, %v2096
        %v2283 = vadd.f32 %v2257, %v2281
        %v2284 = vadd.f32 %v2258, %v2282
        %v2285 = vmul.f32 %v2271, %v2101
        %v2286 = vmul.f32 %v2272, %v2101
        %v2287 = vadd.f32 %v2261, %v2285
        %v2288 = vadd.f32 %v2262, %v2286
        %v2289 = vmul.f32 %v2271, %v2106
        %v2290 = vmul.f32 %v2272, %v2106
        %v2291 = vadd.f32 %v2265, %v2289
        %v2292 = vadd.f32 %v2266, %v2290
        %v2293 = vld [vmem:[%s797 + $0x4] sm:$0xff]
        %v2294 = vld [vmem:[%s797 + $0xc] sm:$0x3f]
        %v2295 = vmul.f32 %v2293, %v2086
        %v2296 = vmul.f32 %v2294, %v2086
        %v2297 = vadd.f32 %v2080, %v2295
        %v2298 = vadd.f32 %v2081, %v2296
        %v2299 = vmul.f32 %v2293, %v2091
        %v2300 = vmul.f32 %v2294, %v2091
        %v2301 = vadd.f32 %v2275, %v2299
        %v2302 = vadd.f32 %v2276, %v2300
        %v2303 = vmul.f32 %v2293, %v2096
        %v2304 = vmul.f32 %v2294, %v2096
        %v2305 = vadd.f32 %v2279, %v2303
        %v2306 = vadd.f32 %v2280, %v2304
        %v2307 = vmul.f32 %v2293, %v2101
        %v2308 = vmul.f32 %v2294, %v2101
        %v2309 = vadd.f32 %v2283, %v2307
        %v2310 = vadd.f32 %v2284, %v2308
        %v2311 = vmul.f32 %v2293, %v2106
        %v2312 = vmul.f32 %v2294, %v2106
        %v2313 = vadd.f32 %v2287, %v2311
        %v2314 = vadd.f32 %v2288, %v2312
        %v2315 = vld [vmem:[%s811 + $0x4] sm:$0xff]
        %v2316 = vld [vmem:[%s811 + $0xc] sm:$0x3f]
        %v2317 = vmul.f32 %v2315, %v2086
        %v2318 = vmul.f32 %v2316, %v2086
        %v2319 = vadd.f32 %v2076, %v2317
        %v2320 = vadd.f32 %v2077, %v2318
        %v2321 = vmul.f32 %v2315, %v2091
        %v2322 = vmul.f32 %v2316, %v2091
        %v2323 = vadd.f32 %v2297, %v2321
        %v2324 = vadd.f32 %v2298, %v2322
        %v2325 = vmul.f32 %v2315, %v2096
        %v2326 = vmul.f32 %v2316, %v2096
        %v2327 = vadd.f32 %v2301, %v2325
        %v2328 = vadd.f32 %v2302, %v2326
        %v2329 = vmul.f32 %v2315, %v2101
        %v2330 = vmul.f32 %v2316, %v2101
        %v2331 = vadd.f32 %v2305, %v2329
        %v2332 = vadd.f32 %v2306, %v2330
        %v2333 = vmul.f32 %v2315, %v2106
        %v2334 = vmul.f32 %v2316, %v2106
        %v2335 = vadd.f32 %v2309, %v2333
        %v2336 = vadd.f32 %v2310, %v2334
        %v2337 = vld [vmem:[%s816 + $0x4] sm:$0xff]
        %v2338 = vld [vmem:[%s816 + $0xc] sm:$0x3f]
        %v2339 = vmul.f32 %v2337, %v2086
        %v2340 = vmul.f32 %v2338, %v2086
        %v2341 = vadd.f32 %v2072, %v2339
        %v2342 = vadd.f32 %v2073, %v2340
        %v2343 = vmul.f32 %v2337, %v2091
        %v2344 = vmul.f32 %v2338, %v2091
        %v2345 = vadd.f32 %v2319, %v2343
        %v2346 = vadd.f32 %v2320, %v2344
        %v2347 = vmul.f32 %v2337, %v2096
        %v2348 = vmul.f32 %v2338, %v2096
        %v2349 = vadd.f32 %v2323, %v2347
        %v2350 = vadd.f32 %v2324, %v2348
        %v2351 = vmul.f32 %v2337, %v2101
        %v2352 = vmul.f32 %v2338, %v2101
        %v2353 = vadd.f32 %v2327, %v2351
        %v2354 = vadd.f32 %v2328, %v2352
        %v2355 = vmul.f32 %v2337, %v2106
        %v2356 = vmul.f32 %v2338, %v2106
        %v2357 = vadd.f32 %v2331, %v2355
        %v2358 = vadd.f32 %v2332, %v2356
        %v2359 = vld [vmem:[%s828 + $0x4] sm:$0xff]
        %v2360 = vld [vmem:[%s828 + $0xc] sm:$0x3f]
        %v2361 = vmul.f32 %v2359, %v2091
        %v2362 = vmul.f32 %v2360, %v2091
        %v2363 = vadd.f32 %v2341, %v2361
        %v2364 = vadd.f32 %v2342, %v2362
        %v2365 = vmul.f32 %v2359, %v2096
        %v2366 = vmul.f32 %v2360, %v2096
        %v2367 = vadd.f32 %v2345, %v2365
        %v2368 = vadd.f32 %v2346, %v2366
        %v2369 = vmul.f32 %v2359, %v2101
        %v2370 = vmul.f32 %v2360, %v2101
        %v2371 = vadd.f32 %v2349, %v2369
        %v2372 = vadd.f32 %v2350, %v2370
        %v2373 = vmul.f32 %v2359, %v2106
        %v2374 = vmul.f32 %v2360, %v2106
        %v2375 = vadd.f32 %v2353, %v2373
        %v2376 = vadd.f32 %v2354, %v2374
        %v2377 = vld [vmem:[%s842 + $0x4] sm:$0xff]
        %v2378 = vld [vmem:[%s842 + $0xc] sm:$0x3f]
        %v2379 = vmul.f32 %v2377, %v2096
        %v2380 = vmul.f32 %v2378, %v2096
        %v2381 = vadd.f32 %v2363, %v2379
        %v2382 = vadd.f32 %v2364, %v2380
        %v2383 = vmul.f32 %v2377, %v2101
        %v2384 = vmul.f32 %v2378, %v2101
        %v2385 = vadd.f32 %v2367, %v2383
        %v2386 = vadd.f32 %v2368, %v2384
        %v2387 = vmul.f32 %v2377, %v2106
        %v2388 = vmul.f32 %v2378, %v2106
        %v2389 = vadd.f32 %v2371, %v2387
        %v2390 = vadd.f32 %v2372, %v2388
        %2391 = vst [vmem:[#allocation4] sm:$0xff] %v2159
        %2392 = vst [vmem:[#allocation4 + $0x8] sm:$0x3f] %v2160
        %2393 = vst [vmem:[#allocation4 + $0xe] sm:$0xff] %v2181
        %2394 = vst [vmem:[#allocation4 + $0x16] sm:$0x3f] %v2182
        %2395 = vst [vmem:[#allocation4 + $0x1c] sm:$0xff] %v2203
        %2396 = vst [vmem:[#allocation4 + $0x24] sm:$0x3f] %v2204
        %2397 = vst [vmem:[#allocation4 + $0x2a] sm:$0xff] %v2225
        %2398 = vst [vmem:[#allocation4 + $0x32] sm:$0x3f] %v2226
        %2399 = vst [vmem:[#allocation4 + $0x38] sm:$0xff] %v2247
        %2400 = vst [vmem:[#allocation4 + $0x40] sm:$0x3f] %v2248
        %2401 = vst [vmem:[#allocation4 + $0x46] sm:$0xff] %v2269
        %2402 = vst [vmem:[#allocation4 + $0x4e] sm:$0x3f] %v2270
        %2403 = vst [vmem:[#allocation4 + $0x54] sm:$0xff] %v2291
        %2404 = vst [vmem:[#allocation4 + $0x5c] sm:$0x3f] %v2292
        %2405 = vst [vmem:[#allocation4 + $0x62] sm:$0xff] %v2313
        %2406 = vst [vmem:[#allocation4 + $0x6a] sm:$0x3f] %v2314
        %2407 = vst [vmem:[#allocation4 + $0x70] sm:$0xff] %v2335
        %2408 = vst [vmem:[#allocation4 + $0x78] sm:$0x3f] %v2336
        %2409 = vst [vmem:[#allocation4 + $0x7e] sm:$0xff] %v2357
        %2410 = vst [vmem:[#allocation4 + $0x86] sm:$0x3f] %v2358
        %2411 = vst [vmem:[#allocation4 + $0x8c] sm:$0xff] %v2375
        %2412 = vst [vmem:[#allocation4 + $0x94] sm:$0x3f] %v2376
        %2413 = vst [vmem:[#allocation4 + $0x9a] sm:$0xff] %v2389
        %2414 = vst [vmem:[#allocation4 + $0xa2] sm:$0x3f] %v2390
        %2415 = vst [vmem:[#allocation4 + $0xa8] sm:$0xff] %v2385
        %2416 = vst [vmem:[#allocation4 + $0xb0] sm:$0x3f] %v2386
        %2417 = vst [vmem:[#allocation4 + $0xb6] sm:$0xff] %v2381
        %2418 = vst [vmem:[#allocation4 + $0xbe] sm:$0x3f] %v2382
        %v2419 = vld [vmem:[#allocation4] sm:$0xff]
        %v2420 = vld [vmem:[#allocation4 + $0x8] sm:$0xff]
        %v2421 = vld [vmem:[#allocation4 + $0x10] sm:$0xff]
        %v2422 = vld [vmem:[#allocation4 + $0x18] sm:$0xff]
        %v2423 = vld [vmem:[#allocation4 + $0x20] sm:$0xff]
        %v2424 = vld [vmem:[#allocation4 + $0x28] sm:$0xff]
        %v2425 = vld [vmem:[#allocation4 + $0x30] sm:$0xff]
        %v2426 = vld [vmem:[#allocation4 + $0x38] sm:$0xff]
        %v2427 = vld [vmem:[#allocation4 + $0x40] sm:$0xff]
        %v2428 = vld [vmem:[#allocation4 + $0x48] sm:$0xff]
        %v2429 = vld [vmem:[#allocation4 + $0x50] sm:$0xff]
        %v2430 = vld [vmem:[#allocation4 + $0x58] sm:$0xff]
        %v2431 = vld [vmem:[#allocation4 + $0x60] sm:$0xff]
        %v2432 = vld [vmem:[#allocation4 + $0x68] sm:$0xff]
        %v2433 = vld [vmem:[#allocation4 + $0x70] sm:$0xff]
        %v2434 = vld [vmem:[#allocation4 + $0x78] sm:$0xff]
        %v2435 = vld [vmem:[#allocation4 + $0x80] sm:$0xff]
        %v2436 = vld [vmem:[#allocation4 + $0x88] sm:$0xff]
        %v2437 = vld [vmem:[#allocation4 + $0x90] sm:$0xff]
        %v2438 = vld [vmem:[#allocation4 + $0x98] sm:$0xff]
        %v2439 = vld [vmem:[#allocation4 + $0xa0] sm:$0xff]
        %v2440 = vld [vmem:[#allocation4 + $0xa8] sm:$0xff]
        %v2441 = vld [vmem:[#allocation4 + $0xb0] sm:$0xff]
        %v2442 = vld [vmem:[#allocation4 + $0xb8] sm:$0xff]
        %v2443 = vld [vmem:[#allocation4 + $0xc0] sm:$0xff]
        %v2444 = vld [vmem:[#allocation4 + $0xc8] sm:$0xff]
        %v2445 = vld [vmem:[#allocation4 + $0xd0] sm:$0xff]
        %v2446 = vld [vmem:[#allocation4 + $0xd8] sm:$0xff]
        %v2447 = vld [vmem:[#allocation4 + $0xe0] sm:$0xff]
        %v2448 = vld [vmem:[#allocation4 + $0xe8] sm:$0xff]
        %v2449 = vld [vmem:[#allocation4 + $0xf0] sm:$0xff]
        %v2450 = vld [vmem:[#allocation4 + $0xf8] sm:$0xff]
        %2451 = vxpose.xlu0.b32.start [1/16] %v2419, 128
        %2452 = vxpose.xlu0.b32.cont [2/16] %v2420, 128
        %2453 = vxpose.xlu0.b32.cont [3/16] %v2421, 128
        %2454 = vxpose.xlu0.b32.cont [4/16] %v2422, 128
        %2455 = vxpose.xlu0.b32.cont [5/16] %v2423, 128
        %2456 = vxpose.xlu0.b32.cont [6/16] %v2424, 128
        %2457 = vxpose.xlu0.b32.cont [7/16] %v2425, 128
        %2458 = vxpose.xlu0.b32.cont [8/16] %v2426, 128
        %2459 = vxpose.xlu0.b32.cont [9/16] %v2427, 128
        %2460 = vxpose.xlu0.b32.cont [10/16] %v2428, 128
        %2461 = vxpose.xlu0.b32.cont [11/16] %v2429, 128
        %2462 = vxpose.xlu0.b32.cont [12/16] %v2430, 128
        %2463 = vxpose.xlu0.b32.cont [13/16] %v2431, 128
        %2464 = vxpose.xlu0.b32.cont [14/16] %v2432, 128
        %2465 = vxpose.xlu0.b32.cont [15/16] %v2433, 128
        %2466 = vxpose.xlu0.b32.end [16/16] %v2434, 128
        %v2467 = vpop.trf.xlu0
        %v2468 = vpop.trf.xlu0
        %v2469 = vpop.trf.xlu0
        %v2470 = vpop.trf.xlu0
        %v2471 = vpop.trf.xlu0
        %v2472 = vpop.trf.xlu0
        %v2473 = vpop.trf.xlu0
        %v2474 = vpop.trf.xlu0
        %v2475 = vpop.trf.xlu0
        %v2476 = vpop.trf.xlu0
        %v2477 = vpop.trf.xlu0
        %v2478 = vpop.trf.xlu0
        %v2479 = vpop.trf.xlu0
        %v2480 = vpop.trf.xlu0
        %v2481 = vpop.trf.xlu0
        %v2482 = vpop.trf.xlu0
        %2483 = vxpose.xlu0.b32.start [1/16] %v2435, 128
        %2484 = vxpose.xlu0.b32.cont [2/16] %v2436, 128
        %2485 = vxpose.xlu0.b32.cont [3/16] %v2437, 128
        %2486 = vxpose.xlu0.b32.cont [4/16] %v2438, 128
        %2487 = vxpose.xlu0.b32.cont [5/16] %v2439, 128
        %2488 = vxpose.xlu0.b32.cont [6/16] %v2440, 128
        %2489 = vxpose.xlu0.b32.cont [7/16] %v2441, 128
        %2490 = vxpose.xlu0.b32.cont [8/16] %v2442, 128
        %2491 = vxpose.xlu0.b32.cont [9/16] %v2443, 128
        %2492 = vxpose.xlu0.b32.cont [10/16] %v2444, 128
        %2493 = vxpose.xlu0.b32.cont [11/16] %v2445, 128
        %2494 = vxpose.xlu0.b32.cont [12/16] %v2446, 128
        %2495 = vxpose.xlu0.b32.cont [13/16] %v2447, 128
        %2496 = vxpose.xlu0.b32.cont [14/16] %v2448, 128
        %2497 = vxpose.xlu0.b32.cont [15/16] %v2449, 128
        %2498 = vxpose.xlu0.b32.end [16/16] %v2450, 128
        %v2499 = vpop.trf.xlu0
        %v2500 = vpop.trf.xlu0
        %v2501 = vpop.trf.xlu0
        %v2502 = vpop.trf.xlu0
        %v2503 = vpop.trf.xlu0
        %v2504 = vpop.trf.xlu0
        %v2505 = vpop.trf.xlu0
        %v2506 = vpop.trf.xlu0
        %v2507 = vpop.trf.xlu0
        %v2508 = vpop.trf.xlu0
        %v2509 = vpop.trf.xlu0
        %v2510 = vpop.trf.xlu0
        %v2511 = vpop.trf.xlu0
        %v2512 = vpop.trf.xlu0
        %v2513 = vpop.trf.xlu0
        %v2514 = vpop.trf.xlu0
        %2515 = vst [vmem:[%s298] sm:$0xff] %v2467
        %2516 = vst.msk [vmem:[%s298 + $0x8] sm:$0xff] %vm350, %v2499
        %2517 = vst [vmem:[%s298 + $0x10] sm:$0xff] %v2468
        %2518 = vst.msk [vmem:[%s298 + $0x18] sm:$0xff] %vm350, %v2500
        %2519 = vst [vmem:[%s298 + $0x20] sm:$0xff] %v2469
        %2520 = vst.msk [vmem:[%s298 + $0x28] sm:$0xff] %vm350, %v2501
        %2521 = vst [vmem:[%s298 + $0x30] sm:$0xff] %v2470
        %2522 = vst.msk [vmem:[%s298 + $0x38] sm:$0xff] %vm350, %v2502
        %2523 = vst [vmem:[%s298 + $0x40] sm:$0xff] %v2471
        %2524 = vst.msk [vmem:[%s298 + $0x48] sm:$0xff] %vm350, %v2503
        %2525 = vst [vmem:[%s298 + $0x50] sm:$0xff] %v2472
        %2526 = vst.msk [vmem:[%s298 + $0x58] sm:$0xff] %vm350, %v2504
        %2527 = vst [vmem:[%s298 + $0x60] sm:$0xff] %v2473
        %2528 = vst.msk [vmem:[%s298 + $0x68] sm:$0xff] %vm350, %v2505
        %2529 = vst [vmem:[%s298 + $0x70] sm:$0xff] %v2474
        %2530 = vst.msk [vmem:[%s298 + $0x78] sm:$0xff] %vm350, %v2506
        %2531 = vst [vmem:[%s298 + $0x80] sm:$0xff] %v2475
        %2532 = vst.msk [vmem:[%s298 + $0x88] sm:$0xff] %vm350, %v2507
        %2533 = vst [vmem:[%s298 + $0x90] sm:$0xff] %v2476
        %2534 = vst.msk [vmem:[%s298 + $0x98] sm:$0xff] %vm350, %v2508
        %2535 = vst [vmem:[%s298 + $0xa0] sm:$0xff] %v2477
        %2536 = vst.msk [vmem:[%s298 + $0xa8] sm:$0xff] %vm350, %v2509
        %2537 = vst [vmem:[%s298 + $0xb0] sm:$0xff] %v2478
        %2538 = vst.msk [vmem:[%s298 + $0xb8] sm:$0xff] %vm350, %v2510
        %2539 = vst [vmem:[%s298 + $0xc0] sm:$0xff] %v2479
        %2540 = vst.msk [vmem:[%s298 + $0xc8] sm:$0xff] %vm350, %v2511
        %2541 = vst [vmem:[%s298 + $0xd0] sm:$0xff] %v2480
        %2542 = vst.msk [vmem:[%s298 + $0xd8] sm:$0xff] %vm350, %v2512
        %2543 = vst [vmem:[%s298 + $0xe0] sm:$0xff] %v2481
        %2544 = vst.msk [vmem:[%s298 + $0xe8] sm:$0xff] %vm350, %v2513
        %2545 = vst [vmem:[%s298 + $0xf0] sm:$0xff] %v2482
        %2546 = vst.msk [vmem:[%s298 + $0xf8] sm:$0xff] %vm350, %v2514
        %s2547 = smul.u32 16, %s15
        %p2548 = scmp.lt.s32.totalorder %s2547, 47
        %s2549 = scalar_select %p2548, %s2547, 47
        %s2550 = smul.addr %s2549, 2
        %s2551 = smul.addr %s2550, 8
        %s2552 = scalar_lea.vmem %s4, %s2551
        // Predicated region
        $region75: #{bn_relu_dwconv.1} parent=69 // pred_check
          %p2553 = pneg %p137
        $region76: #{bn_relu_dwconv.1} parent=69 // pred_check_branch
          %2555 = sbr.rel (%p2553) target = $region78
        $region77: #{bn_relu_dwconv.1} parent=69 // pred_region
          %s2556 = smul.u32 16, %s15
        $region78: #{bn_relu_dwconv.1} parent=69 // pred_fallthru
          _
      $region70: #{bn_relu_dwconv.1} parent=5 // pred_fallthru
        _
      %p2557 = scmp.le.s32.totalorder 2, %s10
      // Predicated region
      $region79: #{bn_relu_dwconv.1} parent=5 // pred_check
        %p2558 = pneg %p2557
      $region80: #{bn_relu_dwconv.1} parent=5 // pred_check_branch
        %2560 = sbr.rel (%p2558) target = $region82
      $region81: #{bn_relu_dwconv.1} parent=5 // pred_region
        %s2561 = ssub.s32 %s10, 2
        // Predicated region
        $region83: #{bn_relu_dwconv.1} parent=81 // pred_check
          %p2562 = pneg %p143
        $region84: #{bn_relu_dwconv.1} parent=81 // pred_check_branch
          %2564 = sbr.rel (%p2562) target = $region86
        $region85: #{bn_relu_dwconv.1} parent=81 // pred_region
          %s2565 = smul.u32 16, %s16
          %p2566 = scmp.lt.s32.totalorder %s2565, 47
          %s2567 = scalar_select %p2566, %s2565, 47
          %s2568 = smul.addr %s2567, 2
          %s2569 = smul.addr %s2568, 8
          %s2570 = scalar_lea.vmem %s4, %s2569
        $region86: #{bn_relu_dwconv.1} parent=81 // pred_fallthru
          _
      $region82: #{bn_relu_dwconv.1} parent=5 // pred_fallthru
        _
    $region6: #{bn_relu_dwconv.1} parent=1 // loop_footer
      %s14 = sadd.s32 1, %s10
    $region7: #{bn_relu_dwconv.1} parent=1 // loop_footer_branch
      %9 = sbr.rel target = $region3
    $region8: #{bn_relu_dwconv.1} parent=1 // loop_exit
      _

</llo_original>
